<compile_context>
chip_gen: v7x
topology: tpu7x:2x2x1
jax: 0.10.0
libtpu: 0.0.40
codegen_flags: <defaults>
</compile_context>

<pallas_src>
import math

import numpy as np
import jax
import jax.numpy as jnp
from jax import lax
from jax.experimental import pallas as pl
from jax.experimental.pallas import tpu as pltpu

BN_EPS = 1e-5
LRELU_SLOPE = 0.2
COMPUTE_DTYPE = jnp.bfloat16           # MXU operand / inter-layer activation dtype
_VMEM_LIMIT_BYTES = 32 * 1024 * 1024   # explicit; fits v5e/v6e/v7x scoped VMEM

# (kernel, stride, pad, has_bn) for the two standalone spatial conv layers.
CONV12_CFG = ((4, 2, 1, False), (4, 2, 1, True))
CONV3_CFG = (3, 2, 1)                  # conv3 is fused into the tail kernel


def _lrelu(y):
    return jnp.where(y >= 0.0, y, LRELU_SLOPE * y)


def _full_spec(shape):
    return pl.BlockSpec(tuple(shape), lambda i: (0,) * len(shape))


def _compiler_params():
    return pltpu.CompilerParams(dimension_semantics=("arbitrary",),
                                vmem_limit_bytes=_VMEM_LIMIT_BYTES)


def _bytes_of(arrays, out_shape, out_dtype):
    n = sum(int(a.size) * a.dtype.itemsize for a in arrays)
    return n + int(math.prod(out_shape)) * np.dtype(out_dtype).itemsize


# ------------------------------ Pallas kernels -------------------------------
def _mm_bias_lrelu_kernel(x_ref, w_ref, b_ref, o_ref):
    """y = LeakyReLU(x @ w + b).  bf16 operands, f32 accumulate + epilogue."""
    y = jnp.dot(x_ref[...], w_ref[...], preferred_element_type=jnp.float32)
    o_ref[...] = _lrelu(y + b_ref[...]).astype(o_ref.dtype)


def _mm_bn_lrelu_kernel(x_ref, w_ref, g_ref, be_ref, o_ref):
    """y = LeakyReLU(BN_train(x @ w)), single-pass batch stats.

    Conv bias is intentionally absent (exactly cancelled by the batch-mean
    subtraction); gamma*rsqrt(var+eps) is folded into one per-channel scale.
    NOTE: batch stats are over all M rows -- correct because grid=(1,).  Any
    future M-tiling must switch to cross-tile sum / sum-of-squares accumulation.
    """
    y = jnp.dot(x_ref[...], w_ref[...], preferred_element_type=jnp.float32)
    mean = jnp.mean(y, axis=0, keepdims=True)
    var = jnp.mean(y * y, axis=0, keepdims=True) - mean * mean
    scale = g_ref[...] * lax.rsqrt(var + BN_EPS)
    o_ref[...] = _lrelu(y * scale + (be_ref[...] - mean * scale)).astype(o_ref.dtype)


def _tail_kernel(p3_ref, oh_ref, w3_ref, g3_ref, be3_ref, w4_ref, g4_ref, be4_ref,
                 w5_ref, b5_ref, wf1a_ref, wf1b_ref, bf1_ref, wf2_ref, bf2_ref,
                 o_ref, y3_scr):
    """conv3 + BN + LReLU, conv4 + BN + LReLU, conv5 (1x1), concat, fc1 + LReLU, fc2.

    p3_ref rows are POSITION-MAJOR: row = p*B + b with p = h*4 + w of the conv3
    output map, so the conv4 matmul is a sum of 16 contiguous row-block dots
    against aligned 128-row slices of w4 -- no in-kernel relayout needed.
    """
    b = o_ref.shape[0]
    n_pos = y3_scr.shape[0] // b                       # 16 spatial positions
    c3 = y3_scr.shape[1]                               # 128 conv3 channels

    # ---- conv3 (3x3, s2) as a dense matmul over pre-extracted patches + BN + LReLU.
    s3 = jnp.dot(p3_ref[...], w3_ref[...], preferred_element_type=jnp.float32)
    mean3 = jnp.mean(s3, axis=0, keepdims=True)        # stats over all B*16 rows
    var3 = jnp.mean(s3 * s3, axis=0, keepdims=True) - mean3 * mean3
    scale3 = g3_ref[...] * lax.rsqrt(var3 + BN_EPS)
    y3_scr[...] = _lrelu(s3 * scale3 + (be3_ref[...] - mean3 * scale3))

    # ---- conv4 (4x4 valid on the 4x4 map) == sum over positions of row-block dots.
    y4 = jnp.zeros((b, w4_ref.shape[1]), jnp.float32)
    for p in range(n_pos):                             # static unroll: VMEM-resident
        y4 = y4 + jnp.dot(
            y3_scr[p * b:(p + 1) * b, :].astype(COMPUTE_DTYPE),
            w4_ref[p * c3:(p + 1) * c3, :],
            preferred_element_type=jnp.float32)
    mean4 = jnp.mean(y4, axis=0, keepdims=True)        # BN over the B rows
    var4 = jnp.mean(y4 * y4, axis=0, keepdims=True) - mean4 * mean4
    scale4 = g4_ref[...] * lax.rsqrt(var4 + BN_EPS)
    y4 = _lrelu(y4 * scale4 + (be4_ref[...] - mean4 * scale4))     # (B, 256) f32

    # ---- conv5: 1x1 conv == Linear -> 64-d embedding (bias, no activation).
    emb = jnp.dot(y4.astype(COMPUTE_DTYPE), w5_ref[...],
                  preferred_element_type=jnp.float32) + b5_ref[...]

    # ---- fc1 on concat([emb, one_hot]):  concat(a,b) @ W == a @ W[:64] + b @ W[64:]
    z = (jnp.dot(emb.astype(COMPUTE_DTYPE), wf1a_ref[...],
                 preferred_element_type=jnp.float32)
         + jnp.dot(oh_ref[...], wf1b_ref[...], preferred_element_type=jnp.float32)
         + bf1_ref[...])
    z = _lrelu(z)

    # ---- fc2
    o_ref[...] = (jnp.dot(z.astype(COMPUTE_DTYPE), wf2_ref[...],
                          preferred_element_type=jnp.float32)
                  + bf2_ref[...]).astype(o_ref.dtype)


# -------------------------------- wrappers ------------------------------------
def conv_block(patches, w, extras, *, has_bn):
    """Fused (M,K)@(K,N) + [bias | train-BN] + LeakyReLU as one VMEM-resident block."""
    m, k_dim = patches.shape
    n = w.shape[1]
    kernel = _mm_bn_lrelu_kernel if has_bn else _mm_bias_lrelu_kernel
    operands = [patches, w, *extras]
    return pl.pallas_call(
        kernel,
        out_shape=jax.ShapeDtypeStruct((m, n), COMPUTE_DTYPE),
        grid=(1,),
        in_specs=[_full_spec(a.shape) for a in operands],
        out_specs=_full_spec((m, n)),
        compiler_params=_compiler_params(),
        cost_estimate=pl.CostEstimate(
            flops=2 * m * k_dim * n,
            transcendentals=n if has_bn else 0,       # rsqrt lanes of the BN epilogue
            bytes_accessed=_bytes_of(operands, (m, n), COMPUTE_DTYPE)),
    )(*operands)


def tail_block(p3, one_hot, tp, batch):
    """conv3 + conv4 + conv5 + concat + fc1 + fc2 in one kernel (single launch)."""
    n_rows, k3 = p3.shape
    c3 = tp["w3"].shape[1]
    operands = [p3, one_hot, tp["w3"], tp["g3"], tp["be3"], tp["w4"], tp["g4"],
                tp["be4"], tp["w5"], tp["b5"], tp["wf1a"], tp["wf1b"], tp["bf1"],
                tp["wf2"], tp["bf2"]]
    flops = 2 * (n_rows * k3 * c3
                 + batch * sum(int(tp[nm].shape[0]) * int(tp[nm].shape[1])
                               for nm in ("w4", "w5", "wf1a", "wf1b", "wf2")))
    return pl.pallas_call(
        _tail_kernel,
        out_shape=jax.ShapeDtypeStruct((batch, 1), jnp.float32),
        grid=(1,),
        in_specs=[_full_spec(a.shape) for a in operands],
        out_specs=_full_spec((batch, 1)),
        scratch_shapes=[pltpu.VMEM((n_rows, c3), jnp.float32)],   # conv3 activation
        compiler_params=_compiler_params(),
        cost_estimate=pl.CostEstimate(
            flops=flops,
            transcendentals=c3 + int(tp["w4"].shape[1]),          # BN3 + BN4 rsqrt
            bytes_accessed=_bytes_of(operands, (batch, 1), jnp.float32)),
    )(*operands)


# ------------------------------ forward glue ----------------------------------
def simple_c_discriminator_forward(params, x_nchw, c_one_hot):
    """x_nchw: (B, C, H, W) float32, c_one_hot: (B, num_classes).  Returns (B, 1)."""
    batch = x_nchw.shape[0]
    # Single layout change up front; the whole net then stays channels-last (NHWC).
    h = jnp.transpose(x_nchw, (0, 2, 3, 1)).astype(COMPUTE_DTYPE)
    for (kk, st, pad, has_bn), layer in zip(CONV12_CFG, params["convs"]):
        patches = lax.conv_general_dilated_patches(
            h, filter_shape=(kk, kk), window_strides=(st, st),
            padding=((pad, pad), (pad, pad)),
            dimension_numbers=("NHWC", "HWIO", "NHWC"))
        _, oh, ow, kdim = patches.shape
        out2d = conv_block(patches.reshape(batch * oh * ow, kdim),
                           layer["w"], layer["extras"], has_bn=has_bn)
        h = out2d.reshape(batch, oh, ow, -1)

    # conv3 patches, rearranged position-major (p outer, batch inner) so the fused
    # tail kernel can drive conv4 with contiguous per-position row blocks.
    kk3, st3, pad3 = CONV3_CFG
    p3 = lax.conv_general_dilated_patches(
        h, filter_shape=(kk3, kk3), window_strides=(st3, st3),
        padding=((pad3, pad3), (pad3, pad3)),
        dimension_numbers=("NHWC", "HWIO", "NHWC"))               # (B, 4, 4, 576)
    _, oh3, ow3, k3 = p3.shape
    p3 = jnp.transpose(p3, (1, 2, 0, 3)).reshape(oh3 * ow3 * batch, k3)
    # one-hot entries are exactly representable in bf16
    return tail_block(p3, c_one_hot.astype(COMPUTE_DTYPE), params["tail"], batch)


# -------------------------------- parameters ----------------------------------
def make_params(key, num_classes=10, channels=1, n_hidden=32, hidden_multiplier=2,
                n_emb=64):
    c, k = n_hidden, hidden_multiplier
    ks = iter(jax.random.split(key, 16))

    def unif(rng, shape, fan_in):
        bound = 1.0 / math.sqrt(fan_in)
        return jax.random.uniform(rng, shape, jnp.float32, -bound, bound)

    # conv1 (no BN) / conv2 (BN) as standalone blocks.
    in_ch, out_ch = [channels, c], [c, c * k]
    convs = []
    for (kk, _, _, has_bn), ic, oc in zip(CONV12_CFG, in_ch, out_ch):
        wt = unif(next(ks), (oc, ic, kk, kk), ic * kk * kk)       # torch OIHW layout
        w = wt.reshape(oc, -1).T.astype(COMPUTE_DTYPE)            # cols = (ic, kh, kw)
        if has_bn:
            # torch BN init: gamma=1, beta=0.  Conv bias dropped (cancelled by BN).
            extras = (jnp.ones((1, oc), jnp.float32), jnp.zeros((1, oc), jnp.float32))
        else:
            extras = (unif(next(ks), (1, oc), ic * kk * kk),)
        convs.append(dict(w=w, extras=extras))

    ic3, oc3 = c * k, c * k ** 2                                  # 64 -> 128, 3x3
    w3t = unif(next(ks), (oc3, ic3, 3, 3), ic3 * 9)
    ic4, oc4 = oc3, c * k ** 3                                    # 128 -> 256, 4x4
    w4t = unif(next(ks), (oc4, ic4, 4, 4), ic4 * 16)
    tail = dict(
        w3=w3t.reshape(oc3, -1).T.astype(COMPUTE_DTYPE),          # (576, 128), (ic,kh,kw)
        g3=jnp.ones((1, oc3), jnp.float32),
        be3=jnp.zeros((1, oc3), jnp.float32),
        # conv4 weight rows follow the NHWC (kh, kw, ic) flatten = position-major.
        w4=w4t.transpose(2, 3, 1, 0).reshape(16 * ic4, oc4).astype(COMPUTE_DTYPE),
        g4=jnp.ones((1, oc4), jnp.float32),
        be4=jnp.zeros((1, oc4), jnp.float32),
        w5=unif(next(ks), (n_emb, oc4, 1, 1), oc4)
             .reshape(n_emb, oc4).T.astype(COMPUTE_DTYPE),        # (256, 64)
        b5=unif(next(ks), (1, n_emb), oc4),
    )
    wf1 = unif(next(ks), (64, n_emb + num_classes), n_emb + num_classes).T     # (74, 64)
    tail.update(
        wf1a=wf1[:n_emb].astype(COMPUTE_DTYPE),      # multiplies the 64-d embedding
        wf1b=wf1[n_emb:].astype(COMPUTE_DTYPE),      # multiplies the one-hot vector
        bf1=unif(next(ks), (1, 64), n_emb + num_classes),
        wf2=unif(next(ks), (1, 64), 64).T.astype(COMPUTE_DTYPE),               # (64, 1)
        bf2=unif(next(ks), (1, 1), 64),
    )
    return dict(convs=convs, tail=tail)


# ----------------------------------- main --------------------------------------
if __name__ == "__main__":
    root = jax.random.PRNGKey(0)
    k_param, k_x, k_lbl = jax.random.split(root, 3)

    B, C, H, W = 2, 1, 28, 28
    NUM_CLASSES = 10

    params = make_params(k_param, num_classes=NUM_CLASSES, channels=C,
                         n_hidden=32, hidden_multiplier=2)
    x = jax.random.normal(k_x, (B, C, H, W), jnp.float32)
    labels = jax.random.randint(k_lbl, (B,), 0, NUM_CLASSES)
    c_one_hot = jax.nn.one_hot(labels, NUM_CLASSES, dtype=jnp.float32)

    fwd = jax.jit(simple_c_discriminator_forward)
    out = jax.block_until_ready(fwd(params, x, c_one_hot))
    assert out.shape == (B, 1), out.shape
    assert bool(jnp.all(jnp.isfinite(out)))
    print("KERNEL_OK")
</pallas_src>

<mosaic_0001>
module attributes {stable_mosaic.version = 11 : i64} {
  func.func @_mm_bias_lrelu_kernel(%arg0: i32, %arg1: memref<392x16xbf16, #tpu.memory_space<vmem>>, %arg2: memref<16x32xbf16, #tpu.memory_space<vmem>>, %arg3: memref<1x32xf32, #tpu.memory_space<vmem>>, %arg4: memref<392x32xbf16, #tpu.memory_space<vmem>>) attributes {dimension_semantics = [#tpu.dimension_semantics<arbitrary>], iteration_bounds = array<i64: 1>, scalar_prefetch = 0 : i64, scratch_operands = 0 : i64, tpu.core_type = #tpu.core_type<tc>, window_params = [{pipeline_mode = #tpu.pipeline_mode<synchronous>, transform_indices = @transform_0, window_bounds = array<i64: 392, 16>}, {pipeline_mode = #tpu.pipeline_mode<synchronous>, transform_indices = @transform_1, window_bounds = array<i64: 16, 32>}, {pipeline_mode = #tpu.pipeline_mode<synchronous>, transform_indices = @transform_2, window_bounds = array<i64: 1, 32>}, {pipeline_mode = #tpu.pipeline_mode<synchronous>, transform_indices = @transform_3, window_bounds = array<i64: 392, 32>}]} {
    %c0 = arith.constant 0 : index
    %c0_0 = arith.constant 0 : index
    %0 = vector.load %arg1[%c0, %c0_0] : memref<392x16xbf16, #tpu.memory_space<vmem>>, vector<392x16xbf16>
    %c0_1 = arith.constant 0 : index
    %c0_2 = arith.constant 0 : index
    %1 = vector.load %arg2[%c0_1, %c0_2] : memref<16x32xbf16, #tpu.memory_space<vmem>>, vector<16x32xbf16>
    %cst = arith.constant dense<0.000000e+00> : vector<392x32xf32>
    %2 = tpu.matmul %0, %1, %cst {dimension_numbers = #tpu.dot_dimension_numbers<[1], [0], [0], [1], [0, 0, 1, 1], [], []>} : vector<392x16xbf16>, vector<16x32xbf16>, vector<392x32xf32> -> vector<392x32xf32>
    %c0_3 = arith.constant 0 : index
    %c0_4 = arith.constant 0 : index
    %3 = vector.load %arg3[%c0_3, %c0_4] : memref<1x32xf32, #tpu.memory_space<vmem>>, vector<1x32xf32>
    %4 = vector.broadcast %3 : vector<1x32xf32> to vector<392x32xf32>
    %5 = arith.addf %2, %4 : vector<392x32xf32>
    %cst_5 = arith.constant 0.000000e+00 : f32
    %6 = vector.broadcast %cst_5 : f32 to vector<392x32xf32>
    %7 = arith.cmpf oge, %5, %6 : vector<392x32xf32>
    %cst_6 = arith.constant 2.000000e-01 : f32
    %8 = vector.broadcast %cst_6 : f32 to vector<392x32xf32>
    %9 = arith.mulf %8, %5 : vector<392x32xf32>
    %10 = arith.select %7, %5, %9 : vector<392x32xi1>, vector<392x32xf32>
    %11 = arith.truncf %10 : vector<392x32xf32> to vector<392x32xbf16>
    %c0_7 = arith.constant 0 : index
    %c0_8 = arith.constant 0 : index
    %12 = vector.load %arg4[%c0_7, %c0_8] : memref<392x32xbf16, #tpu.memory_space<vmem>>, vector<392x32xbf16>
    tpu.vector_store %arg4[%c0_7, %c0_8], %11 {strides = array<i32>} : memref<392x32xbf16, #tpu.memory_space<vmem>>, vector<392x32xbf16>,
    return
  }
  func.func @transform_0(%arg0: i32) -> (i32, i32) {
    %c0_i32 = arith.constant 0 : i32
    %c0_i32_0 = arith.constant 0 : i32
    %c0_i32_1 = arith.constant 0 : i32
    return %c0_i32, %c0_i32_0 : i32, i32
  }
  func.func @transform_1(%arg0: i32) -> (i32, i32) {
    %c0_i32 = arith.constant 0 : i32
    %c0_i32_0 = arith.constant 0 : i32
    %c0_i32_1 = arith.constant 0 : i32
    return %c0_i32, %c0_i32_0 : i32, i32
  }
  func.func @transform_2(%arg0: i32) -> (i32, i32) {
    %c0_i32 = arith.constant 0 : i32
    %c0_i32_0 = arith.constant 0 : i32
    %c0_i32_1 = arith.constant 0 : i32
    return %c0_i32, %c0_i32_0 : i32, i32
  }
  func.func @transform_3(%arg0: i32) -> (i32, i32) {
    %c0_i32 = arith.constant 0 : i32
    %c0_i32_0 = arith.constant 0 : i32
    %c0_i32_1 = arith.constant 0 : i32
    return %c0_i32, %c0_i32_0 : i32, i32
  }
}

module attributes {stable_mosaic.version = 11 : i64} {
  func.func @_mm_bn_lrelu_kernel(%arg0: i32, %arg1: memref<98x512xbf16, #tpu.memory_space<vmem>>, %arg2: memref<512x64xbf16, #tpu.memory_space<vmem>>, %arg3: memref<1x64xf32, #tpu.memory_space<vmem>>, %arg4: memref<1x64xf32, #tpu.memory_space<vmem>>, %arg5: memref<98x64xbf16, #tpu.memory_space<vmem>>) attributes {dimension_semantics = [#tpu.dimension_semantics<arbitrary>], iteration_bounds = array<i64: 1>, scalar_prefetch = 0 : i64, scratch_operands = 0 : i64, tpu.core_type = #tpu.core_type<tc>, window_params = [{pipeline_mode = #tpu.pipeline_mode<synchronous>, transform_indices = @transform_0, window_bounds = array<i64: 98, 512>}, {pipeline_mode = #tpu.pipeline_mode<synchronous>, transform_indices = @transform_1, window_bounds = array<i64: 512, 64>}, {pipeline_mode = #tpu.pipeline_mode<synchronous>, transform_indices = @transform_2, window_bounds = array<i64: 1, 64>}, {pipeline_mode = #tpu.pipeline_mode<synchronous>, transform_indices = @transform_3, window_bounds = array<i64: 1, 64>}, {pipeline_mode = #tpu.pipeline_mode<synchronous>, transform_indices = @transform_4, window_bounds = array<i64: 98, 64>}]} {
    %c0 = arith.constant 0 : index
    %c0_0 = arith.constant 0 : index
    %0 = vector.load %arg1[%c0, %c0_0] : memref<98x512xbf16, #tpu.memory_space<vmem>>, vector<98x512xbf16>
    %c0_1 = arith.constant 0 : index
    %c0_2 = arith.constant 0 : index
    %1 = vector.load %arg2[%c0_1, %c0_2] : memref<512x64xbf16, #tpu.memory_space<vmem>>, vector<512x64xbf16>
    %cst = arith.constant dense<0.000000e+00> : vector<98x64xf32>
    %2 = tpu.matmul %0, %1, %cst {dimension_numbers = #tpu.dot_dimension_numbers<[1], [0], [0], [1], [0, 0, 1, 1], [], []>} : vector<98x512xbf16>, vector<512x64xbf16>, vector<98x64xf32> -> vector<98x64xf32>
    %cst_3 = arith.constant dense<0.000000e+00> : vector<64xf32>
    %3 = vector.multi_reduction <add>, %2, %cst_3 [0] : vector<98x64xf32> to vector<64xf32>
    %4 = vector.shape_cast %3 : vector<64xf32> to vector<1x64xf32>
    %cst_4 = arith.constant 9.800000e+01 : f32
    %5 = vector.broadcast %cst_4 : f32 to vector<1x64xf32>
    %6 = arith.divf %4, %5 : vector<1x64xf32>
    %7 = arith.mulf %2, %2 : vector<98x64xf32>
    %cst_5 = arith.constant dense<0.000000e+00> : vector<64xf32>
    %8 = vector.multi_reduction <add>, %7, %cst_5 [0] : vector<98x64xf32> to vector<64xf32>
    %9 = vector.shape_cast %8 : vector<64xf32> to vector<1x64xf32>
    %cst_6 = arith.constant 9.800000e+01 : f32
    %10 = vector.broadcast %cst_6 : f32 to vector<1x64xf32>
    %11 = arith.divf %9, %10 : vector<1x64xf32>
    %12 = arith.mulf %6, %6 : vector<1x64xf32>
    %13 = arith.subf %11, %12 : vector<1x64xf32>
    %c0_7 = arith.constant 0 : index
    %c0_8 = arith.constant 0 : index
    %14 = vector.load %arg3[%c0_7, %c0_8] : memref<1x64xf32, #tpu.memory_space<vmem>>, vector<1x64xf32>
    %cst_9 = arith.constant 9.99999974E-6 : f32
    %15 = vector.broadcast %cst_9 : f32 to vector<1x64xf32>
    %16 = arith.addf %13, %15 : vector<1x64xf32>
    %17 = math.rsqrt %16 : vector<1x64xf32>
    %18 = arith.mulf %14, %17 : vector<1x64xf32>
    %19 = vector.broadcast %18 : vector<1x64xf32> to vector<98x64xf32>
    %20 = arith.mulf %2, %19 : vector<98x64xf32>
    %c0_10 = arith.constant 0 : index
    %c0_11 = arith.constant 0 : index
    %21 = vector.load %arg4[%c0_10, %c0_11] : memref<1x64xf32, #tpu.memory_space<vmem>>, vector<1x64xf32>
    %22 = arith.mulf %6, %18 : vector<1x64xf32>
    %23 = arith.subf %21, %22 : vector<1x64xf32>
    %24 = vector.broadcast %23 : vector<1x64xf32> to vector<98x64xf32>
    %25 = arith.addf %20, %24 : vector<98x64xf32>
    %cst_12 = arith.constant 0.000000e+00 : f32
    %26 = vector.broadcast %cst_12 : f32 to vector<98x64xf32>
    %27 = arith.cmpf oge, %25, %26 : vector<98x64xf32>
    %cst_13 = arith.constant 2.000000e-01 : f32
    %28 = vector.broadcast %cst_13 : f32 to vector<98x64xf32>
    %29 = arith.mulf %28, %25 : vector<98x64xf32>
    %30 = arith.select %27, %25, %29 : vector<98x64xi1>, vector<98x64xf32>
    %31 = arith.truncf %30 : vector<98x64xf32> to vector<98x64xbf16>
    %c0_14 = arith.constant 0 : index
    %c0_15 = arith.constant 0 : index
    %32 = vector.load %arg5[%c0_14, %c0_15] : memref<98x64xbf16, #tpu.memory_space<vmem>>, vector<98x64xbf16>
    tpu.vector_store %arg5[%c0_14, %c0_15], %31 {strides = array<i32>} : memref<98x64xbf16, #tpu.memory_space<vmem>>, vector<98x64xbf16>,
    return
  }
  func.func @transform_0(%arg0: i32) -> (i32, i32) {
    %c0_i32 = arith.constant 0 : i32
    %c0_i32_0 = arith.constant 0 : i32
    %c0_i32_1 = arith.constant 0 : i32
    return %c0_i32, %c0_i32_0 : i32, i32
  }
  func.func @transform_1(%arg0: i32) -> (i32, i32) {
    %c0_i32 = arith.constant 0 : i32
    %c0_i32_0 = arith.constant 0 : i32
    %c0_i32_1 = arith.constant 0 : i32
    return %c0_i32, %c0_i32_0 : i32, i32
  }
  func.func @transform_2(%arg0: i32) -> (i32, i32) {
    %c0_i32 = arith.constant 0 : i32
    %c0_i32_0 = arith.constant 0 : i32
    %c0_i32_1 = arith.constant 0 : i32
    return %c0_i32, %c0_i32_0 : i32, i32
  }
  func.func @transform_3(%arg0: i32) -> (i32, i32) {
    %c0_i32 = arith.constant 0 : i32
    %c0_i32_0 = arith.constant 0 : i32
    %c0_i32_1 = arith.constant 0 : i32
    return %c0_i32, %c0_i32_0 : i32, i32
  }
  func.func @transform_4(%arg0: i32) -> (i32, i32) {
    %c0_i32 = arith.constant 0 : i32
    %c0_i32_0 = arith.constant 0 : i32
    %c0_i32_1 = arith.constant 0 : i32
    return %c0_i32, %c0_i32_0 : i32, i32
  }
}

module attributes {stable_mosaic.version = 11 : i64} {
  func.func @_tail_kernel(%arg0: i32, %arg1: memref<32x576xbf16, #tpu.memory_space<vmem>>, %arg2: memref<2x10xbf16, #tpu.memory_space<vmem>>, %arg3: memref<576x128xbf16, #tpu.memory_space<vmem>>, %arg4: memref<1x128xf32, #tpu.memory_space<vmem>>, %arg5: memref<1x128xf32, #tpu.memory_space<vmem>>, %arg6: memref<2048x256xbf16, #tpu.memory_space<vmem>>, %arg7: memref<1x256xf32, #tpu.memory_space<vmem>>, %arg8: memref<1x256xf32, #tpu.memory_space<vmem>>, %arg9: memref<256x64xbf16, #tpu.memory_space<vmem>>, %arg10: memref<1x64xf32, #tpu.memory_space<vmem>>, %arg11: memref<64x64xbf16, #tpu.memory_space<vmem>>, %arg12: memref<10x64xbf16, #tpu.memory_space<vmem>>, %arg13: memref<1x64xf32, #tpu.memory_space<vmem>>, %arg14: memref<64x1xbf16, #tpu.memory_space<vmem>>, %arg15: memref<1x1xf32, #tpu.memory_space<vmem>>, %arg16: memref<2x1xf32, #tpu.memory_space<vmem>>, %arg17: memref<32x128xf32, #tpu.memory_space<vmem>>) attributes {dimension_semantics = [#tpu.dimension_semantics<arbitrary>], iteration_bounds = array<i64: 1>, scalar_prefetch = 0 : i64, scratch_operands = 1 : i64, tpu.core_type = #tpu.core_type<tc>, window_params = [{pipeline_mode = #tpu.pipeline_mode<synchronous>, transform_indices = @transform_0, window_bounds = array<i64: 32, 576>}, {pipeline_mode = #tpu.pipeline_mode<synchronous>, transform_indices = @transform_1, window_bounds = array<i64: 2, 10>}, {pipeline_mode = #tpu.pipeline_mode<synchronous>, transform_indices = @transform_2, window_bounds = array<i64: 576, 128>}, {pipeline_mode = #tpu.pipeline_mode<synchronous>, transform_indices = @transform_3, window_bounds = array<i64: 1, 128>}, {pipeline_mode = #tpu.pipeline_mode<synchronous>, transform_indices = @transform_4, window_bounds = array<i64: 1, 128>}, {pipeline_mode = #tpu.pipeline_mode<synchronous>, transform_indices = @transform_5, window_bounds = array<i64: 2048, 256>}, {pipeline_mode = #tpu.pipeline_mode<synchronous>, transform_indices = @transform_6, window_bounds = array<i64: 1, 256>}, {pipeline_mode = #tpu.pipeline_mode<synchronous>, transform_indices = @transform_7, window_bounds = array<i64: 1, 256>}, {pipeline_mode = #tpu.pipeline_mode<synchronous>, transform_indices = @transform_8, window_bounds = array<i64: 256, 64>}, {pipeline_mode = #tpu.pipeline_mode<synchronous>, transform_indices = @transform_9, window_bounds = array<i64: 1, 64>}, {pipeline_mode = #tpu.pipeline_mode<synchronous>, transform_indices = @transform_10, window_bounds = array<i64: 64, 64>}, {pipeline_mode = #tpu.pipeline_mode<synchronous>, transform_indices = @transform_11, window_bounds = array<i64: 10, 64>}, {pipeline_mode = #tpu.pipeline_mode<synchronous>, transform_indices = @transform_12, window_bounds = array<i64: 1, 64>}, {pipeline_mode = #tpu.pipeline_mode<synchronous>, transform_indices = @transform_13, window_bounds = array<i64: 64, 1>}, {pipeline_mode = #tpu.pipeline_mode<synchronous>, transform_indices = @transform_14, window_bounds = array<i64: 1, 1>}, {pipeline_mode = #tpu.pipeline_mode<synchronous>, transform_indices = @transform_15, window_bounds = array<i64: 2, 1>}]} {
    %c0 = arith.constant 0 : index
    %c0_0 = arith.constant 0 : index
    %0 = vector.load %arg1[%c0, %c0_0] : memref<32x576xbf16, #tpu.memory_space<vmem>>, vector<32x576xbf16>
    %c0_1 = arith.constant 0 : index
    %c0_2 = arith.constant 0 : index
    %1 = vector.load %arg3[%c0_1, %c0_2] : memref<576x128xbf16, #tpu.memory_space<vmem>>, vector<576x128xbf16>
    %cst = arith.constant dense<0.000000e+00> : vector<32x128xf32>
    %2 = tpu.matmul %0, %1, %cst {dimension_numbers = #tpu.dot_dimension_numbers<[1], [0], [0], [1], [0, 0, 1, 1], [], []>} : vector<32x576xbf16>, vector<576x128xbf16>, vector<32x128xf32> -> vector<32x128xf32>
    %cst_3 = arith.constant dense<0.000000e+00> : vector<128xf32>
    %3 = vector.multi_reduction <add>, %2, %cst_3 [0] : vector<32x128xf32> to vector<128xf32>
    %4 = vector.shape_cast %3 : vector<128xf32> to vector<1x128xf32>
    %cst_4 = arith.constant 3.200000e+01 : f32
    %5 = vector.broadcast %cst_4 : f32 to vector<1x128xf32>
    %6 = arith.divf %4, %5 : vector<1x128xf32>
    %7 = arith.mulf %2, %2 : vector<32x128xf32>
    %cst_5 = arith.constant dense<0.000000e+00> : vector<128xf32>
    %8 = vector.multi_reduction <add>, %7, %cst_5 [0] : vector<32x128xf32> to vector<128xf32>
    %9 = vector.shape_cast %8 : vector<128xf32> to vector<1x128xf32>
    %cst_6 = arith.constant 3.200000e+01 : f32
    %10 = vector.broadcast %cst_6 : f32 to vector<1x128xf32>
    %11 = arith.divf %9, %10 : vector<1x128xf32>
    %12 = arith.mulf %6, %6 : vector<1x128xf32>
    %13 = arith.subf %11, %12 : vector<1x128xf32>
    %c0_7 = arith.constant 0 : index
    %c0_8 = arith.constant 0 : index
    %14 = vector.load %arg4[%c0_7, %c0_8] : memref<1x128xf32, #tpu.memory_space<vmem>>, vector<1x128xf32>
    %cst_9 = arith.constant 9.99999974E-6 : f32
    %15 = vector.broadcast %cst_9 : f32 to vector<1x128xf32>
    %16 = arith.addf %13, %15 : vector<1x128xf32>
    %17 = math.rsqrt %16 : vector<1x128xf32>
    %18 = arith.mulf %14, %17 : vector<1x128xf32>
    %19 = vector.broadcast %18 : vector<1x128xf32> to vector<32x128xf32>
    %20 = arith.mulf %2, %19 : vector<32x128xf32>
    %c0_10 = arith.constant 0 : index
    %c0_11 = arith.constant 0 : index
    %21 = vector.load %arg5[%c0_10, %c0_11] : memref<1x128xf32, #tpu.memory_space<vmem>>, vector<1x128xf32>
    %22 = arith.mulf %6, %18 : vector<1x128xf32>
    %23 = arith.subf %21, %22 : vector<1x128xf32>
    %24 = vector.broadcast %23 : vector<1x128xf32> to vector<32x128xf32>
    %25 = arith.addf %20, %24 : vector<32x128xf32>
    %cst_12 = arith.constant 0.000000e+00 : f32
    %26 = vector.broadcast %cst_12 : f32 to vector<32x128xf32>
    %27 = arith.cmpf oge, %25, %26 : vector<32x128xf32>
    %cst_13 = arith.constant 2.000000e-01 : f32
    %28 = vector.broadcast %cst_13 : f32 to vector<32x128xf32>
    %29 = arith.mulf %28, %25 : vector<32x128xf32>
    %30 = arith.select %27, %25, %29 : vector<32x128xi1>, vector<32x128xf32>
    %c0_14 = arith.constant 0 : index
    %c0_15 = arith.constant 0 : index
    %31 = vector.load %arg17[%c0_14, %c0_15] : memref<32x128xf32, #tpu.memory_space<vmem>>, vector<32x128xf32>
    tpu.vector_store %arg17[%c0_14, %c0_15], %30 {strides = array<i32>} : memref<32x128xf32, #tpu.memory_space<vmem>>, vector<32x128xf32>,
    %cst_16 = arith.constant 0.000000e+00 : f32
    %32 = vector.broadcast %cst_16 : f32 to vector<2x256xf32>
    %c0_17 = arith.constant 0 : index
    %c0_18 = arith.constant 0 : index
    %33 = vector.load %arg17[%c0_17, %c0_18] : memref<32x128xf32, #tpu.memory_space<vmem>>, vector<2x128xf32>
    %34 = arith.truncf %33 : vector<2x128xf32> to vector<2x128xbf16>
    %c0_19 = arith.constant 0 : index
    %c0_20 = arith.constant 0 : index
    %35 = vector.load %arg6[%c0_19, %c0_20] : memref<2048x256xbf16, #tpu.memory_space<vmem>>, vector<128x256xbf16>
    %cst_21 = arith.constant dense<0.000000e+00> : vector<2x256xf32>
    %36 = tpu.matmul %34, %35, %cst_21 {dimension_numbers = #tpu.dot_dimension_numbers<[1], [0], [0], [1], [0, 0, 1, 1], [], []>} : vector<2x128xbf16>, vector<128x256xbf16>, vector<2x256xf32> -> vector<2x256xf32>
    %37 = arith.addf %32, %36 : vector<2x256xf32>
    %c2 = arith.constant 2 : index
    %c0_22 = arith.constant 0 : index
    %38 = vector.load %arg17[%c2, %c0_22] : memref<32x128xf32, #tpu.memory_space<vmem>>, vector<2x128xf32>
    %39 = arith.truncf %38 : vector<2x128xf32> to vector<2x128xbf16>
    %c128 = arith.constant 128 : index
    %c0_23 = arith.constant 0 : index
    %40 = vector.load %arg6[%c128, %c0_23] : memref<2048x256xbf16, #tpu.memory_space<vmem>>, vector<128x256xbf16>
    %cst_24 = arith.constant dense<0.000000e+00> : vector<2x256xf32>
    %41 = tpu.matmul %39, %40, %cst_24 {dimension_numbers = #tpu.dot_dimension_numbers<[1], [0], [0], [1], [0, 0, 1, 1], [], []>} : vector<2x128xbf16>, vector<128x256xbf16>, vector<2x256xf32> -> vector<2x256xf32>
    %42 = arith.addf %37, %41 : vector<2x256xf32>
    %c4 = arith.constant 4 : index
    %c0_25 = arith.constant 0 : index
    %43 = vector.load %arg17[%c4, %c0_25] : memref<32x128xf32, #tpu.memory_space<vmem>>, vector<2x128xf32>
    %44 = arith.truncf %43 : vector<2x128xf32> to vector<2x128xbf16>
    %c256 = arith.constant 256 : index
    %c0_26 = arith.constant 0 : index
    %45 = vector.load %arg6[%c256, %c0_26] : memref<2048x256xbf16, #tpu.memory_space<vmem>>, vector<128x256xbf16>
    %cst_27 = arith.constant dense<0.000000e+00> : vector<2x256xf32>
    %46 = tpu.matmul %44, %45, %cst_27 {dimension_numbers = #tpu.dot_dimension_numbers<[1], [0], [0], [1], [0, 0, 1, 1], [], []>} : vector<2x128xbf16>, vector<128x256xbf16>, vector<2x256xf32> -> vector<2x256xf32>
    %47 = arith.addf %42, %46 : vector<2x256xf32>
    %c6 = arith.constant 6 : index
    %c0_28 = arith.constant 0 : index
    %48 = vector.load %arg17[%c6, %c0_28] : memref<32x128xf32, #tpu.memory_space<vmem>>, vector<2x128xf32>
    %49 = arith.truncf %48 : vector<2x128xf32> to vector<2x128xbf16>
    %c384 = arith.constant 384 : index
    %c0_29 = arith.constant 0 : index
    %50 = vector.load %arg6[%c384, %c0_29] : memref<2048x256xbf16, #tpu.memory_space<vmem>>, vector<128x256xbf16>
    %cst_30 = arith.constant dense<0.000000e+00> : vector<2x256xf32>
    %51 = tpu.matmul %49, %50, %cst_30 {dimension_numbers = #tpu.dot_dimension_numbers<[1], [0], [0], [1], [0, 0, 1, 1], [], []>} : vector<2x128xbf16>, vector<128x256xbf16>, vector<2x256xf32> -> vector<2x256xf32>
    %52 = arith.addf %47, %51 : vector<2x256xf32>
    %c8 = arith.constant 8 : index
    %c0_31 = arith.constant 0 : index
    %53 = vector.load %arg17[%c8, %c0_31] : memref<32x128xf32, #tpu.memory_space<vmem>>, vector<2x128xf32>
    %54 = arith.truncf %53 : vector<2x128xf32> to vector<2x128xbf16>
    %c512 = arith.constant 512 : index
    %c0_32 = arith.constant 0 : index
    %55 = vector.load %arg6[%c512, %c0_32] : memref<2048x256xbf16, #tpu.memory_space<vmem>>, vector<128x256xbf16>
    %cst_33 = arith.constant dense<0.000000e+00> : vector<2x256xf32>
    %56 = tpu.matmul %54, %55, %cst_33 {dimension_numbers = #tpu.dot_dimension_numbers<[1], [0], [0], [1], [0, 0, 1, 1], [], []>} : vector<2x128xbf16>, vector<128x256xbf16>, vector<2x256xf32> -> vector<2x256xf32>
    %57 = arith.addf %52, %56 : vector<2x256xf32>
    %c10 = arith.constant 10 : index
    %c0_34 = arith.constant 0 : index
    %58 = vector.load %arg17[%c10, %c0_34] : memref<32x128xf32, #tpu.memory_space<vmem>>, vector<2x128xf32>
    %59 = arith.truncf %58 : vector<2x128xf32> to vector<2x128xbf16>
    %c640 = arith.constant 640 : index
    %c0_35 = arith.constant 0 : index
    %60 = vector.load %arg6[%c640, %c0_35] : memref<2048x256xbf16, #tpu.memory_space<vmem>>, vector<128x256xbf16>
    %cst_36 = arith.constant dense<0.000000e+00> : vector<2x256xf32>
    %61 = tpu.matmul %59, %60, %cst_36 {dimension_numbers = #tpu.dot_dimension_numbers<[1], [0], [0], [1], [0, 0, 1, 1], [], []>} : vector<2x128xbf16>, vector<128x256xbf16>, vector<2x256xf32> -> vector<2x256xf32>
    %62 = arith.addf %57, %61 : vector<2x256xf32>
    %c12 = arith.constant 12 : index
    %c0_37 = arith.constant 0 : index
    %63 = vector.load %arg17[%c12, %c0_37] : memref<32x128xf32, #tpu.memory_space<vmem>>, vector<2x128xf32>
    %64 = arith.truncf %63 : vector<2x128xf32> to vector<2x128xbf16>
    %c768 = arith.constant 768 : index
    %c0_38 = arith.constant 0 : index
    %65 = vector.load %arg6[%c768, %c0_38] : memref<2048x256xbf16, #tpu.memory_space<vmem>>, vector<128x256xbf16>
    %cst_39 = arith.constant dense<0.000000e+00> : vector<2x256xf32>
    %66 = tpu.matmul %64, %65, %cst_39 {dimension_numbers = #tpu.dot_dimension_numbers<[1], [0], [0], [1], [0, 0, 1, 1], [], []>} : vector<2x128xbf16>, vector<128x256xbf16>, vector<2x256xf32> -> vector<2x256xf32>
    %67 = arith.addf %62, %66 : vector<2x256xf32>
    %c14 = arith.constant 14 : index
    %c0_40 = arith.constant 0 : index
    %68 = vector.load %arg17[%c14, %c0_40] : memref<32x128xf32, #tpu.memory_space<vmem>>, vector<2x128xf32>
    %69 = arith.truncf %68 : vector<2x128xf32> to vector<2x128xbf16>
    %c896 = arith.constant 896 : index
    %c0_41 = arith.constant 0 : index
    %70 = vector.load %arg6[%c896, %c0_41] : memref<2048x256xbf16, #tpu.memory_space<vmem>>, vector<128x256xbf16>
    %cst_42 = arith.constant dense<0.000000e+00> : vector<2x256xf32>
    %71 = tpu.matmul %69, %70, %cst_42 {dimension_numbers = #tpu.dot_dimension_numbers<[1], [0], [0], [1], [0, 0, 1, 1], [], []>} : vector<2x128xbf16>, vector<128x256xbf16>, vector<2x256xf32> -> vector<2x256xf32>
    %72 = arith.addf %67, %71 : vector<2x256xf32>
    %c16 = arith.constant 16 : index
    %c0_43 = arith.constant 0 : index
    %73 = vector.load %arg17[%c16, %c0_43] : memref<32x128xf32, #tpu.memory_space<vmem>>, vector<2x128xf32>
    %74 = arith.truncf %73 : vector<2x128xf32> to vector<2x128xbf16>
    %c1024 = arith.constant 1024 : index
    %c0_44 = arith.constant 0 : index
    %75 = vector.load %arg6[%c1024, %c0_44] : memref<2048x256xbf16, #tpu.memory_space<vmem>>, vector<128x256xbf16>
    %cst_45 = arith.constant dense<0.000000e+00> : vector<2x256xf32>
    %76 = tpu.matmul %74, %75, %cst_45 {dimension_numbers = #tpu.dot_dimension_numbers<[1], [0], [0], [1], [0, 0, 1, 1], [], []>} : vector<2x128xbf16>, vector<128x256xbf16>, vector<2x256xf32> -> vector<2x256xf32>
    %77 = arith.addf %72, %76 : vector<2x256xf32>
    %c18 = arith.constant 18 : index
    %c0_46 = arith.constant 0 : index
    %78 = vector.load %arg17[%c18, %c0_46] : memref<32x128xf32, #tpu.memory_space<vmem>>, vector<2x128xf32>
    %79 = arith.truncf %78 : vector<2x128xf32> to vector<2x128xbf16>
    %c1152 = arith.constant 1152 : index
    %c0_47 = arith.constant 0 : index
    %80 = vector.load %arg6[%c1152, %c0_47] : memref<2048x256xbf16, #tpu.memory_space<vmem>>, vector<128x256xbf16>
    %cst_48 = arith.constant dense<0.000000e+00> : vector<2x256xf32>
    %81 = tpu.matmul %79, %80, %cst_48 {dimension_numbers = #tpu.dot_dimension_numbers<[1], [0], [0], [1], [0, 0, 1, 1], [], []>} : vector<2x128xbf16>, vector<128x256xbf16>, vector<2x256xf32> -> vector<2x256xf32>
    %82 = arith.addf %77, %81 : vector<2x256xf32>
    %c20 = arith.constant 20 : index
    %c0_49 = arith.constant 0 : index
    %83 = vector.load %arg17[%c20, %c0_49] : memref<32x128xf32, #tpu.memory_space<vmem>>, vector<2x128xf32>
    %84 = arith.truncf %83 : vector<2x128xf32> to vector<2x128xbf16>
    %c1280 = arith.constant 1280 : index
    %c0_50 = arith.constant 0 : index
    %85 = vector.load %arg6[%c1280, %c0_50] : memref<2048x256xbf16, #tpu.memory_space<vmem>>, vector<128x256xbf16>
    %cst_51 = arith.constant dense<0.000000e+00> : vector<2x256xf32>
    %86 = tpu.matmul %84, %85, %cst_51 {dimension_numbers = #tpu.dot_dimension_numbers<[1], [0], [0], [1], [0, 0, 1, 1], [], []>} : vector<2x128xbf16>, vector<128x256xbf16>, vector<2x256xf32> -> vector<2x256xf32>
    %87 = arith.addf %82, %86 : vector<2x256xf32>
    %c22 = arith.constant 22 : index
    %c0_52 = arith.constant 0 : index
    %88 = vector.load %arg17[%c22, %c0_52] : memref<32x128xf32, #tpu.memory_space<vmem>>, vector<2x128xf32>
    %89 = arith.truncf %88 : vector<2x128xf32> to vector<2x128xbf16>
    %c1408 = arith.constant 1408 : index
    %c0_53 = arith.constant 0 : index
    %90 = vector.load %arg6[%c1408, %c0_53] : memref<2048x256xbf16, #tpu.memory_space<vmem>>, vector<128x256xbf16>
    %cst_54 = arith.constant dense<0.000000e+00> : vector<2x256xf32>
    %91 = tpu.matmul %89, %90, %cst_54 {dimension_numbers = #tpu.dot_dimension_numbers<[1], [0], [0], [1], [0, 0, 1, 1], [], []>} : vector<2x128xbf16>, vector<128x256xbf16>, vector<2x256xf32> -> vector<2x256xf32>
    %92 = arith.addf %87, %91 : vector<2x256xf32>
    %c24 = arith.constant 24 : index
    %c0_55 = arith.constant 0 : index
    %93 = vector.load %arg17[%c24, %c0_55] : memref<32x128xf32, #tpu.memory_space<vmem>>, vector<2x128xf32>
    %94 = arith.truncf %93 : vector<2x128xf32> to vector<2x128xbf16>
    %c1536 = arith.constant 1536 : index
    %c0_56 = arith.constant 0 : index
    %95 = vector.load %arg6[%c1536, %c0_56] : memref<2048x256xbf16, #tpu.memory_space<vmem>>, vector<128x256xbf16>
    %cst_57 = arith.constant dense<0.000000e+00> : vector<2x256xf32>
    %96 = tpu.matmul %94, %95, %cst_57 {dimension_numbers = #tpu.dot_dimension_numbers<[1], [0], [0], [1], [0, 0, 1, 1], [], []>} : vector<2x128xbf16>, vector<128x256xbf16>, vector<2x256xf32> -> vector<2x256xf32>
    %97 = arith.addf %92, %96 : vector<2x256xf32>
    %c26 = arith.constant 26 : index
    %c0_58 = arith.constant 0 : index
    %98 = vector.load %arg17[%c26, %c0_58] : memref<32x128xf32, #tpu.memory_space<vmem>>, vector<2x128xf32>
    %99 = arith.truncf %98 : vector<2x128xf32> to vector<2x128xbf16>
    %c1664 = arith.constant 1664 : index
    %c0_59 = arith.constant 0 : index
    %100 = vector.load %arg6[%c1664, %c0_59] : memref<2048x256xbf16, #tpu.memory_space<vmem>>, vector<128x256xbf16>
    %cst_60 = arith.constant dense<0.000000e+00> : vector<2x256xf32>
    %101 = tpu.matmul %99, %100, %cst_60 {dimension_numbers = #tpu.dot_dimension_numbers<[1], [0], [0], [1], [0, 0, 1, 1], [], []>} : vector<2x128xbf16>, vector<128x256xbf16>, vector<2x256xf32> -> vector<2x256xf32>
    %102 = arith.addf %97, %101 : vector<2x256xf32>
    %c28 = arith.constant 28 : index
    %c0_61 = arith.constant 0 : index
    %103 = vector.load %arg17[%c28, %c0_61] : memref<32x128xf32, #tpu.memory_space<vmem>>, vector<2x128xf32>
    %104 = arith.truncf %103 : vector<2x128xf32> to vector<2x128xbf16>
    %c1792 = arith.constant 1792 : index
    %c0_62 = arith.constant 0 : index
    %105 = vector.load %arg6[%c1792, %c0_62] : memref<2048x256xbf16, #tpu.memory_space<vmem>>, vector<128x256xbf16>
    %cst_63 = arith.constant dense<0.000000e+00> : vector<2x256xf32>
    %106 = tpu.matmul %104, %105, %cst_63 {dimension_numbers = #tpu.dot_dimension_numbers<[1], [0], [0], [1], [0, 0, 1, 1], [], []>} : vector<2x128xbf16>, vector<128x256xbf16>, vector<2x256xf32> -> vector<2x256xf32>
    %107 = arith.addf %102, %106 : vector<2x256xf32>
    %c30 = arith.constant 30 : index
    %c0_64 = arith.constant 0 : index
    %108 = vector.load %arg17[%c30, %c0_64] : memref<32x128xf32, #tpu.memory_space<vmem>>, vector<2x128xf32>
    %109 = arith.truncf %108 : vector<2x128xf32> to vector<2x128xbf16>
    %c1920 = arith.constant 1920 : index
    %c0_65 = arith.constant 0 : index
    %110 = vector.load %arg6[%c1920, %c0_65] : memref<2048x256xbf16, #tpu.memory_space<vmem>>, vector<128x256xbf16>
    %cst_66 = arith.constant dense<0.000000e+00> : vector<2x256xf32>
    %111 = tpu.matmul %109, %110, %cst_66 {dimension_numbers = #tpu.dot_dimension_numbers<[1], [0], [0], [1], [0, 0, 1, 1], [], []>} : vector<2x128xbf16>, vector<128x256xbf16>, vector<2x256xf32> -> vector<2x256xf32>
    %112 = arith.addf %107, %111 : vector<2x256xf32>
    %cst_67 = arith.constant dense<0.000000e+00> : vector<256xf32>
    %113 = vector.multi_reduction <add>, %112, %cst_67 [0] : vector<2x256xf32> to vector<256xf32>
    %114 = vector.shape_cast %113 : vector<256xf32> to vector<1x256xf32>
    %cst_68 = arith.constant 2.000000e+00 : f32
    %115 = vector.broadcast %cst_68 : f32 to vector<1x256xf32>
    %116 = arith.divf %114, %115 : vector<1x256xf32>
    %117 = arith.mulf %112, %112 : vector<2x256xf32>
    %cst_69 = arith.constant dense<0.000000e+00> : vector<256xf32>
    %118 = vector.multi_reduction <add>, %117, %cst_69 [0] : vector<2x256xf32> to vector<256xf32>
    %119 = vector.shape_cast %118 : vector<256xf32> to vector<1x256xf32>
    %cst_70 = arith.constant 2.000000e+00 : f32
    %120 = vector.broadcast %cst_70 : f32 to vector<1x256xf32>
    %121 = arith.divf %119, %120 : vector<1x256xf32>
    %122 = arith.mulf %116, %116 : vector<1x256xf32>
    %123 = arith.subf %121, %122 : vector<1x256xf32>
    %c0_71 = arith.constant 0 : index
    %c0_72 = arith.constant 0 : index
    %124 = vector.load %arg7[%c0_71, %c0_72] : memref<1x256xf32, #tpu.memory_space<vmem>>, vector<1x256xf32>
    %cst_73 = arith.constant 9.99999974E-6 : f32
    %125 = vector.broadcast %cst_73 : f32 to vector<1x256xf32>
    %126 = arith.addf %123, %125 : vector<1x256xf32>
    %127 = math.rsqrt %126 : vector<1x256xf32>
    %128 = arith.mulf %124, %127 : vector<1x256xf32>
    %129 = vector.broadcast %128 : vector<1x256xf32> to vector<2x256xf32>
    %130 = arith.mulf %112, %129 : vector<2x256xf32>
    %c0_74 = arith.constant 0 : index
    %c0_75 = arith.constant 0 : index
    %131 = vector.load %arg8[%c0_74, %c0_75] : memref<1x256xf32, #tpu.memory_space<vmem>>, vector<1x256xf32>
    %132 = arith.mulf %116, %128 : vector<1x256xf32>
    %133 = arith.subf %131, %132 : vector<1x256xf32>
    %134 = vector.broadcast %133 : vector<1x256xf32> to vector<2x256xf32>
    %135 = arith.addf %130, %134 : vector<2x256xf32>
    %cst_76 = arith.constant 0.000000e+00 : f32
    %136 = vector.broadcast %cst_76 : f32 to vector<2x256xf32>
    %137 = arith.cmpf oge, %135, %136 : vector<2x256xf32>
    %cst_77 = arith.constant 2.000000e-01 : f32
    %138 = vector.broadcast %cst_77 : f32 to vector<2x256xf32>
    %139 = arith.mulf %138, %135 : vector<2x256xf32>
    %140 = arith.select %137, %135, %139 : vector<2x256xi1>, vector<2x256xf32>
    %141 = arith.truncf %140 : vector<2x256xf32> to vector<2x256xbf16>
    %c0_78 = arith.constant 0 : index
    %c0_79 = arith.constant 0 : index
    %142 = vector.load %arg9[%c0_78, %c0_79] : memref<256x64xbf16, #tpu.memory_space<vmem>>, vector<256x64xbf16>
    %cst_80 = arith.constant dense<0.000000e+00> : vector<2x64xf32>
    %143 = tpu.matmul %141, %142, %cst_80 {dimension_numbers = #tpu.dot_dimension_numbers<[1], [0], [0], [1], [0, 0, 1, 1], [], []>} : vector<2x256xbf16>, vector<256x64xbf16>, vector<2x64xf32> -> vector<2x64xf32>
    %c0_81 = arith.constant 0 : index
    %c0_82 = arith.constant 0 : index
    %144 = vector.load %arg10[%c0_81, %c0_82] : memref<1x64xf32, #tpu.memory_space<vmem>>, vector<1x64xf32>
    %145 = vector.broadcast %144 : vector<1x64xf32> to vector<2x64xf32>
    %146 = arith.addf %143, %145 : vector<2x64xf32>
    %147 = arith.truncf %146 : vector<2x64xf32> to vector<2x64xbf16>
    %c0_83 = arith.constant 0 : index
    %c0_84 = arith.constant 0 : index
    %148 = vector.load %arg11[%c0_83, %c0_84] : memref<64x64xbf16, #tpu.memory_space<vmem>>, vector<64x64xbf16>
    %cst_85 = arith.constant dense<0.000000e+00> : vector<2x64xf32>
    %149 = tpu.matmul %147, %148, %cst_85 {dimension_numbers = #tpu.dot_dimension_numbers<[1], [0], [0], [1], [0, 0, 1, 1], [], []>} : vector<2x64xbf16>, vector<64x64xbf16>, vector<2x64xf32> -> vector<2x64xf32>
    %c0_86 = arith.constant 0 : index
    %c0_87 = arith.constant 0 : index
    %150 = vector.load %arg2[%c0_86, %c0_87] : memref<2x10xbf16, #tpu.memory_space<vmem>>, vector<2x10xbf16>
    %c0_88 = arith.constant 0 : index
    %c0_89 = arith.constant 0 : index
    %151 = vector.load %arg12[%c0_88, %c0_89] : memref<10x64xbf16, #tpu.memory_space<vmem>>, vector<10x64xbf16>
    %cst_90 = arith.constant dense<0.000000e+00> : vector<2x64xf32>
    %152 = tpu.matmul %150, %151, %cst_90 {dimension_numbers = #tpu.dot_dimension_numbers<[1], [0], [0], [1], [0, 0, 1, 1], [], []>} : vector<2x10xbf16>, vector<10x64xbf16>, vector<2x64xf32> -> vector<2x64xf32>
    %153 = arith.addf %149, %152 : vector<2x64xf32>
    %c0_91 = arith.constant 0 : index
    %c0_92 = arith.constant 0 : index
    %154 = vector.load %arg13[%c0_91, %c0_92] : memref<1x64xf32, #tpu.memory_space<vmem>>, vector<1x64xf32>
    %155 = vector.broadcast %154 : vector<1x64xf32> to vector<2x64xf32>
    %156 = arith.addf %153, %155 : vector<2x64xf32>
    %cst_93 = arith.constant 0.000000e+00 : f32
    %157 = vector.broadcast %cst_93 : f32 to vector<2x64xf32>
    %158 = arith.cmpf oge, %156, %157 : vector<2x64xf32>
    %cst_94 = arith.constant 2.000000e-01 : f32
    %159 = vector.broadcast %cst_94 : f32 to vector<2x64xf32>
    %160 = arith.mulf %159, %156 : vector<2x64xf32>
    %161 = arith.select %158, %156, %160 : vector<2x64xi1>, vector<2x64xf32>
    %162 = arith.truncf %161 : vector<2x64xf32> to vector<2x64xbf16>
    %c0_95 = arith.constant 0 : index
    %c0_96 = arith.constant 0 : index
    %163 = vector.load %arg14[%c0_95, %c0_96] : memref<64x1xbf16, #tpu.memory_space<vmem>>, vector<64x1xbf16>
    %cst_97 = arith.constant dense<0.000000e+00> : vector<2x1xf32>
    %164 = tpu.matmul %162, %163, %cst_97 {dimension_numbers = #tpu.dot_dimension_numbers<[1], [0], [0], [1], [0, 0, 1, 1], [], []>} : vector<2x64xbf16>, vector<64x1xbf16>, vector<2x1xf32> -> vector<2x1xf32>
    %c0_98 = arith.constant 0 : index
    %c0_99 = arith.constant 0 : index
    %165 = vector.load %arg15[%c0_98, %c0_99] : memref<1x1xf32, #tpu.memory_space<vmem>>, vector<1x1xf32>
    %166 = vector.broadcast %165 : vector<1x1xf32> to vector<2x1xf32>
    %167 = arith.addf %164, %166 : vector<2x1xf32>
    %c0_100 = arith.constant 0 : index
    %c0_101 = arith.constant 0 : index
    %168 = vector.load %arg16[%c0_100, %c0_101] : memref<2x1xf32, #tpu.memory_space<vmem>>, vector<2x1xf32>
    tpu.vector_store %arg16[%c0_100, %c0_101], %167 {strides = array<i32>} : memref<2x1xf32, #tpu.memory_space<vmem>>, vector<2x1xf32>,
    return
  }
  func.func @transform_0(%arg0: i32) -> (i32, i32) {
    %c0_i32 = arith.constant 0 : i32
    %c0_i32_0 = arith.constant 0 : i32
    %c0_i32_1 = arith.constant 0 : i32
    return %c0_i32, %c0_i32_0 : i32, i32
  }
  func.func @transform_1(%arg0: i32) -> (i32, i32) {
    %c0_i32 = arith.constant 0 : i32
    %c0_i32_0 = arith.constant 0 : i32
    %c0_i32_1 = arith.constant 0 : i32
    return %c0_i32, %c0_i32_0 : i32, i32
  }
  func.func @transform_2(%arg0: i32) -> (i32, i32) {
    %c0_i32 = arith.constant 0 : i32
    %c0_i32_0 = arith.constant 0 : i32
    %c0_i32_1 = arith.constant 0 : i32
    return %c0_i32, %c0_i32_0 : i32, i32
  }
  func.func @transform_3(%arg0: i32) -> (i32, i32) {
    %c0_i32 = arith.constant 0 : i32
    %c0_i32_0 = arith.constant 0 : i32
    %c0_i32_1 = arith.constant 0 : i32
    return %c0_i32, %c0_i32_0 : i32, i32
  }
  func.func @transform_4(%arg0: i32) -> (i32, i32) {
    %c0_i32 = arith.constant 0 : i32
    %c0_i32_0 = arith.constant 0 : i32
    %c0_i32_1 = arith.constant 0 : i32
    return %c0_i32, %c0_i32_0 : i32, i32
  }
  func.func @transform_5(%arg0: i32) -> (i32, i32) {
    %c0_i32 = arith.constant 0 : i32
    %c0_i32_0 = arith.constant 0 : i32
    %c0_i32_1 = arith.constant 0 : i32
    return %c0_i32, %c0_i32_0 : i32, i32
  }
  func.func @transform_6(%arg0: i32) -> (i32, i32) {
    %c0_i32 = arith.constant 0 : i32
    %c0_i32_0 = arith.constant 0 : i32
    %c0_i32_1 = arith.constant 0 : i32
    return %c0_i32, %c0_i32_0 : i32, i32
  }
  func.func @transform_7(%arg0: i32) -> (i32, i32) {
    %c0_i32 = arith.constant 0 : i32
    %c0_i32_0 = arith.constant 0 : i32
    %c0_i32_1 = arith.constant 0 : i32
    return %c0_i32, %c0_i32_0 : i32, i32
  }
  func.func @transform_8(%arg0: i32) -> (i32, i32) {
    %c0_i32 = arith.constant 0 : i32
    %c0_i32_0 = arith.constant 0 : i32
    %c0_i32_1 = arith.constant 0 : i32
    return %c0_i32, %c0_i32_0 : i32, i32
  }
  func.func @transform_9(%arg0: i32) -> (i32, i32) {
    %c0_i32 = arith.constant 0 : i32
    %c0_i32_0 = arith.constant 0 : i32
    %c0_i32_1 = arith.constant 0 : i32
    return %c0_i32, %c0_i32_0 : i32, i32
  }
  func.func @transform_10(%arg0: i32) -> (i32, i32) {
    %c0_i32 = arith.constant 0 : i32
    %c0_i32_0 = arith.constant 0 : i32
    %c0_i32_1 = arith.constant 0 : i32
    return %c0_i32, %c0_i32_0 : i32, i32
  }
  func.func @transform_11(%arg0: i32) -> (i32, i32) {
    %c0_i32 = arith.constant 0 : i32
    %c0_i32_0 = arith.constant 0 : i32
    %c0_i32_1 = arith.constant 0 : i32
    return %c0_i32, %c0_i32_0 : i32, i32
  }
  func.func @transform_12(%arg0: i32) -> (i32, i32) {
    %c0_i32 = arith.constant 0 : i32
    %c0_i32_0 = arith.constant 0 : i32
    %c0_i32_1 = arith.constant 0 : i32
    return %c0_i32, %c0_i32_0 : i32, i32
  }
  func.func @transform_13(%arg0: i32) -> (i32, i32) {
    %c0_i32 = arith.constant 0 : i32
    %c0_i32_0 = arith.constant 0 : i32
    %c0_i32_1 = arith.constant 0 : i32
    return %c0_i32, %c0_i32_0 : i32, i32
  }
  func.func @transform_14(%arg0: i32) -> (i32, i32) {
    %c0_i32 = arith.constant 0 : i32
    %c0_i32_0 = arith.constant 0 : i32
    %c0_i32_1 = arith.constant 0 : i32
    return %c0_i32, %c0_i32_0 : i32, i32
  }
  func.func @transform_15(%arg0: i32) -> (i32, i32) {
    %c0_i32 = arith.constant 0 : i32
    %c0_i32_0 = arith.constant 0 : i32
    %c0_i32_1 = arith.constant 0 : i32
    return %c0_i32, %c0_i32_0 : i32, i32
  }
}

</mosaic_0001>

<llo_original>
// kernel: simple_c_discriminator_forward.3
$region0: #{simple_c_discriminator_forward.3}
  #allocation0 [shape = 'u32[]', space=smem, size = 0x4, offset = 0x4, fixed_abs, tag = 'smem constant byte address 0x4 - core index']
  #allocation1 [shape = 'u32[144,128]{1,0:T(1,128)}', space=vmem, size = 0x12000, scoped, tag = 'internal scratch']
  %s0 = inlined_call_operand.vmem [shape: bf16[392,16], index: 0, kind: input, shape index: {}]
  %s1 = inlined_call_operand.vmem [shape: bf16[16,32], index: 1, kind: input, shape index: {}]
  %s2 = inlined_call_operand.vmem [shape: f32[1,32], index: 2, kind: input, shape index: {}]
  %s3 = inlined_call_operand.vmem [shape: bf16[392,32], index: 3, kind: output, shape index: {}]
  %s4 = sld [smem:[#allocation0]]
  $region22: #{simple_c_discriminator_forward.3} parent=0
    _
  %s6 = ssub.s32 1, %s4
  %s7 = scalar_select 0, %s6, %s4
  // Predicated region
  $region2: #{simple_c_discriminator_forward.3} parent=0 // pred_check
    _
  $region3: #{simple_c_discriminator_forward.3} parent=0 // pred_check_branch
    %9 = sbr.rel (0) target = $region5
  $region4: #{simple_c_discriminator_forward.3} parent=0 // pred_region
    _
  $region5: #{simple_c_discriminator_forward.3} parent=0 // pred_fallthru
    _
  // Predicated region
  $region6: #{simple_c_discriminator_forward.3} parent=0 // pred_check
    _
  $region7: #{simple_c_discriminator_forward.3} parent=0 // pred_check_branch
    %11 = sbr.rel (0) target = $region9
  $region8: #{simple_c_discriminator_forward.3} parent=0 // pred_region
    _
  $region9: #{simple_c_discriminator_forward.3} parent=0 // pred_fallthru
    _
  // Predicated region
  $region10: #{simple_c_discriminator_forward.3} parent=0 // pred_check
    _
  $region11: #{simple_c_discriminator_forward.3} parent=0 // pred_check_branch
    %13 = sbr.rel (0) target = $region13
  $region12: #{simple_c_discriminator_forward.3} parent=0 // pred_region
    _
  $region13: #{simple_c_discriminator_forward.3} parent=0 // pred_fallthru
    _
  %v15 = vld [vmem:[%s0] sm:$0xf]
  %v16 = vld [vmem:[%s0 + $0x4] sm:$0xf]
  %v17 = vld [vmem:[%s0 + $0x8] sm:$0xf]
  %v18 = vld [vmem:[%s0 + $0xc] sm:$0xf]
  %v19 = vld [vmem:[%s0 + $0x10] sm:$0xf]
  %v20 = vld [vmem:[%s0 + $0x14] sm:$0xf]
  %v21 = vld [vmem:[%s0 + $0x18] sm:$0xf]
  %v22 = vld [vmem:[%s0 + $0x1c] sm:$0xf]
  %v23 = vld [vmem:[%s0 + $0x20] sm:$0xf]
  %v24 = vld [vmem:[%s0 + $0x24] sm:$0xf]
  %v25 = vld [vmem:[%s0 + $0x28] sm:$0xf]
  %v26 = vld [vmem:[%s0 + $0x2c] sm:$0xf]
  %v27 = vld [vmem:[%s0 + $0x30] sm:$0xf]
  %v28 = vld [vmem:[%s0 + $0x34] sm:$0xf]
  %v29 = vld [vmem:[%s0 + $0x38] sm:$0xf]
  %v30 = vld [vmem:[%s0 + $0x3c] sm:$0xf]
  %v31 = vld [vmem:[%s0 + $0x40] sm:$0xf]
  %v32 = vld [vmem:[%s0 + $0x44] sm:$0xf]
  %v33 = vld [vmem:[%s0 + $0x48] sm:$0xf]
  %v34 = vld [vmem:[%s0 + $0x4c] sm:$0xf]
  %v35 = vld [vmem:[%s0 + $0x50] sm:$0xf]
  %v36 = vld [vmem:[%s0 + $0x54] sm:$0xf]
  %v37 = vld [vmem:[%s0 + $0x58] sm:$0xf]
  %v38 = vld [vmem:[%s0 + $0x5c] sm:$0xf]
  %v39 = vld [vmem:[%s0 + $0x60] sm:$0xf]
  %v40 = vld [vmem:[%s0 + $0x64] sm:$0xf]
  %v41 = vld [vmem:[%s0 + $0x68] sm:$0xf]
  %v42 = vld [vmem:[%s0 + $0x6c] sm:$0xf]
  %v43 = vld [vmem:[%s0 + $0x70] sm:$0xf]
  %v44 = vld [vmem:[%s0 + $0x74] sm:$0xf]
  %v45 = vld [vmem:[%s0 + $0x78] sm:$0xf]
  %v46 = vld [vmem:[%s0 + $0x7c] sm:$0xf]
  %v47 = vld [vmem:[%s0 + $0x80] sm:$0xf]
  %v48 = vld [vmem:[%s0 + $0x84] sm:$0xf]
  %v49 = vld [vmem:[%s0 + $0x88] sm:$0xf]
  %v50 = vld [vmem:[%s0 + $0x8c] sm:$0xf]
  %v51 = vld [vmem:[%s0 + $0x90] sm:$0xf]
  %v52 = vld [vmem:[%s0 + $0x94] sm:$0xf]
  %v53 = vld [vmem:[%s0 + $0x98] sm:$0xf]
  %v54 = vld [vmem:[%s0 + $0x9c] sm:$0xf]
  %v55 = vld [vmem:[%s0 + $0xa0] sm:$0xf]
  %v56 = vld [vmem:[%s0 + $0xa4] sm:$0xf]
  %v57 = vld [vmem:[%s0 + $0xa8] sm:$0xf]
  %v58 = vld [vmem:[%s0 + $0xac] sm:$0xf]
  %v59 = vld [vmem:[%s0 + $0xb0] sm:$0xf]
  %v60 = vld [vmem:[%s0 + $0xb4] sm:$0xf]
  %v61 = vld [vmem:[%s0 + $0xb8] sm:$0xf]
  %v62 = vld [vmem:[%s0 + $0xbc] sm:$0xf]
  %v63 = vld [vmem:[%s0 + $0xc0] sm:$0xf]
  %v64 = vld [vmem:[%s1] sm:$0xf]
  %v65 = vld [vmem:[%s1 + $0x4] sm:$0xf]
  %v66 = vld [vmem:[%s2] sm:$0x1]
  %v68 = vlaneseq
  %v69 = vshrl.u32 %v68, 7
  %v70 = vsub.s32 0, %v69
  %v71 = vrot.slane %v66, %v70
  %v122 = vunpack.c.l.b16 %v15
  %v123 = vunpack.c.l.b16 %v16
  %v124 = vunpack.c.l.b16 %v17
  %v125 = vunpack.c.l.b16 %v18
  %v126 = vunpack.c.l.b16 %v19
  %v127 = vunpack.c.l.b16 %v20
  %v128 = vunpack.c.l.b16 %v21
  %v129 = vunpack.c.l.b16 %v22
  %v130 = vunpack.c.l.b16 %v23
  %v131 = vunpack.c.l.b16 %v24
  %v132 = vunpack.c.l.b16 %v25
  %v133 = vunpack.c.l.b16 %v26
  %v134 = vunpack.c.l.b16 %v27
  %v135 = vunpack.c.l.b16 %v28
  %v136 = vunpack.c.l.b16 %v29
  %v137 = vunpack.c.l.b16 %v30
  %v138 = vunpack.c.l.b16 %v31
  %v139 = vunpack.c.l.b16 %v32
  %v140 = vunpack.c.l.b16 %v33
  %v141 = vunpack.c.l.b16 %v34
  %v142 = vunpack.c.l.b16 %v35
  %v143 = vunpack.c.l.b16 %v36
  %v144 = vunpack.c.l.b16 %v37
  %v145 = vunpack.c.l.b16 %v38
  %v146 = vunpack.c.l.b16 %v39
  %v147 = vunpack.c.l.b16 %v40
  %v148 = vunpack.c.l.b16 %v41
  %v149 = vunpack.c.l.b16 %v42
  %v150 = vunpack.c.l.b16 %v43
  %v151 = vunpack.c.l.b16 %v44
  %v152 = vunpack.c.l.b16 %v45
  %v153 = vunpack.c.l.b16 %v46
  %v154 = vunpack.c.l.b16 %v47
  %v155 = vunpack.c.l.b16 %v48
  %v156 = vunpack.c.l.b16 %v49
  %v157 = vunpack.c.l.b16 %v50
  %v158 = vunpack.c.l.b16 %v51
  %v159 = vunpack.c.l.b16 %v52
  %v160 = vunpack.c.l.b16 %v53
  %v161 = vunpack.c.l.b16 %v54
  %v162 = vunpack.c.l.b16 %v55
  %v163 = vunpack.c.l.b16 %v56
  %v164 = vunpack.c.l.b16 %v57
  %v165 = vunpack.c.l.b16 %v58
  %v166 = vunpack.c.l.b16 %v59
  %v167 = vunpack.c.l.b16 %v60
  %v168 = vunpack.c.l.b16 %v61
  %v169 = vunpack.c.l.b16 %v62
  %v170 = vunpack.c.l.b16 %v63
  %v171 = vpack.c.b16 %v123, %v122
  %v172 = vpack.c.b16 %v125, %v124
  %v173 = vpack.c.b16 %v127, %v126
  %v174 = vpack.c.b16 %v129, %v128
  %v175 = vpack.c.b16 %v131, %v130
  %v176 = vpack.c.b16 %v133, %v132
  %v177 = vpack.c.b16 %v135, %v134
  %v178 = vpack.c.b16 %v137, %v136
  %v179 = vpack.c.b16 %v139, %v138
  %v180 = vpack.c.b16 %v141, %v140
  %v181 = vpack.c.b16 %v143, %v142
  %v182 = vpack.c.b16 %v145, %v144
  %v183 = vpack.c.b16 %v147, %v146
  %v184 = vpack.c.b16 %v149, %v148
  %v185 = vpack.c.b16 %v151, %v150
  %v186 = vpack.c.b16 %v153, %v152
  %v187 = vpack.c.b16 %v155, %v154
  %v188 = vpack.c.b16 %v157, %v156
  %v189 = vpack.c.b16 %v159, %v158
  %v190 = vpack.c.b16 %v161, %v160
  %v191 = vpack.c.b16 %v163, %v162
  %v192 = vpack.c.b16 %v165, %v164
  %v193 = vpack.c.b16 %v167, %v166
  %v194 = vpack.c.b16 %v169, %v168
  %v195 = vpack.c.b16 %v170, %v170
  %v198 = vunpack.c.l.b16 %v64
  %v199 = vunpack.c.l.b16 %v65
  %v200 = vpack.c.b16 %v199, %v198
  %vm202 = vcmask 130048
  %v204 = vsel %vm202, %v171, 0
  %v207 = vsel %vm202, %v172, 0
  %v210 = vsel %vm202, %v173, 0
  %v213 = vsel %vm202, %v174, 0
  %v216 = vsel %vm202, %v175, 0
  %v219 = vsel %vm202, %v176, 0
  %v222 = vsel %vm202, %v177, 0
  %v225 = vsel %vm202, %v178, 0
  %v228 = vsel %vm202, %v179, 0
  %v231 = vsel %vm202, %v180, 0
  %v234 = vsel %vm202, %v181, 0
  %v237 = vsel %vm202, %v182, 0
  %v240 = vsel %vm202, %v183, 0
  %v243 = vsel %vm202, %v184, 0
  %v246 = vsel %vm202, %v185, 0
  %v249 = vsel %vm202, %v186, 0
  %v252 = vsel %vm202, %v187, 0
  %v255 = vsel %vm202, %v188, 0
  %v258 = vsel %vm202, %v189, 0
  %v261 = vsel %vm202, %v190, 0
  %v264 = vsel %vm202, %v191, 0
  %v267 = vsel %vm202, %v192, 0
  %v270 = vsel %vm202, %v193, 0
  %v273 = vsel %vm202, %v194, 0
  %v276 = vsel %vm202, %v195, 0
  %278 = vmatprep.subr.bf16.mxu0 0
  %279 = vmatpush1.bf16.msra.mxu0 %v200
  %280 = vmatprep.subr.bf16.mxu0 0
  %281 = vmatpush1.bf16.msra.mxu0 0
  %282 = vmatprep.subr.bf16.mxu0 0
  %283 = vmatpush1.bf16.msra.mxu0 0
  %284 = vmatprep.subr.bf16.mxu0 0
  %285 = vmatpush1.bf16.msra.mxu0 0
  %286 = vmatprep.subr.bf16.mxu0 0
  %287 = vmatpush1.bf16.msra.mxu0 0
  %288 = vmatprep.subr.bf16.mxu0 0
  %289 = vmatpush1.bf16.msra.mxu0 0
  %290 = vmatprep.subr.bf16.mxu0 0
  %291 = vmatpush1.bf16.msra.mxu0 0
  %292 = vmatprep.subr.bf16.mxu0 0
  %293 = vmatpush1.bf16.msra.mxu0 0
  %294 = vmatprep.subr.bf16.mxu0 0
  %295 = vmatpush1.bf16.msra.mxu0 0
  %296 = vmatprep.subr.bf16.mxu0 0
  %297 = vmatpush1.bf16.msra.mxu0 0
  %298 = vmatprep.subr.bf16.mxu0 0
  %299 = vmatpush1.bf16.msra.mxu0 0
  %300 = vmatprep.subr.bf16.mxu0 0
  %301 = vmatpush1.bf16.msra.mxu0 0
  %302 = vmatprep.subr.bf16.mxu0 0
  %303 = vmatpush1.bf16.msra.mxu0 0
  %304 = vmatprep.subr.bf16.mxu0 0
  %305 = vmatpush1.bf16.msra.mxu0 0
  %306 = vmatprep.subr.bf16.mxu0 0
  %307 = vmatpush1.bf16.msra.mxu0 0
  %308 = vmatprep.subr.bf16.mxu0 0
  %309 = vmatpush1.bf16.msra.mxu0 0
  %310 = vmatprep.mubr.bf16.mxu0 0
  %311 = vmatmul.mubr.bf16.gmra.mrb[0].mxu0 %v204
  %v312 = vpop.f32.mrb[0].mxu0
  %v313 = vadd.f32 %v71, %v312
  %v314 = vpop.f32.mrb[0].mxu0
  %v315 = vpop.f32.mrb[0].mxu0
  %v316 = vadd.f32 %v71, %v315
  %v317 = vpop.f32.mrb[0].mxu0
  %318 = vmatprep.mubr.bf16.mxu0 0
  %319 = vmatmul.mubr.bf16.gmra.mrb[0].mxu0 %v207
  %v320 = vpop.f32.mrb[0].mxu0
  %v321 = vadd.f32 %v71, %v320
  %v322 = vpop.f32.mrb[0].mxu0
  %v323 = vpop.f32.mrb[0].mxu0
  %v324 = vadd.f32 %v71, %v323
  %v325 = vpop.f32.mrb[0].mxu0
  %326 = vmatprep.mubr.bf16.mxu0 0
  %327 = vmatmul.mubr.bf16.gmra.mrb[0].mxu0 %v210
  %v328 = vpop.f32.mrb[0].mxu0
  %v329 = vadd.f32 %v71, %v328
  %v330 = vpop.f32.mrb[0].mxu0
  %v331 = vpop.f32.mrb[0].mxu0
  %v332 = vadd.f32 %v71, %v331
  %v333 = vpop.f32.mrb[0].mxu0
  %334 = vmatprep.mubr.bf16.mxu0 0
  %335 = vmatmul.mubr.bf16.gmra.mrb[0].mxu0 %v213
  %v336 = vpop.f32.mrb[0].mxu0
  %v337 = vadd.f32 %v71, %v336
  %v338 = vpop.f32.mrb[0].mxu0
  %v339 = vpop.f32.mrb[0].mxu0
  %v340 = vadd.f32 %v71, %v339
  %v341 = vpop.f32.mrb[0].mxu0
  %342 = vmatprep.mubr.bf16.mxu0 0
  %343 = vmatmul.mubr.bf16.gmra.mrb[0].mxu0 %v216
  %v344 = vpop.f32.mrb[0].mxu0
  %v345 = vadd.f32 %v71, %v344
  %v346 = vpop.f32.mrb[0].mxu0
  %v347 = vpop.f32.mrb[0].mxu0
  %v348 = vadd.f32 %v71, %v347
  %v349 = vpop.f32.mrb[0].mxu0
  %350 = vmatprep.mubr.bf16.mxu0 0
  %351 = vmatmul.mubr.bf16.gmra.mrb[0].mxu0 %v219
  %v352 = vpop.f32.mrb[0].mxu0
  %v353 = vadd.f32 %v71, %v352
  %v354 = vpop.f32.mrb[0].mxu0
  %v355 = vpop.f32.mrb[0].mxu0
  %v356 = vadd.f32 %v71, %v355
  %v357 = vpop.f32.mrb[0].mxu0
  %358 = vmatprep.mubr.bf16.mxu0 0
  %359 = vmatmul.mubr.bf16.gmra.mrb[0].mxu0 %v222
  %v360 = vpop.f32.mrb[0].mxu0
  %v361 = vadd.f32 %v71, %v360
  %v362 = vpop.f32.mrb[0].mxu0
  %v363 = vpop.f32.mrb[0].mxu0
  %v364 = vadd.f32 %v71, %v363
  %v365 = vpop.f32.mrb[0].mxu0
  %366 = vmatprep.mubr.bf16.mxu0 0
  %367 = vmatmul.mubr.bf16.gmra.mrb[0].mxu0 %v225
  %v368 = vpop.f32.mrb[0].mxu0
  %v369 = vadd.f32 %v71, %v368
  %v370 = vpop.f32.mrb[0].mxu0
  %v371 = vpop.f32.mrb[0].mxu0
  %v372 = vadd.f32 %v71, %v371
  %v373 = vpop.f32.mrb[0].mxu0
  %374 = vmatprep.mubr.bf16.mxu0 0
  %375 = vmatmul.mubr.bf16.gmra.mrb[0].mxu0 %v228
  %v376 = vpop.f32.mrb[0].mxu0
  %v377 = vadd.f32 %v71, %v376
  %v378 = vpop.f32.mrb[0].mxu0
  %v379 = vpop.f32.mrb[0].mxu0
  %v380 = vadd.f32 %v71, %v379
  %v381 = vpop.f32.mrb[0].mxu0
  %382 = vmatprep.mubr.bf16.mxu0 0
  %383 = vmatmul.mubr.bf16.gmra.mrb[0].mxu0 %v231
  %v384 = vpop.f32.mrb[0].mxu0
  %v385 = vadd.f32 %v71, %v384
  %v386 = vpop.f32.mrb[0].mxu0
  %v387 = vpop.f32.mrb[0].mxu0
  %v388 = vadd.f32 %v71, %v387
  %v389 = vpop.f32.mrb[0].mxu0
  %390 = vmatprep.mubr.bf16.mxu0 0
  %391 = vmatmul.mubr.bf16.gmra.mrb[0].mxu0 %v234
  %v392 = vpop.f32.mrb[0].mxu0
  %v393 = vadd.f32 %v71, %v392
  %v394 = vpop.f32.mrb[0].mxu0
  %v395 = vpop.f32.mrb[0].mxu0
  %v396 = vadd.f32 %v71, %v395
  %v397 = vpop.f32.mrb[0].mxu0
  %398 = vmatprep.mubr.bf16.mxu0 0
  %399 = vmatmul.mubr.bf16.gmra.mrb[0].mxu0 %v237
  %v400 = vpop.f32.mrb[0].mxu0
  %v401 = vadd.f32 %v71, %v400
  %v402 = vpop.f32.mrb[0].mxu0
  %v403 = vpop.f32.mrb[0].mxu0
  %v404 = vadd.f32 %v71, %v403
  %v405 = vpop.f32.mrb[0].mxu0
  %406 = vmatprep.mubr.bf16.mxu0 0
  %407 = vmatmul.mubr.bf16.gmra.mrb[0].mxu0 %v240
  %v408 = vpop.f32.mrb[0].mxu0
  %v409 = vadd.f32 %v71, %v408
  %v410 = vpop.f32.mrb[0].mxu0
  %v411 = vpop.f32.mrb[0].mxu0
  %v412 = vadd.f32 %v71, %v411
  %v413 = vpop.f32.mrb[0].mxu0
  %414 = vmatprep.mubr.bf16.mxu0 0
  %415 = vmatmul.mubr.bf16.gmra.mrb[0].mxu0 %v243
  %v416 = vpop.f32.mrb[0].mxu0
  %v417 = vadd.f32 %v71, %v416
  %v418 = vpop.f32.mrb[0].mxu0
  %v419 = vpop.f32.mrb[0].mxu0
  %v420 = vadd.f32 %v71, %v419
  %v421 = vpop.f32.mrb[0].mxu0
  %422 = vmatprep.mubr.bf16.mxu0 0
  %423 = vmatmul.mubr.bf16.gmra.mrb[0].mxu0 %v246
  %v424 = vpop.f32.mrb[0].mxu0
  %v425 = vadd.f32 %v71, %v424
  %v426 = vpop.f32.mrb[0].mxu0
  %v427 = vpop.f32.mrb[0].mxu0
  %v428 = vadd.f32 %v71, %v427
  %v429 = vpop.f32.mrb[0].mxu0
  %430 = vmatprep.mubr.bf16.mxu0 0
  %431 = vmatmul.mubr.bf16.gmra.mrb[0].mxu0 %v249
  %v432 = vpop.f32.mrb[0].mxu0
  %v433 = vadd.f32 %v71, %v432
  %v434 = vpop.f32.mrb[0].mxu0
  %v435 = vpop.f32.mrb[0].mxu0
  %v436 = vadd.f32 %v71, %v435
  %v437 = vpop.f32.mrb[0].mxu0
  %438 = vmatprep.mubr.bf16.mxu0 0
  %439 = vmatmul.mubr.bf16.gmra.mrb[0].mxu0 %v252
  %v440 = vpop.f32.mrb[0].mxu0
  %v441 = vadd.f32 %v71, %v440
  %v442 = vpop.f32.mrb[0].mxu0
  %v443 = vpop.f32.mrb[0].mxu0
  %v444 = vadd.f32 %v71, %v443
  %v445 = vpop.f32.mrb[0].mxu0
  %446 = vmatprep.mubr.bf16.mxu0 0
  %447 = vmatmul.mubr.bf16.gmra.mrb[0].mxu0 %v255
  %v448 = vpop.f32.mrb[0].mxu0
  %v449 = vadd.f32 %v71, %v448
  %v450 = vpop.f32.mrb[0].mxu0
  %v451 = vpop.f32.mrb[0].mxu0
  %v452 = vadd.f32 %v71, %v451
  %v453 = vpop.f32.mrb[0].mxu0
  %454 = vmatprep.mubr.bf16.mxu0 0
  %455 = vmatmul.mubr.bf16.gmra.mrb[0].mxu0 %v258
  %v456 = vpop.f32.mrb[0].mxu0
  %v457 = vadd.f32 %v71, %v456
  %v458 = vpop.f32.mrb[0].mxu0
  %v459 = vpop.f32.mrb[0].mxu0
  %v460 = vadd.f32 %v71, %v459
  %v461 = vpop.f32.mrb[0].mxu0
  %462 = vmatprep.mubr.bf16.mxu0 0
  %463 = vmatmul.mubr.bf16.gmra.mrb[0].mxu0 %v261
  %v464 = vpop.f32.mrb[0].mxu0
  %v465 = vadd.f32 %v71, %v464
  %v466 = vpop.f32.mrb[0].mxu0
  %v467 = vpop.f32.mrb[0].mxu0
  %v468 = vadd.f32 %v71, %v467
  %v469 = vpop.f32.mrb[0].mxu0
  %470 = vmatprep.mubr.bf16.mxu0 0
  %471 = vmatmul.mubr.bf16.gmra.mrb[0].mxu0 %v264
  %v472 = vpop.f32.mrb[0].mxu0
  %v473 = vadd.f32 %v71, %v472
  %v474 = vpop.f32.mrb[0].mxu0
  %v475 = vpop.f32.mrb[0].mxu0
  %v476 = vadd.f32 %v71, %v475
  %v477 = vpop.f32.mrb[0].mxu0
  %478 = vmatprep.mubr.bf16.mxu0 0
  %479 = vmatmul.mubr.bf16.gmra.mrb[0].mxu0 %v267
  %v480 = vpop.f32.mrb[0].mxu0
  %v481 = vadd.f32 %v71, %v480
  %v482 = vpop.f32.mrb[0].mxu0
  %v483 = vpop.f32.mrb[0].mxu0
  %v484 = vadd.f32 %v71, %v483
  %v485 = vpop.f32.mrb[0].mxu0
  %486 = vmatprep.mubr.bf16.mxu0 0
  %487 = vmatmul.mubr.bf16.gmra.mrb[0].mxu0 %v270
  %v488 = vpop.f32.mrb[0].mxu0
  %v489 = vadd.f32 %v71, %v488
  %v490 = vpop.f32.mrb[0].mxu0
  %v491 = vpop.f32.mrb[0].mxu0
  %v492 = vadd.f32 %v71, %v491
  %v493 = vpop.f32.mrb[0].mxu0
  %494 = vmatprep.mubr.bf16.mxu0 0
  %495 = vmatmul.mubr.bf16.gmra.mrb[0].mxu0 %v273
  %v496 = vpop.f32.mrb[0].mxu0
  %v497 = vadd.f32 %v71, %v496
  %v498 = vpop.f32.mrb[0].mxu0
  %v499 = vpop.f32.mrb[0].mxu0
  %v500 = vadd.f32 %v71, %v499
  %v501 = vpop.f32.mrb[0].mxu0
  %502 = vmatprep.mubr.bf16.mxu0 0
  %503 = vmatmul.mubr.bf16.gmra.mrb[0].mxu0 %v276
  %v504 = vpop.f32.mrb[0].mxu0
  %v505 = vadd.f32 %v71, %v504
  %v506 = vpop.f32.mrb[0].mxu0
  %v507 = vpop.f32.mrb[0].mxu0
  %v508 = vpop.f32.mrb[0].mxu0
  %509 = vdwg.mxu0
  %vm510 = vcmp.ge.f32.partialorder %v313, 0.0
  %vm511 = vcmp.ge.f32.partialorder %v316, 0.0
  %vm512 = vcmp.ge.f32.partialorder %v321, 0.0
  %vm513 = vcmp.ge.f32.partialorder %v324, 0.0
  %vm514 = vcmp.ge.f32.partialorder %v329, 0.0
  %vm515 = vcmp.ge.f32.partialorder %v332, 0.0
  %vm516 = vcmp.ge.f32.partialorder %v337, 0.0
  %vm517 = vcmp.ge.f32.partialorder %v340, 0.0
  %vm518 = vcmp.ge.f32.partialorder %v345, 0.0
  %vm519 = vcmp.ge.f32.partialorder %v348, 0.0
  %vm520 = vcmp.ge.f32.partialorder %v353, 0.0
  %vm521 = vcmp.ge.f32.partialorder %v356, 0.0
  %vm522 = vcmp.ge.f32.partialorder %v361, 0.0
  %vm523 = vcmp.ge.f32.partialorder %v364, 0.0
  %vm524 = vcmp.ge.f32.partialorder %v369, 0.0
  %vm525 = vcmp.ge.f32.partialorder %v372, 0.0
  %vm526 = vcmp.ge.f32.partialorder %v377, 0.0
  %vm527 = vcmp.ge.f32.partialorder %v380, 0.0
  %vm528 = vcmp.ge.f32.partialorder %v385, 0.0
  %vm529 = vcmp.ge.f32.partialorder %v388, 0.0
  %vm530 = vcmp.ge.f32.partialorder %v393, 0.0
  %vm531 = vcmp.ge.f32.partialorder %v396, 0.0
  %vm532 = vcmp.ge.f32.partialorder %v401, 0.0
  %vm533 = vcmp.ge.f32.partialorder %v404, 0.0
  %vm534 = vcmp.ge.f32.partialorder %v409, 0.0
  %vm535 = vcmp.ge.f32.partialorder %v412, 0.0
  %vm536 = vcmp.ge.f32.partialorder %v417, 0.0
  %vm537 = vcmp.ge.f32.partialorder %v420, 0.0
  %vm538 = vcmp.ge.f32.partialorder %v425, 0.0
  %vm539 = vcmp.ge.f32.partialorder %v428, 0.0
  %vm540 = vcmp.ge.f32.partialorder %v433, 0.0
  %vm541 = vcmp.ge.f32.partialorder %v436, 0.0
  %vm542 = vcmp.ge.f32.partialorder %v441, 0.0
  %vm543 = vcmp.ge.f32.partialorder %v444, 0.0
  %vm544 = vcmp.ge.f32.partialorder %v449, 0.0
  %vm545 = vcmp.ge.f32.partialorder %v452, 0.0
  %vm546 = vcmp.ge.f32.partialorder %v457, 0.0
  %vm547 = vcmp.ge.f32.partialorder %v460, 0.0
  %vm548 = vcmp.ge.f32.partialorder %v465, 0.0
  %vm549 = vcmp.ge.f32.partialorder %v468, 0.0
  %vm550 = vcmp.ge.f32.partialorder %v473, 0.0
  %vm551 = vcmp.ge.f32.partialorder %v476, 0.0
  %vm552 = vcmp.ge.f32.partialorder %v481, 0.0
  %vm553 = vcmp.ge.f32.partialorder %v484, 0.0
  %vm554 = vcmp.ge.f32.partialorder %v489, 0.0
  %vm555 = vcmp.ge.f32.partialorder %v492, 0.0
  %vm556 = vcmp.ge.f32.partialorder %v497, 0.0
  %vm557 = vcmp.ge.f32.partialorder %v500, 0.0
  %vm558 = vcmp.ge.f32.partialorder %v505, 0.0
  %v559 = vmul.f32 %v313, 0.2
  %v560 = vmul.f32 %v316, 0.2
  %v561 = vmul.f32 %v321, 0.2
  %v562 = vmul.f32 %v324, 0.2
  %v563 = vmul.f32 %v329, 0.2
  %v564 = vmul.f32 %v332, 0.2
  %v565 = vmul.f32 %v337, 0.2
  %v566 = vmul.f32 %v340, 0.2
  %v567 = vmul.f32 %v345, 0.2
  %v568 = vmul.f32 %v348, 0.2
  %v569 = vmul.f32 %v353, 0.2
  %v570 = vmul.f32 %v356, 0.2
  %v571 = vmul.f32 %v361, 0.2
  %v572 = vmul.f32 %v364, 0.2
  %v573 = vmul.f32 %v369, 0.2
  %v574 = vmul.f32 %v372, 0.2
  %v575 = vmul.f32 %v377, 0.2
  %v576 = vmul.f32 %v380, 0.2
  %v577 = vmul.f32 %v385, 0.2
  %v578 = vmul.f32 %v388, 0.2
  %v579 = vmul.f32 %v393, 0.2
  %v580 = vmul.f32 %v396, 0.2
  %v581 = vmul.f32 %v401, 0.2
  %v582 = vmul.f32 %v404, 0.2
  %v583 = vmul.f32 %v409, 0.2
  %v584 = vmul.f32 %v412, 0.2
  %v585 = vmul.f32 %v417, 0.2
  %v586 = vmul.f32 %v420, 0.2
  %v587 = vmul.f32 %v425, 0.2
  %v588 = vmul.f32 %v428, 0.2
  %v589 = vmul.f32 %v433, 0.2
  %v590 = vmul.f32 %v436, 0.2
  %v591 = vmul.f32 %v441, 0.2
  %v592 = vmul.f32 %v444, 0.2
  %v593 = vmul.f32 %v449, 0.2
  %v594 = vmul.f32 %v452, 0.2
  %v595 = vmul.f32 %v457, 0.2
  %v596 = vmul.f32 %v460, 0.2
  %v597 = vmul.f32 %v465, 0.2
  %v598 = vmul.f32 %v468, 0.2
  %v599 = vmul.f32 %v473, 0.2
  %v600 = vmul.f32 %v476, 0.2
  %v601 = vmul.f32 %v481, 0.2
  %v602 = vmul.f32 %v484, 0.2
  %v603 = vmul.f32 %v489, 0.2
  %v604 = vmul.f32 %v492, 0.2
  %v605 = vmul.f32 %v497, 0.2
  %v606 = vmul.f32 %v500, 0.2
  %v607 = vmul.f32 %v505, 0.2
  %v608 = vsel %vm510, %v313, %v559
  %v609 = vsel %vm511, %v316, %v560
  %v610 = vsel %vm512, %v321, %v561
  %v611 = vsel %vm513, %v324, %v562
  %v612 = vsel %vm514, %v329, %v563
  %v613 = vsel %vm515, %v332, %v564
  %v614 = vsel %vm516, %v337, %v565
  %v615 = vsel %vm517, %v340, %v566
  %v616 = vsel %vm518, %v345, %v567
  %v617 = vsel %vm519, %v348, %v568
  %v618 = vsel %vm520, %v353, %v569
  %v619 = vsel %vm521, %v356, %v570
  %v620 = vsel %vm522, %v361, %v571
  %v621 = vsel %vm523, %v364, %v572
  %v622 = vsel %vm524, %v369, %v573
  %v623 = vsel %vm525, %v372, %v574
  %v624 = vsel %vm526, %v377, %v575
  %v625 = vsel %vm527, %v380, %v576
  %v626 = vsel %vm528, %v385, %v577
  %v627 = vsel %vm529, %v388, %v578
  %v628 = vsel %vm530, %v393, %v579
  %v629 = vsel %vm531, %v396, %v580
  %v630 = vsel %vm532, %v401, %v581
  %v631 = vsel %vm533, %v404, %v582
  %v632 = vsel %vm534, %v409, %v583
  %v633 = vsel %vm535, %v412, %v584
  %v634 = vsel %vm536, %v417, %v585
  %v635 = vsel %vm537, %v420, %v586
  %v636 = vsel %vm538, %v425, %v587
  %v637 = vsel %vm539, %v428, %v588
  %v638 = vsel %vm540, %v433, %v589
  %v639 = vsel %vm541, %v436, %v590
  %v640 = vsel %vm542, %v441, %v591
  %v641 = vsel %vm543, %v444, %v592
  %v642 = vsel %vm544, %v449, %v593
  %v643 = vsel %vm545, %v452, %v594
  %v644 = vsel %vm546, %v457, %v595
  %v645 = vsel %vm547, %v460, %v596
  %v646 = vsel %vm548, %v465, %v597
  %v647 = vsel %vm549, %v468, %v598
  %v648 = vsel %vm550, %v473, %v599
  %v649 = vsel %vm551, %v476, %v600
  %v650 = vsel %vm552, %v481, %v601
  %v651 = vsel %vm553, %v484, %v602
  %v652 = vsel %vm554, %v489, %v603
  %v653 = vsel %vm555, %v492, %v604
  %v654 = vsel %vm556, %v497, %v605
  %v655 = vsel %vm557, %v500, %v606
  %v656 = vsel %vm558, %v505, %v607
  %v657 = vpack.c.bf16 %v609, %v608
  %v658 = vpack.c.bf16 %v611, %v610
  %v659 = vpack.c.bf16 %v613, %v612
  %v660 = vpack.c.bf16 %v615, %v614
  %v661 = vpack.c.bf16 %v617, %v616
  %v662 = vpack.c.bf16 %v619, %v618
  %v663 = vpack.c.bf16 %v621, %v620
  %v664 = vpack.c.bf16 %v623, %v622
  %v665 = vpack.c.bf16 %v625, %v624
  %v666 = vpack.c.bf16 %v627, %v626
  %v667 = vpack.c.bf16 %v629, %v628
  %v668 = vpack.c.bf16 %v631, %v630
  %v669 = vpack.c.bf16 %v633, %v632
  %v670 = vpack.c.bf16 %v635, %v634
  %v671 = vpack.c.bf16 %v637, %v636
  %v672 = vpack.c.bf16 %v639, %v638
  %v673 = vpack.c.bf16 %v641, %v640
  %v674 = vpack.c.bf16 %v643, %v642
  %v675 = vpack.c.bf16 %v645, %v644
  %v676 = vpack.c.bf16 %v647, %v646
  %v677 = vpack.c.bf16 %v649, %v648
  %v678 = vpack.c.bf16 %v651, %v650
  %v679 = vpack.c.bf16 %v653, %v652
  %v680 = vpack.c.bf16 %v655, %v654
  %v681 = vpack.c.bf16 %v656, %v656
  %v707 = vunpack.c.l.b16 %v657
  %v708 = vunpack.c.h.b16 %v657
  %v709 = vunpack.c.l.b16 %v658
  %v710 = vunpack.c.h.b16 %v658
  %v711 = vunpack.c.l.b16 %v659
  %v712 = vunpack.c.h.b16 %v659
  %v713 = vunpack.c.l.b16 %v660
  %v714 = vunpack.c.h.b16 %v660
  %v715 = vunpack.c.l.b16 %v661
  %v716 = vunpack.c.h.b16 %v661
  %v717 = vunpack.c.l.b16 %v662
  %v718 = vunpack.c.h.b16 %v662
  %v719 = vunpack.c.l.b16 %v663
  %v720 = vunpack.c.h.b16 %v663
  %v721 = vunpack.c.l.b16 %v664
  %v722 = vunpack.c.h.b16 %v664
  %v723 = vunpack.c.l.b16 %v665
  %v724 = vunpack.c.h.b16 %v665
  %v725 = vunpack.c.l.b16 %v666
  %v726 = vunpack.c.h.b16 %v666
  %v727 = vunpack.c.l.b16 %v667
  %v728 = vunpack.c.h.b16 %v667
  %v729 = vunpack.c.l.b16 %v668
  %v730 = vunpack.c.h.b16 %v668
  %v731 = vunpack.c.l.b16 %v669
  %v732 = vunpack.c.h.b16 %v669
  %v733 = vunpack.c.l.b16 %v670
  %v734 = vunpack.c.h.b16 %v670
  %v735 = vunpack.c.l.b16 %v671
  %v736 = vunpack.c.h.b16 %v671
  %v737 = vunpack.c.l.b16 %v672
  %v738 = vunpack.c.h.b16 %v672
  %v739 = vunpack.c.l.b16 %v673
  %v740 = vunpack.c.h.b16 %v673
  %v741 = vunpack.c.l.b16 %v674
  %v742 = vunpack.c.h.b16 %v674
  %v743 = vunpack.c.l.b16 %v675
  %v744 = vunpack.c.h.b16 %v675
  %v745 = vunpack.c.l.b16 %v676
  %v746 = vunpack.c.h.b16 %v676
  %v747 = vunpack.c.l.b16 %v677
  %v748 = vunpack.c.h.b16 %v677
  %v749 = vunpack.c.l.b16 %v678
  %v750 = vunpack.c.h.b16 %v678
  %v751 = vunpack.c.l.b16 %v679
  %v752 = vunpack.c.h.b16 %v679
  %v753 = vunpack.c.l.b16 %v680
  %v754 = vunpack.c.h.b16 %v680
  %v755 = vunpack.c.l.b16 %v681
  %v756 = vpack.c.b16 %v707, %v707
  %v757 = vpack.c.b16 %v708, %v708
  %v758 = vpack.c.b16 %v709, %v709
  %v759 = vpack.c.b16 %v710, %v710
  %v760 = vpack.c.b16 %v711, %v711
  %v761 = vpack.c.b16 %v712, %v712
  %v762 = vpack.c.b16 %v713, %v713
  %v763 = vpack.c.b16 %v714, %v714
  %v764 = vpack.c.b16 %v715, %v715
  %v765 = vpack.c.b16 %v716, %v716
  %v766 = vpack.c.b16 %v717, %v717
  %v767 = vpack.c.b16 %v718, %v718
  %v768 = vpack.c.b16 %v719, %v719
  %v769 = vpack.c.b16 %v720, %v720
  %v770 = vpack.c.b16 %v721, %v721
  %v771 = vpack.c.b16 %v722, %v722
  %v772 = vpack.c.b16 %v723, %v723
  %v773 = vpack.c.b16 %v724, %v724
  %v774 = vpack.c.b16 %v725, %v725
  %v775 = vpack.c.b16 %v726, %v726
  %v776 = vpack.c.b16 %v727, %v727
  %v777 = vpack.c.b16 %v728, %v728
  %v778 = vpack.c.b16 %v729, %v729
  %v779 = vpack.c.b16 %v730, %v730
  %v780 = vpack.c.b16 %v731, %v731
  %v781 = vpack.c.b16 %v732, %v732
  %v782 = vpack.c.b16 %v733, %v733
  %v783 = vpack.c.b16 %v734, %v734
  %v784 = vpack.c.b16 %v735, %v735
  %v785 = vpack.c.b16 %v736, %v736
  %v786 = vpack.c.b16 %v737, %v737
  %v787 = vpack.c.b16 %v738, %v738
  %v788 = vpack.c.b16 %v739, %v739
  %v789 = vpack.c.b16 %v740, %v740
  %v790 = vpack.c.b16 %v741, %v741
  %v791 = vpack.c.b16 %v742, %v742
  %v792 = vpack.c.b16 %v743, %v743
  %v793 = vpack.c.b16 %v744, %v744
  %v794 = vpack.c.b16 %v745, %v745
  %v795 = vpack.c.b16 %v746, %v746
  %v796 = vpack.c.b16 %v747, %v747
  %v797 = vpack.c.b16 %v748, %v748
  %v798 = vpack.c.b16 %v749, %v749
  %v799 = vpack.c.b16 %v750, %v750
  %v800 = vpack.c.b16 %v751, %v751
  %v801 = vpack.c.b16 %v752, %v752
  %v802 = vpack.c.b16 %v753, %v753
  %v803 = vpack.c.b16 %v754, %v754
  %v804 = vpack.c.b16 %v755, %v755
  %vm854 = vcmask 257024
  %855 = vst.msk [vmem:[%s3] sm:$0xf] %vm854, %v756
  %856 = vst.msk [vmem:[%s3 + $0x4] sm:$0xf] %vm854, %v757
  %857 = vst.msk [vmem:[%s3 + $0x8] sm:$0xf] %vm854, %v758
  %858 = vst.msk [vmem:[%s3 + $0xc] sm:$0xf] %vm854, %v759
  %859 = vst.msk [vmem:[%s3 + $0x10] sm:$0xf] %vm854, %v760
  %860 = vst.msk [vmem:[%s3 + $0x14] sm:$0xf] %vm854, %v761
  %861 = vst.msk [vmem:[%s3 + $0x18] sm:$0xf] %vm854, %v762
  %862 = vst.msk [vmem:[%s3 + $0x1c] sm:$0xf] %vm854, %v763
  %863 = vst.msk [vmem:[%s3 + $0x20] sm:$0xf] %vm854, %v764
  %864 = vst.msk [vmem:[%s3 + $0x24] sm:$0xf] %vm854, %v765
  %865 = vst.msk [vmem:[%s3 + $0x28] sm:$0xf] %vm854, %v766
  %866 = vst.msk [vmem:[%s3 + $0x2c] sm:$0xf] %vm854, %v767
  %867 = vst.msk [vmem:[%s3 + $0x30] sm:$0xf] %vm854, %v768
  %868 = vst.msk [vmem:[%s3 + $0x34] sm:$0xf] %vm854, %v769
  %869 = vst.msk [vmem:[%s3 + $0x38] sm:$0xf] %vm854, %v770
  %870 = vst.msk [vmem:[%s3 + $0x3c] sm:$0xf] %vm854, %v771
  %871 = vst.msk [vmem:[%s3 + $0x40] sm:$0xf] %vm854, %v772
  %872 = vst.msk [vmem:[%s3 + $0x44] sm:$0xf] %vm854, %v773
  %873 = vst.msk [vmem:[%s3 + $0x48] sm:$0xf] %vm854, %v774
  %874 = vst.msk [vmem:[%s3 + $0x4c] sm:$0xf] %vm854, %v775
  %875 = vst.msk [vmem:[%s3 + $0x50] sm:$0xf] %vm854, %v776
  %876 = vst.msk [vmem:[%s3 + $0x54] sm:$0xf] %vm854, %v777
  %877 = vst.msk [vmem:[%s3 + $0x58] sm:$0xf] %vm854, %v778
  %878 = vst.msk [vmem:[%s3 + $0x5c] sm:$0xf] %vm854, %v779
  %879 = vst.msk [vmem:[%s3 + $0x60] sm:$0xf] %vm854, %v780
  %880 = vst.msk [vmem:[%s3 + $0x64] sm:$0xf] %vm854, %v781
  %881 = vst.msk [vmem:[%s3 + $0x68] sm:$0xf] %vm854, %v782
  %882 = vst.msk [vmem:[%s3 + $0x6c] sm:$0xf] %vm854, %v783
  %883 = vst.msk [vmem:[%s3 + $0x70] sm:$0xf] %vm854, %v784
  %884 = vst.msk [vmem:[%s3 + $0x74] sm:$0xf] %vm854, %v785
  %885 = vst.msk [vmem:[%s3 + $0x78] sm:$0xf] %vm854, %v786
  %886 = vst.msk [vmem:[%s3 + $0x7c] sm:$0xf] %vm854, %v787
  %887 = vst.msk [vmem:[%s3 + $0x80] sm:$0xf] %vm854, %v788
  %888 = vst.msk [vmem:[%s3 + $0x84] sm:$0xf] %vm854, %v789
  %889 = vst.msk [vmem:[%s3 + $0x88] sm:$0xf] %vm854, %v790
  %890 = vst.msk [vmem:[%s3 + $0x8c] sm:$0xf] %vm854, %v791
  %891 = vst.msk [vmem:[%s3 + $0x90] sm:$0xf] %vm854, %v792
  %892 = vst.msk [vmem:[%s3 + $0x94] sm:$0xf] %vm854, %v793
  %893 = vst.msk [vmem:[%s3 + $0x98] sm:$0xf] %vm854, %v794
  %894 = vst.msk [vmem:[%s3 + $0x9c] sm:$0xf] %vm854, %v795
  %895 = vst.msk [vmem:[%s3 + $0xa0] sm:$0xf] %vm854, %v796
  %896 = vst.msk [vmem:[%s3 + $0xa4] sm:$0xf] %vm854, %v797
  %897 = vst.msk [vmem:[%s3 + $0xa8] sm:$0xf] %vm854, %v798
  %898 = vst.msk [vmem:[%s3 + $0xac] sm:$0xf] %vm854, %v799
  %899 = vst.msk [vmem:[%s3 + $0xb0] sm:$0xf] %vm854, %v800
  %900 = vst.msk [vmem:[%s3 + $0xb4] sm:$0xf] %vm854, %v801
  %901 = vst.msk [vmem:[%s3 + $0xb8] sm:$0xf] %vm854, %v802
  %902 = vst.msk [vmem:[%s3 + $0xbc] sm:$0xf] %vm854, %v803
  %903 = vst.msk [vmem:[%s3 + $0xc0] sm:$0xf] %vm854, %v804
  // Predicated region
  $region14: #{simple_c_discriminator_forward.3} parent=0 // pred_check
    _
  $region15: #{simple_c_discriminator_forward.3} parent=0 // pred_check_branch
    %905 = sbr.rel (0) target = $region17
  $region16: #{simple_c_discriminator_forward.3} parent=0 // pred_region
    _
  $region17: #{simple_c_discriminator_forward.3} parent=0 // pred_fallthru
    _
  // Predicated region
  $region18: #{simple_c_discriminator_forward.3} parent=0 // pred_check
    _
  $region19: #{simple_c_discriminator_forward.3} parent=0 // pred_check_branch
    %907 = sbr.rel (0) target = $region21
  $region20: #{simple_c_discriminator_forward.3} parent=0 // pred_region
    _
  $region21: #{simple_c_discriminator_forward.3} parent=0 // pred_fallthru
    _

// kernel: simple_c_discriminator_forward.4
$region0: #{simple_c_discriminator_forward.4}
  #allocation0 [shape = 'u32[]', space=smem, size = 0x4, offset = 0x4, fixed_abs, tag = 'smem constant byte address 0x4 - core index']
  #allocation1 [shape = 'u32[144,128]{1,0:T(1,128)}', space=vmem, size = 0x12000, scoped, tag = 'internal scratch']
  %s0 = inlined_call_operand.vmem [shape: bf16[98,512], index: 0, kind: input, shape index: {}]
  %s1 = inlined_call_operand.vmem [shape: bf16[512,64], index: 1, kind: input, shape index: {}]
  %s2 = inlined_call_operand.vmem [shape: f32[1,64], index: 2, kind: input, shape index: {}]
  %s3 = inlined_call_operand.vmem [shape: f32[1,64], index: 3, kind: input, shape index: {}]
  %s4 = inlined_call_operand.vmem [shape: bf16[98,64], index: 4, kind: output, shape index: {}]
  %s5 = sld [smem:[#allocation0]]
  $region26: #{simple_c_discriminator_forward.4} parent=0
    _
  %s7 = ssub.s32 1, %s5
  %s8 = scalar_select 0, %s7, %s5
  // Predicated region
  $region2: #{simple_c_discriminator_forward.4} parent=0 // pred_check
    _
  $region3: #{simple_c_discriminator_forward.4} parent=0 // pred_check_branch
    %10 = sbr.rel (0) target = $region5
  $region4: #{simple_c_discriminator_forward.4} parent=0 // pred_region
    _
  $region5: #{simple_c_discriminator_forward.4} parent=0 // pred_fallthru
    _
  // Predicated region
  $region6: #{simple_c_discriminator_forward.4} parent=0 // pred_check
    _
  $region7: #{simple_c_discriminator_forward.4} parent=0 // pred_check_branch
    %12 = sbr.rel (0) target = $region9
  $region8: #{simple_c_discriminator_forward.4} parent=0 // pred_region
    _
  $region9: #{simple_c_discriminator_forward.4} parent=0 // pred_fallthru
    _
  // Predicated region
  $region10: #{simple_c_discriminator_forward.4} parent=0 // pred_check
    _
  $region11: #{simple_c_discriminator_forward.4} parent=0 // pred_check_branch
    %14 = sbr.rel (0) target = $region13
  $region12: #{simple_c_discriminator_forward.4} parent=0 // pred_region
    _
  $region13: #{simple_c_discriminator_forward.4} parent=0 // pred_fallthru
    _
  // Predicated region
  $region14: #{simple_c_discriminator_forward.4} parent=0 // pred_check
    _
  $region15: #{simple_c_discriminator_forward.4} parent=0 // pred_check_branch
    %16 = sbr.rel (0) target = $region17
  $region16: #{simple_c_discriminator_forward.4} parent=0 // pred_region
    _
  $region17: #{simple_c_discriminator_forward.4} parent=0 // pred_fallthru
    _
  %v18 = vld [vmem:[%s0] sm:$0xff]
  %v19 = vld [vmem:[%s0 + $0x8] sm:$0xff]
  %v20 = vld [vmem:[%s0 + $0x10] sm:$0xff]
  %v21 = vld [vmem:[%s0 + $0x18] sm:$0xff]
  %v22 = vld [vmem:[%s0 + $0x20] sm:$0xff]
  %v23 = vld [vmem:[%s0 + $0x28] sm:$0xff]
  %v24 = vld [vmem:[%s0 + $0x30] sm:$0xff]
  %v25 = vld [vmem:[%s0 + $0x38] sm:$0xff]
  %v26 = vld [vmem:[%s0 + $0x40] sm:$0xff]
  %v27 = vld [vmem:[%s0 + $0x48] sm:$0xff]
  %v28 = vld [vmem:[%s0 + $0x50] sm:$0xff]
  %v29 = vld [vmem:[%s0 + $0x58] sm:$0xff]
  %v30 = vld [vmem:[%s0 + $0x60] sm:$0xff]
  %v31 = vld [vmem:[%s0 + $0x68] sm:$0xff]
  %v32 = vld [vmem:[%s0 + $0x70] sm:$0xff]
  %v33 = vld [vmem:[%s0 + $0x78] sm:$0xff]
  %v34 = vld [vmem:[%s0 + $0x80] sm:$0xff]
  %v35 = vld [vmem:[%s0 + $0x88] sm:$0xff]
  %v36 = vld [vmem:[%s0 + $0x90] sm:$0xff]
  %v37 = vld [vmem:[%s0 + $0x98] sm:$0xff]
  %v38 = vld [vmem:[%s0 + $0xa0] sm:$0xff]
  %v39 = vld [vmem:[%s0 + $0xa8] sm:$0xff]
  %v40 = vld [vmem:[%s0 + $0xb0] sm:$0xff]
  %v41 = vld [vmem:[%s0 + $0xb8] sm:$0xff]
  %v42 = vld [vmem:[%s0 + $0xc0] sm:$0x11]
  %v43 = vld [vmem:[%s0 + $0xc8] sm:$0x11]
  %v44 = vld [vmem:[%s1] sm:$0xf]
  %v45 = vld [vmem:[%s1 + $0x4] sm:$0xf]
  %v46 = vld [vmem:[%s1 + $0x8] sm:$0xf]
  %v47 = vld [vmem:[%s1 + $0xc] sm:$0xf]
  %v48 = vld [vmem:[%s1 + $0x10] sm:$0xf]
  %v49 = vld [vmem:[%s1 + $0x14] sm:$0xf]
  %v50 = vld [vmem:[%s1 + $0x18] sm:$0xf]
  %v51 = vld [vmem:[%s1 + $0x1c] sm:$0xf]
  %v52 = vld [vmem:[%s1 + $0x20] sm:$0xf]
  %v53 = vld [vmem:[%s1 + $0x24] sm:$0xf]
  %v54 = vld [vmem:[%s1 + $0x28] sm:$0xf]
  %v55 = vld [vmem:[%s1 + $0x2c] sm:$0xf]
  %v56 = vld [vmem:[%s1 + $0x30] sm:$0xf]
  %v57 = vld [vmem:[%s1 + $0x34] sm:$0xf]
  %v58 = vld [vmem:[%s1 + $0x38] sm:$0xf]
  %v59 = vld [vmem:[%s1 + $0x3c] sm:$0xf]
  %v60 = vld [vmem:[%s1 + $0x40] sm:$0xf]
  %v61 = vld [vmem:[%s1 + $0x44] sm:$0xf]
  %v62 = vld [vmem:[%s1 + $0x48] sm:$0xf]
  %v63 = vld [vmem:[%s1 + $0x4c] sm:$0xf]
  %v64 = vld [vmem:[%s1 + $0x50] sm:$0xf]
  %v65 = vld [vmem:[%s1 + $0x54] sm:$0xf]
  %v66 = vld [vmem:[%s1 + $0x58] sm:$0xf]
  %v67 = vld [vmem:[%s1 + $0x5c] sm:$0xf]
  %v68 = vld [vmem:[%s1 + $0x60] sm:$0xf]
  %v69 = vld [vmem:[%s1 + $0x64] sm:$0xf]
  %v70 = vld [vmem:[%s1 + $0x68] sm:$0xf]
  %v71 = vld [vmem:[%s1 + $0x6c] sm:$0xf]
  %v72 = vld [vmem:[%s1 + $0x70] sm:$0xf]
  %v73 = vld [vmem:[%s1 + $0x74] sm:$0xf]
  %v74 = vld [vmem:[%s1 + $0x78] sm:$0xf]
  %v75 = vld [vmem:[%s1 + $0x7c] sm:$0xf]
  %v76 = vld [vmem:[%s1 + $0x80] sm:$0xf]
  %v77 = vld [vmem:[%s1 + $0x84] sm:$0xf]
  %v78 = vld [vmem:[%s1 + $0x88] sm:$0xf]
  %v79 = vld [vmem:[%s1 + $0x8c] sm:$0xf]
  %v80 = vld [vmem:[%s1 + $0x90] sm:$0xf]
  %v81 = vld [vmem:[%s1 + $0x94] sm:$0xf]
  %v82 = vld [vmem:[%s1 + $0x98] sm:$0xf]
  %v83 = vld [vmem:[%s1 + $0x9c] sm:$0xf]
  %v84 = vld [vmem:[%s1 + $0xa0] sm:$0xf]
  %v85 = vld [vmem:[%s1 + $0xa4] sm:$0xf]
  %v86 = vld [vmem:[%s1 + $0xa8] sm:$0xf]
  %v87 = vld [vmem:[%s1 + $0xac] sm:$0xf]
  %v88 = vld [vmem:[%s1 + $0xb0] sm:$0xf]
  %v89 = vld [vmem:[%s1 + $0xb4] sm:$0xf]
  %v90 = vld [vmem:[%s1 + $0xb8] sm:$0xf]
  %v91 = vld [vmem:[%s1 + $0xbc] sm:$0xf]
  %v92 = vld [vmem:[%s1 + $0xc0] sm:$0xf]
  %v93 = vld [vmem:[%s1 + $0xc4] sm:$0xf]
  %v94 = vld [vmem:[%s1 + $0xc8] sm:$0xf]
  %v95 = vld [vmem:[%s1 + $0xcc] sm:$0xf]
  %v96 = vld [vmem:[%s1 + $0xd0] sm:$0xf]
  %v97 = vld [vmem:[%s1 + $0xd4] sm:$0xf]
  %v98 = vld [vmem:[%s1 + $0xd8] sm:$0xf]
  %v99 = vld [vmem:[%s1 + $0xdc] sm:$0xf]
  %v100 = vld [vmem:[%s1 + $0xe0] sm:$0xf]
  %v101 = vld [vmem:[%s1 + $0xe4] sm:$0xf]
  %v102 = vld [vmem:[%s1 + $0xe8] sm:$0xf]
  %v103 = vld [vmem:[%s1 + $0xec] sm:$0xf]
  %v104 = vld [vmem:[%s1 + $0xf0] sm:$0xf]
  %v105 = vld [vmem:[%s1 + $0xf4] sm:$0xf]
  %v106 = vld [vmem:[%s1 + $0xf8] sm:$0xf]
  %v107 = vld [vmem:[%s1 + $0xfc] sm:$0xf]
  %v134 = vunpack.c.l.b16 %v18
  %v135 = vunpack.c.h.b16 %v18
  %v136 = vunpack.c.l.b16 %v19
  %v137 = vunpack.c.h.b16 %v19
  %v138 = vunpack.c.l.b16 %v20
  %v139 = vunpack.c.h.b16 %v20
  %v140 = vunpack.c.l.b16 %v21
  %v141 = vunpack.c.h.b16 %v21
  %v142 = vunpack.c.l.b16 %v22
  %v143 = vunpack.c.h.b16 %v22
  %v144 = vunpack.c.l.b16 %v23
  %v145 = vunpack.c.h.b16 %v23
  %v146 = vunpack.c.l.b16 %v24
  %v147 = vunpack.c.h.b16 %v24
  %v148 = vunpack.c.l.b16 %v25
  %v149 = vunpack.c.h.b16 %v25
  %v150 = vunpack.c.l.b16 %v26
  %v151 = vunpack.c.h.b16 %v26
  %v152 = vunpack.c.l.b16 %v27
  %v153 = vunpack.c.h.b16 %v27
  %v154 = vunpack.c.l.b16 %v28
  %v155 = vunpack.c.h.b16 %v28
  %v156 = vunpack.c.l.b16 %v29
  %v157 = vunpack.c.h.b16 %v29
  %v158 = vunpack.c.l.b16 %v30
  %v159 = vunpack.c.h.b16 %v30
  %v160 = vunpack.c.l.b16 %v31
  %v161 = vunpack.c.h.b16 %v31
  %v162 = vunpack.c.l.b16 %v32
  %v163 = vunpack.c.h.b16 %v32
  %v164 = vunpack.c.l.b16 %v33
  %v165 = vunpack.c.h.b16 %v33
  %v166 = vunpack.c.l.b16 %v34
  %v167 = vunpack.c.h.b16 %v34
  %v168 = vunpack.c.l.b16 %v35
  %v169 = vunpack.c.h.b16 %v35
  %v170 = vunpack.c.l.b16 %v36
  %v171 = vunpack.c.h.b16 %v36
  %v172 = vunpack.c.l.b16 %v37
  %v173 = vunpack.c.h.b16 %v37
  %v174 = vunpack.c.l.b16 %v38
  %v175 = vunpack.c.h.b16 %v38
  %v176 = vunpack.c.l.b16 %v39
  %v177 = vunpack.c.h.b16 %v39
  %v178 = vunpack.c.l.b16 %v40
  %v179 = vunpack.c.h.b16 %v40
  %v180 = vunpack.c.l.b16 %v41
  %v181 = vunpack.c.h.b16 %v41
  %v182 = vunpack.c.l.b16 %v42
  %v183 = vunpack.c.h.b16 %v42
  %v184 = vunpack.c.l.b16 %v43
  %v185 = vunpack.c.h.b16 %v43
  %v186 = vpack.c.b16 %v138, %v134
  %v187 = vpack.c.b16 %v139, %v135
  %v188 = vpack.c.b16 %v140, %v136
  %v189 = vpack.c.b16 %v141, %v137
  %v190 = vpack.c.b16 %v146, %v142
  %v191 = vpack.c.b16 %v147, %v143
  %v192 = vpack.c.b16 %v148, %v144
  %v193 = vpack.c.b16 %v149, %v145
  %v194 = vpack.c.b16 %v154, %v150
  %v195 = vpack.c.b16 %v155, %v151
  %v196 = vpack.c.b16 %v156, %v152
  %v197 = vpack.c.b16 %v157, %v153
  %v198 = vpack.c.b16 %v162, %v158
  %v199 = vpack.c.b16 %v163, %v159
  %v200 = vpack.c.b16 %v164, %v160
  %v201 = vpack.c.b16 %v165, %v161
  %v202 = vpack.c.b16 %v170, %v166
  %v203 = vpack.c.b16 %v171, %v167
  %v204 = vpack.c.b16 %v172, %v168
  %v205 = vpack.c.b16 %v173, %v169
  %v206 = vpack.c.b16 %v178, %v174
  %v207 = vpack.c.b16 %v179, %v175
  %v208 = vpack.c.b16 %v180, %v176
  %v209 = vpack.c.b16 %v181, %v177
  %v210 = vpack.c.b16 %v182, %v182
  %v211 = vpack.c.b16 %v183, %v183
  %v212 = vpack.c.b16 %v184, %v184
  %v213 = vpack.c.b16 %v185, %v185
  %v306 = vunpack.c.l.b16 %v44
  %v307 = vunpack.c.l.b16 %v45
  %v308 = vunpack.c.l.b16 %v46
  %v309 = vunpack.c.l.b16 %v47
  %v310 = vunpack.c.l.b16 %v48
  %v311 = vunpack.c.l.b16 %v49
  %v312 = vunpack.c.l.b16 %v50
  %v313 = vunpack.c.l.b16 %v51
  %v314 = vunpack.c.l.b16 %v52
  %v315 = vunpack.c.l.b16 %v53
  %v316 = vunpack.c.l.b16 %v54
  %v317 = vunpack.c.l.b16 %v55
  %v318 = vunpack.c.l.b16 %v56
  %v319 = vunpack.c.l.b16 %v57
  %v320 = vunpack.c.l.b16 %v58
  %v321 = vunpack.c.l.b16 %v59
  %v322 = vunpack.c.l.b16 %v60
  %v323 = vunpack.c.l.b16 %v61
  %v324 = vunpack.c.l.b16 %v62
  %v325 = vunpack.c.l.b16 %v63
  %v326 = vunpack.c.l.b16 %v64
  %v327 = vunpack.c.l.b16 %v65
  %v328 = vunpack.c.l.b16 %v66
  %v329 = vunpack.c.l.b16 %v67
  %v330 = vunpack.c.l.b16 %v68
  %v331 = vunpack.c.l.b16 %v69
  %v332 = vunpack.c.l.b16 %v70
  %v333 = vunpack.c.l.b16 %v71
  %v334 = vunpack.c.l.b16 %v72
  %v335 = vunpack.c.l.b16 %v73
  %v336 = vunpack.c.l.b16 %v74
  %v337 = vunpack.c.l.b16 %v75
  %v338 = vunpack.c.l.b16 %v76
  %v339 = vunpack.c.l.b16 %v77
  %v340 = vunpack.c.l.b16 %v78
  %v341 = vunpack.c.l.b16 %v79
  %v342 = vunpack.c.l.b16 %v80
  %v343 = vunpack.c.l.b16 %v81
  %v344 = vunpack.c.l.b16 %v82
  %v345 = vunpack.c.l.b16 %v83
  %v346 = vunpack.c.l.b16 %v84
  %v347 = vunpack.c.l.b16 %v85
  %v348 = vunpack.c.l.b16 %v86
  %v349 = vunpack.c.l.b16 %v87
  %v350 = vunpack.c.l.b16 %v88
  %v351 = vunpack.c.l.b16 %v89
  %v352 = vunpack.c.l.b16 %v90
  %v353 = vunpack.c.l.b16 %v91
  %v354 = vunpack.c.l.b16 %v92
  %v355 = vunpack.c.l.b16 %v93
  %v356 = vunpack.c.l.b16 %v94
  %v357 = vunpack.c.l.b16 %v95
  %v358 = vunpack.c.l.b16 %v96
  %v359 = vunpack.c.l.b16 %v97
  %v360 = vunpack.c.l.b16 %v98
  %v361 = vunpack.c.l.b16 %v99
  %v362 = vunpack.c.l.b16 %v100
  %v363 = vunpack.c.l.b16 %v101
  %v364 = vunpack.c.l.b16 %v102
  %v365 = vunpack.c.l.b16 %v103
  %v366 = vunpack.c.l.b16 %v104
  %v367 = vunpack.c.l.b16 %v105
  %v368 = vunpack.c.l.b16 %v106
  %v369 = vunpack.c.l.b16 %v107
  %v370 = vpack.c.b16 %v307, %v306
  %v371 = vpack.c.b16 %v309, %v308
  %v372 = vpack.c.b16 %v311, %v310
  %v373 = vpack.c.b16 %v313, %v312
  %v374 = vpack.c.b16 %v315, %v314
  %v375 = vpack.c.b16 %v317, %v316
  %v376 = vpack.c.b16 %v319, %v318
  %v377 = vpack.c.b16 %v321, %v320
  %v378 = vpack.c.b16 %v323, %v322
  %v379 = vpack.c.b16 %v325, %v324
  %v380 = vpack.c.b16 %v327, %v326
  %v381 = vpack.c.b16 %v329, %v328
  %v382 = vpack.c.b16 %v331, %v330
  %v383 = vpack.c.b16 %v333, %v332
  %v384 = vpack.c.b16 %v335, %v334
  %v385 = vpack.c.b16 %v337, %v336
  %v386 = vpack.c.b16 %v339, %v338
  %v387 = vpack.c.b16 %v341, %v340
  %v388 = vpack.c.b16 %v343, %v342
  %v389 = vpack.c.b16 %v345, %v344
  %v390 = vpack.c.b16 %v347, %v346
  %v391 = vpack.c.b16 %v349, %v348
  %v392 = vpack.c.b16 %v351, %v350
  %v393 = vpack.c.b16 %v353, %v352
  %v394 = vpack.c.b16 %v355, %v354
  %v395 = vpack.c.b16 %v357, %v356
  %v396 = vpack.c.b16 %v359, %v358
  %v397 = vpack.c.b16 %v361, %v360
  %v398 = vpack.c.b16 %v363, %v362
  %v399 = vpack.c.b16 %v365, %v364
  %v400 = vpack.c.b16 %v367, %v366
  %v401 = vpack.c.b16 %v369, %v368
  %434 = vmatprep.subr.bf16.mxu0 0
  %435 = vmatpush1.bf16.msra.mxu0 %v370
  %436 = vmatprep.subr.bf16.mxu0 0
  %437 = vmatpush1.bf16.msra.mxu0 %v371
  %438 = vmatprep.subr.bf16.mxu0 0
  %439 = vmatpush1.bf16.msra.mxu0 %v372
  %440 = vmatprep.subr.bf16.mxu0 0
  %441 = vmatpush1.bf16.msra.mxu0 %v373
  %442 = vmatprep.subr.bf16.mxu0 0
  %443 = vmatpush1.bf16.msra.mxu0 %v374
  %444 = vmatprep.subr.bf16.mxu0 0
  %445 = vmatpush1.bf16.msra.mxu0 %v375
  %446 = vmatprep.subr.bf16.mxu0 0
  %447 = vmatpush1.bf16.msra.mxu0 %v376
  %448 = vmatprep.subr.bf16.mxu0 0
  %449 = vmatpush1.bf16.msra.mxu0 %v377
  %450 = vmatprep.subr.bf16.mxu0 0
  %451 = vmatpush1.bf16.msra.mxu0 %v378
  %452 = vmatprep.subr.bf16.mxu0 0
  %453 = vmatpush1.bf16.msra.mxu0 %v379
  %454 = vmatprep.subr.bf16.mxu0 0
  %455 = vmatpush1.bf16.msra.mxu0 %v380
  %456 = vmatprep.subr.bf16.mxu0 0
  %457 = vmatpush1.bf16.msra.mxu0 %v381
  %458 = vmatprep.subr.bf16.mxu0 0
  %459 = vmatpush1.bf16.msra.mxu0 %v382
  %460 = vmatprep.subr.bf16.mxu0 0
  %461 = vmatpush1.bf16.msra.mxu0 %v383
  %462 = vmatprep.subr.bf16.mxu0 0
  %463 = vmatpush1.bf16.msra.mxu0 %v384
  %464 = vmatprep.subr.bf16.mxu0 0
  %465 = vmatpush1.bf16.msra.mxu0 %v385
  %466 = vmatprep.mubr.bf16.mxu0 %v187
  %467 = vmatmul.mubr.bf16.gmra.mrb[0].mxu0 %v186
  %v468 = vpop.f32.mrb[0].mxu0
  %v469 = vadd.f32 0.0, %v468
  %v470 = vpop.f32.mrb[0].mxu0
  %v471 = vpop.f32.mrb[0].mxu0
  %v472 = vadd.f32 0.0, %v471
  %v473 = vpop.f32.mrb[0].mxu0
  %474 = vmatprep.mubr.bf16.mxu0 %v191
  %475 = vmatmul.mubr.bf16.gmra.mrb[0].mxu0 %v190
  %v476 = vpop.f32.mrb[0].mxu0
  %v477 = vadd.f32 0.0, %v476
  %v478 = vpop.f32.mrb[0].mxu0
  %v479 = vpop.f32.mrb[0].mxu0
  %v480 = vadd.f32 0.0, %v479
  %v481 = vpop.f32.mrb[0].mxu0
  %482 = vmatprep.mubr.bf16.mxu0 %v195
  %483 = vmatmul.mubr.bf16.gmra.mrb[0].mxu0 %v194
  %v484 = vpop.f32.mrb[0].mxu0
  %v485 = vadd.f32 0.0, %v484
  %v486 = vpop.f32.mrb[0].mxu0
  %v487 = vpop.f32.mrb[0].mxu0
  %v488 = vadd.f32 0.0, %v487
  %v489 = vpop.f32.mrb[0].mxu0
  %490 = vmatprep.mubr.bf16.mxu0 %v199
  %491 = vmatmul.mubr.bf16.gmra.mrb[0].mxu0 %v198
  %v492 = vpop.f32.mrb[0].mxu0
  %v493 = vadd.f32 0.0, %v492
  %v494 = vpop.f32.mrb[0].mxu0
  %v495 = vpop.f32.mrb[0].mxu0
  %v496 = vadd.f32 0.0, %v495
  %v497 = vpop.f32.mrb[0].mxu0
  %498 = vmatprep.mubr.bf16.mxu0 %v203
  %499 = vmatmul.mubr.bf16.gmra.mrb[0].mxu0 %v202
  %v500 = vpop.f32.mrb[0].mxu0
  %v501 = vadd.f32 0.0, %v500
  %v502 = vpop.f32.mrb[0].mxu0
  %v503 = vpop.f32.mrb[0].mxu0
  %v504 = vadd.f32 0.0, %v503
  %v505 = vpop.f32.mrb[0].mxu0
  %506 = vmatprep.mubr.bf16.mxu0 %v207
  %507 = vmatmul.mubr.bf16.gmra.mrb[0].mxu0 %v206
  %v508 = vpop.f32.mrb[0].mxu0
  %v509 = vadd.f32 0.0, %v508
  %v510 = vpop.f32.mrb[0].mxu0
  %v511 = vpop.f32.mrb[0].mxu0
  %v512 = vadd.f32 0.0, %v511
  %v513 = vpop.f32.mrb[0].mxu0
  %514 = vmatprep.mubr.bf16.mxu0 %v211
  %515 = vmatmul.mubr.bf16.gmra.mrb[0].mxu0 %v210
  %v516 = vpop.f32.mrb[0].mxu0
  %v517 = vadd.f32 0.0, %v516
  %v518 = vpop.f32.mrb[0].mxu0
  %v519 = vpop.f32.mrb[0].mxu0
  %v520 = vpop.f32.mrb[0].mxu0
  %521 = vdwg.mxu0
  %522 = vmatprep.subr.bf16.mxu0 0
  %523 = vmatpush1.bf16.msra.mxu0 %v386
  %524 = vmatprep.subr.bf16.mxu0 0
  %525 = vmatpush1.bf16.msra.mxu0 %v387
  %526 = vmatprep.subr.bf16.mxu0 0
  %527 = vmatpush1.bf16.msra.mxu0 %v388
  %528 = vmatprep.subr.bf16.mxu0 0
  %529 = vmatpush1.bf16.msra.mxu0 %v389
  %530 = vmatprep.subr.bf16.mxu0 0
  %531 = vmatpush1.bf16.msra.mxu0 %v390
  %532 = vmatprep.subr.bf16.mxu0 0
  %533 = vmatpush1.bf16.msra.mxu0 %v391
  %534 = vmatprep.subr.bf16.mxu0 0
  %535 = vmatpush1.bf16.msra.mxu0 %v392
  %536 = vmatprep.subr.bf16.mxu0 0
  %537 = vmatpush1.bf16.msra.mxu0 %v393
  %538 = vmatprep.subr.bf16.mxu0 0
  %539 = vmatpush1.bf16.msra.mxu0 %v394
  %540 = vmatprep.subr.bf16.mxu0 0
  %541 = vmatpush1.bf16.msra.mxu0 %v395
  %542 = vmatprep.subr.bf16.mxu0 0
  %543 = vmatpush1.bf16.msra.mxu0 %v396
  %544 = vmatprep.subr.bf16.mxu0 0
  %545 = vmatpush1.bf16.msra.mxu0 %v397
  %546 = vmatprep.subr.bf16.mxu0 0
  %547 = vmatpush1.bf16.msra.mxu0 %v398
  %548 = vmatprep.subr.bf16.mxu0 0
  %549 = vmatpush1.bf16.msra.mxu0 %v399
  %550 = vmatprep.subr.bf16.mxu0 0
  %551 = vmatpush1.bf16.msra.mxu0 %v400
  %552 = vmatprep.subr.bf16.mxu0 0
  %553 = vmatpush1.bf16.msra.mxu0 %v401
  %554 = vmatprep.mubr.bf16.mxu0 %v189
  %555 = vmatmul.mubr.bf16.gmra.mrb[0].mxu0 %v188
  %v556 = vpop.f32.mrb[0].mxu0
  %v557 = vadd.f32 %v469, %v556
  %v558 = vpop.f32.mrb[0].mxu0
  %v559 = vpop.f32.mrb[0].mxu0
  %v560 = vadd.f32 %v472, %v559
  %v561 = vpop.f32.mrb[0].mxu0
  %562 = vmatprep.mubr.bf16.mxu0 %v193
  %563 = vmatmul.mubr.bf16.gmra.mrb[0].mxu0 %v192
  %v564 = vpop.f32.mrb[0].mxu0
  %v565 = vadd.f32 %v477, %v564
  %v566 = vpop.f32.mrb[0].mxu0
  %v567 = vpop.f32.mrb[0].mxu0
  %v568 = vadd.f32 %v480, %v567
  %v569 = vpop.f32.mrb[0].mxu0
  %570 = vmatprep.mubr.bf16.mxu0 %v197
  %571 = vmatmul.mubr.bf16.gmra.mrb[0].mxu0 %v196
  %v572 = vpop.f32.mrb[0].mxu0
  %v573 = vadd.f32 %v485, %v572
  %v574 = vpop.f32.mrb[0].mxu0
  %v575 = vpop.f32.mrb[0].mxu0
  %v576 = vadd.f32 %v488, %v575
  %v577 = vpop.f32.mrb[0].mxu0
  %578 = vmatprep.mubr.bf16.mxu0 %v201
  %579 = vmatmul.mubr.bf16.gmra.mrb[0].mxu0 %v200
  %v580 = vpop.f32.mrb[0].mxu0
  %v581 = vadd.f32 %v493, %v580
  %v582 = vpop.f32.mrb[0].mxu0
  %v583 = vpop.f32.mrb[0].mxu0
  %v584 = vadd.f32 %v496, %v583
  %v585 = vpop.f32.mrb[0].mxu0
  %586 = vmatprep.mubr.bf16.mxu0 %v205
  %587 = vmatmul.mubr.bf16.gmra.mrb[0].mxu0 %v204
  %v588 = vpop.f32.mrb[0].mxu0
  %v589 = vadd.f32 %v501, %v588
  %v590 = vpop.f32.mrb[0].mxu0
  %v591 = vpop.f32.mrb[0].mxu0
  %v592 = vadd.f32 %v504, %v591
  %v593 = vpop.f32.mrb[0].mxu0
  %594 = vmatprep.mubr.bf16.mxu0 %v209
  %595 = vmatmul.mubr.bf16.gmra.mrb[0].mxu0 %v208
  %v596 = vpop.f32.mrb[0].mxu0
  %v597 = vadd.f32 %v509, %v596
  %v598 = vpop.f32.mrb[0].mxu0
  %v599 = vpop.f32.mrb[0].mxu0
  %v600 = vadd.f32 %v512, %v599
  %v601 = vpop.f32.mrb[0].mxu0
  %602 = vmatprep.mubr.bf16.mxu0 %v213
  %603 = vmatmul.mubr.bf16.gmra.mrb[0].mxu0 %v212
  %v604 = vpop.f32.mrb[0].mxu0
  %v605 = vadd.f32 %v517, %v604
  %v606 = vpop.f32.mrb[0].mxu0
  %v607 = vpop.f32.mrb[0].mxu0
  %v608 = vpop.f32.mrb[0].mxu0
  %609 = vdwg.mxu0
  %vm610 = vcmask 523264
  %v611 = vsel %vm610, %v557, 0.0
  %v612 = vsel %vm610, %v560, 0.0
  %v613 = vadd.f32 %v611, %v612
  %v614 = vsel %vm610, %v565, 0.0
  %v615 = vadd.f32 %v613, %v614
  %v616 = vsel %vm610, %v568, 0.0
  %v617 = vadd.f32 %v615, %v616
  %v618 = vsel %vm610, %v573, 0.0
  %v619 = vadd.f32 %v617, %v618
  %v620 = vsel %vm610, %v576, 0.0
  %v621 = vadd.f32 %v619, %v620
  %v622 = vsel %vm610, %v581, 0.0
  %v623 = vadd.f32 %v621, %v622
  %v624 = vsel %vm610, %v584, 0.0
  %v625 = vadd.f32 %v623, %v624
  %v626 = vsel %vm610, %v589, 0.0
  %v627 = vadd.f32 %v625, %v626
  %v628 = vsel %vm610, %v592, 0.0
  %v629 = vadd.f32 %v627, %v628
  %v630 = vsel %vm610, %v597, 0.0
  %v631 = vadd.f32 %v629, %v630
  %v632 = vsel %vm610, %v600, 0.0
  %v633 = vadd.f32 %v631, %v632
  %vm634 = vcmask 517120
  %v635 = vsel %vm634, %v605, 0.0
  %v636 = vadd.f32 %v633, %v635
  %v637 = vrot.slane %v636, 4
  %v638 = vadd.f32 %v636, %v637
  %v639 = vrot.slane %v638, 2
  %v640 = vadd.f32 %v638, %v639
  %v641 = vrot.slane %v640, 1
  %v642 = vadd.f32 %v640, %v641
  %v643 = vrcp.pop 98.0
  %v644 = vmul.f32 %v642, %v643
  %v645 = vmul.f32 %v557, %v557
  %v646 = vmul.f32 %v560, %v560
  %v647 = vmul.f32 %v565, %v565
  %v648 = vmul.f32 %v568, %v568
  %v649 = vmul.f32 %v573, %v573
  %v650 = vmul.f32 %v576, %v576
  %v651 = vmul.f32 %v581, %v581
  %v652 = vmul.f32 %v584, %v584
  %v653 = vmul.f32 %v589, %v589
  %v654 = vmul.f32 %v592, %v592
  %v655 = vmul.f32 %v597, %v597
  %v656 = vmul.f32 %v600, %v600
  %v657 = vmul.f32 %v605, %v605
  %v658 = vsel %vm610, %v645, 0.0
  %v659 = vsel %vm610, %v646, 0.0
  %v660 = vadd.f32 %v658, %v659
  %v661 = vsel %vm610, %v647, 0.0
  %v662 = vadd.f32 %v660, %v661
  %v663 = vsel %vm610, %v648, 0.0
  %v664 = vadd.f32 %v662, %v663
  %v665 = vsel %vm610, %v649, 0.0
  %v666 = vadd.f32 %v664, %v665
  %v667 = vsel %vm610, %v650, 0.0
  %v668 = vadd.f32 %v666, %v667
  %v669 = vsel %vm610, %v651, 0.0
  %v670 = vadd.f32 %v668, %v669
  %v671 = vsel %vm610, %v652, 0.0
  %v672 = vadd.f32 %v670, %v671
  %v673 = vsel %vm610, %v653, 0.0
  %v674 = vadd.f32 %v672, %v673
  %v675 = vsel %vm610, %v654, 0.0
  %v676 = vadd.f32 %v674, %v675
  %v677 = vsel %vm610, %v655, 0.0
  %v678 = vadd.f32 %v676, %v677
  %v679 = vsel %vm610, %v656, 0.0
  %v680 = vadd.f32 %v678, %v679
  %v681 = vsel %vm634, %v657, 0.0
  %v682 = vadd.f32 %v680, %v681
  %v683 = vrot.slane %v682, 4
  %v684 = vadd.f32 %v682, %v683
  %v685 = vrot.slane %v684, 2
  %v686 = vadd.f32 %v684, %v685
  %v687 = vrot.slane %v686, 1
  %v688 = vadd.f32 %v686, %v687
  %v689 = vmul.f32 %v688, %v643
  %v690 = vmul.f32 %v644, %v644
  %v691 = vsub.f32 %v689, %v690
  %v692 = vld [vmem:[%s2] sm:$0x1]
  %v693 = vadd.f32 %v691, 1e-05
  %v694 = vrsqrt.pop %v693
  %v695 = vmul.f32 %v692, %v694
  %v697 = vlaneseq
  %v698 = vshrl.u32 %v697, 7
  %v699 = vsub.s32 0, %v698
  %v700 = vrot.slane %v695, %v699
  %v702 = vmul.f32 %v557, %v700
  %v703 = vmul.f32 %v560, %v700
  %v704 = vmul.f32 %v565, %v700
  %v705 = vmul.f32 %v568, %v700
  %v706 = vmul.f32 %v573, %v700
  %v707 = vmul.f32 %v576, %v700
  %v708 = vmul.f32 %v581, %v700
  %v709 = vmul.f32 %v584, %v700
  %v710 = vmul.f32 %v589, %v700
  %v711 = vmul.f32 %v592, %v700
  %v712 = vmul.f32 %v597, %v700
  %v713 = vmul.f32 %v600, %v700
  %v714 = vmul.f32 %v605, %v700
  %v715 = vld [vmem:[%s3] sm:$0x1]
  %v716 = vmul.f32 %v644, %v695
  %v717 = vsub.f32 %v715, %v716
  %v719 = vlaneseq
  %v720 = vshrl.u32 %v719, 7
  %v721 = vsub.s32 0, %v720
  %v722 = vrot.slane %v717, %v721
  %v724 = vadd.f32 %v702, %v722
  %v725 = vadd.f32 %v703, %v722
  %v726 = vadd.f32 %v704, %v722
  %v727 = vadd.f32 %v705, %v722
  %v728 = vadd.f32 %v706, %v722
  %v729 = vadd.f32 %v707, %v722
  %v730 = vadd.f32 %v708, %v722
  %v731 = vadd.f32 %v709, %v722
  %v732 = vadd.f32 %v710, %v722
  %v733 = vadd.f32 %v711, %v722
  %v734 = vadd.f32 %v712, %v722
  %v735 = vadd.f32 %v713, %v722
  %v736 = vadd.f32 %v714, %v722
  %vm737 = vcmp.ge.f32.partialorder %v724, 0.0
  %vm738 = vcmp.ge.f32.partialorder %v725, 0.0
  %vm739 = vcmp.ge.f32.partialorder %v726, 0.0
  %vm740 = vcmp.ge.f32.partialorder %v727, 0.0
  %vm741 = vcmp.ge.f32.partialorder %v728, 0.0
  %vm742 = vcmp.ge.f32.partialorder %v729, 0.0
  %vm743 = vcmp.ge.f32.partialorder %v730, 0.0
  %vm744 = vcmp.ge.f32.partialorder %v731, 0.0
  %vm745 = vcmp.ge.f32.partialorder %v732, 0.0
  %vm746 = vcmp.ge.f32.partialorder %v733, 0.0
  %vm747 = vcmp.ge.f32.partialorder %v734, 0.0
  %vm748 = vcmp.ge.f32.partialorder %v735, 0.0
  %vm749 = vcmp.ge.f32.partialorder %v736, 0.0
  %v750 = vmul.f32 %v724, 0.2
  %v751 = vmul.f32 %v725, 0.2
  %v752 = vmul.f32 %v726, 0.2
  %v753 = vmul.f32 %v727, 0.2
  %v754 = vmul.f32 %v728, 0.2
  %v755 = vmul.f32 %v729, 0.2
  %v756 = vmul.f32 %v730, 0.2
  %v757 = vmul.f32 %v731, 0.2
  %v758 = vmul.f32 %v732, 0.2
  %v759 = vmul.f32 %v733, 0.2
  %v760 = vmul.f32 %v734, 0.2
  %v761 = vmul.f32 %v735, 0.2
  %v762 = vmul.f32 %v736, 0.2
  %v763 = vsel %vm737, %v724, %v750
  %v764 = vsel %vm738, %v725, %v751
  %v765 = vsel %vm739, %v726, %v752
  %v766 = vsel %vm740, %v727, %v753
  %v767 = vsel %vm741, %v728, %v754
  %v768 = vsel %vm742, %v729, %v755
  %v769 = vsel %vm743, %v730, %v756
  %v770 = vsel %vm744, %v731, %v757
  %v771 = vsel %vm745, %v732, %v758
  %v772 = vsel %vm746, %v733, %v759
  %v773 = vsel %vm747, %v734, %v760
  %v774 = vsel %vm748, %v735, %v761
  %v775 = vsel %vm749, %v736, %v762
  %v776 = vpack.c.bf16 %v764, %v763
  %v777 = vpack.c.bf16 %v766, %v765
  %v778 = vpack.c.bf16 %v768, %v767
  %v779 = vpack.c.bf16 %v770, %v769
  %v780 = vpack.c.bf16 %v772, %v771
  %v781 = vpack.c.bf16 %v774, %v773
  %v782 = vpack.c.bf16 %v775, %v775
  %v790 = vunpack.c.l.b16 %v776
  %v791 = vunpack.c.h.b16 %v776
  %v792 = vunpack.c.l.b16 %v777
  %v793 = vunpack.c.h.b16 %v777
  %v794 = vunpack.c.l.b16 %v778
  %v795 = vunpack.c.h.b16 %v778
  %v796 = vunpack.c.l.b16 %v779
  %v797 = vunpack.c.h.b16 %v779
  %v798 = vunpack.c.l.b16 %v780
  %v799 = vunpack.c.h.b16 %v780
  %v800 = vunpack.c.l.b16 %v781
  %v801 = vunpack.c.h.b16 %v781
  %v802 = vunpack.c.l.b16 %v782
  %v803 = vpack.c.b16 %v790, %v790
  %v804 = vpack.c.b16 %v791, %v791
  %v805 = vpack.c.b16 %v792, %v792
  %v806 = vpack.c.b16 %v793, %v793
  %v807 = vpack.c.b16 %v794, %v794
  %v808 = vpack.c.b16 %v795, %v795
  %v809 = vpack.c.b16 %v796, %v796
  %v810 = vpack.c.b16 %v797, %v797
  %v811 = vpack.c.b16 %v798, %v798
  %v812 = vpack.c.b16 %v799, %v799
  %v813 = vpack.c.b16 %v800, %v800
  %v814 = vpack.c.b16 %v801, %v801
  %v815 = vpack.c.b16 %v802, %v802
  %vm829 = vcmask 519168
  %830 = vst.msk [vmem:[%s4] sm:$0xf] %vm829, %v803
  %831 = vst.msk [vmem:[%s4 + $0x4] sm:$0xf] %vm829, %v804
  %832 = vst.msk [vmem:[%s4 + $0x8] sm:$0xf] %vm829, %v805
  %833 = vst.msk [vmem:[%s4 + $0xc] sm:$0xf] %vm829, %v806
  %834 = vst.msk [vmem:[%s4 + $0x10] sm:$0xf] %vm829, %v807
  %835 = vst.msk [vmem:[%s4 + $0x14] sm:$0xf] %vm829, %v808
  %836 = vst.msk [vmem:[%s4 + $0x18] sm:$0xf] %vm829, %v809
  %837 = vst.msk [vmem:[%s4 + $0x1c] sm:$0xf] %vm829, %v810
  %838 = vst.msk [vmem:[%s4 + $0x20] sm:$0xf] %vm829, %v811
  %839 = vst.msk [vmem:[%s4 + $0x24] sm:$0xf] %vm829, %v812
  %840 = vst.msk [vmem:[%s4 + $0x28] sm:$0xf] %vm829, %v813
  %841 = vst.msk [vmem:[%s4 + $0x2c] sm:$0xf] %vm829, %v814
  %vm842 = vcmask 516096
  %843 = vst.msk [vmem:[%s4 + $0x30] sm:$0x1] %vm842, %v815
  // Predicated region
  $region18: #{simple_c_discriminator_forward.4} parent=0 // pred_check
    _
  $region19: #{simple_c_discriminator_forward.4} parent=0 // pred_check_branch
    %845 = sbr.rel (0) target = $region21
  $region20: #{simple_c_discriminator_forward.4} parent=0 // pred_region
    _
  $region21: #{simple_c_discriminator_forward.4} parent=0 // pred_fallthru
    _
  // Predicated region
  $region22: #{simple_c_discriminator_forward.4} parent=0 // pred_check
    _
  $region23: #{simple_c_discriminator_forward.4} parent=0 // pred_check_branch
    %847 = sbr.rel (0) target = $region25
  $region24: #{simple_c_discriminator_forward.4} parent=0 // pred_region
    _
  $region25: #{simple_c_discriminator_forward.4} parent=0 // pred_fallthru
    _

// kernel: simple_c_discriminator_forward.5
$region0: #{simple_c_discriminator_forward.5}
  #allocation0 [shape = 'u32[]', space=smem, size = 0x4, offset = 0x4, fixed_abs, tag = 'smem constant byte address 0x4 - core index']
  #allocation1 [shape = 'u32[144,128]{1,0:T(1,128)}', space=vmem, size = 0x12000, scoped, tag = 'internal scratch']
  #allocation2 [shape = 'f32[32,128]{1,0:T(8,128)}', space=vmem, size = 0x4000, scoped, tag = 'scratch operand']
  #allocation3 [shape = 'f32[1,1]{1,0:T(1,128)S(1)}', space=vmem, size = 0x200, scoped, tag = 'scoped memory for simple_c_discriminator_forward.5']
  %s0 = inlined_call_operand.vmem [shape: bf16[32,576], index: 0, kind: input, shape index: {}]
  %s1 = inlined_call_operand.vmem [shape: bf16[2,10], index: 1, kind: input, shape index: {}]
  %s2 = inlined_call_operand.vmem [shape: bf16[576,128], index: 2, kind: input, shape index: {}]
  %s3 = inlined_call_operand.vmem [shape: f32[1,128], index: 3, kind: input, shape index: {}]
  %s4 = inlined_call_operand.vmem [shape: f32[1,128], index: 4, kind: input, shape index: {}]
  %s5 = inlined_call_operand.vmem [shape: bf16[2048,256], index: 5, kind: input, shape index: {}]
  %s6 = inlined_call_operand.vmem [shape: f32[1,256], index: 6, kind: input, shape index: {}]
  %s7 = inlined_call_operand.vmem [shape: f32[1,256], index: 7, kind: input, shape index: {}]
  %s8 = inlined_call_operand.vmem [shape: bf16[256,64], index: 8, kind: input, shape index: {}]
  %s9 = inlined_call_operand.vmem [shape: f32[1,64], index: 9, kind: input, shape index: {}]
  %s10 = inlined_call_operand.vmem [shape: bf16[64,64], index: 10, kind: input, shape index: {}]
  %s11 = inlined_call_operand.vmem [shape: bf16[10,64], index: 11, kind: input, shape index: {}]
  %s12 = inlined_call_operand.vmem [shape: f32[1,64], index: 12, kind: input, shape index: {}]
  %s13 = inlined_call_operand.vmem [shape: bf16[64,1], index: 13, kind: input, shape index: {}]
  %s14 = inlined_call_operand.<no memory space> [shape: f32[1,1], index: 14, kind: input, shape index: {}]
  %s15 = inlined_call_operand.vmem [shape: f32[2,1], index: 15, kind: output, shape index: {}]
  %s16 = sld [smem:[#allocation0]]
  $region70: #{simple_c_discriminator_forward.5} parent=0
    _
  %s18 = ssub.s32 1, %s16
  %s19 = scalar_select 0, %s18, %s16
  %v20 = vstv %s14
  %21 = vst [vmem:[#allocation3] sm:$0x1] %v20
  // Predicated region
  $region2: #{simple_c_discriminator_forward.5} parent=0 // pred_check
    _
  $region3: #{simple_c_discriminator_forward.5} parent=0 // pred_check_branch
    %23 = sbr.rel (0) target = $region5
  $region4: #{simple_c_discriminator_forward.5} parent=0 // pred_region
    _
  $region5: #{simple_c_discriminator_forward.5} parent=0 // pred_fallthru
    _
  // Predicated region
  $region6: #{simple_c_discriminator_forward.5} parent=0 // pred_check
    _
  $region7: #{simple_c_discriminator_forward.5} parent=0 // pred_check_branch
    %25 = sbr.rel (0) target = $region9
  $region8: #{simple_c_discriminator_forward.5} parent=0 // pred_region
    _
  $region9: #{simple_c_discriminator_forward.5} parent=0 // pred_fallthru
    _
  // Predicated region
  $region10: #{simple_c_discriminator_forward.5} parent=0 // pred_check
    _
  $region11: #{simple_c_discriminator_forward.5} parent=0 // pred_check_branch
    %27 = sbr.rel (0) target = $region13
  $region12: #{simple_c_discriminator_forward.5} parent=0 // pred_region
    _
  $region13: #{simple_c_discriminator_forward.5} parent=0 // pred_fallthru
    _
  // Predicated region
  $region14: #{simple_c_discriminator_forward.5} parent=0 // pred_check
    _
  $region15: #{simple_c_discriminator_forward.5} parent=0 // pred_check_branch
    %29 = sbr.rel (0) target = $region17
  $region16: #{simple_c_discriminator_forward.5} parent=0 // pred_region
    _
  $region17: #{simple_c_discriminator_forward.5} parent=0 // pred_fallthru
    _
  // Predicated region
  $region18: #{simple_c_discriminator_forward.5} parent=0 // pred_check
    _
  $region19: #{simple_c_discriminator_forward.5} parent=0 // pred_check_branch
    %31 = sbr.rel (0) target = $region21
  $region20: #{simple_c_discriminator_forward.5} parent=0 // pred_region
    _
  $region21: #{simple_c_discriminator_forward.5} parent=0 // pred_fallthru
    _
  // Predicated region
  $region22: #{simple_c_discriminator_forward.5} parent=0 // pred_check
    _
  $region23: #{simple_c_discriminator_forward.5} parent=0 // pred_check_branch
    %33 = sbr.rel (0) target = $region25
  $region24: #{simple_c_discriminator_forward.5} parent=0 // pred_region
    _
  $region25: #{simple_c_discriminator_forward.5} parent=0 // pred_fallthru
    _
  // Predicated region
  $region26: #{simple_c_discriminator_forward.5} parent=0 // pred_check
    _
  $region27: #{simple_c_discriminator_forward.5} parent=0 // pred_check_branch
    %35 = sbr.rel (0) target = $region29
  $region28: #{simple_c_discriminator_forward.5} parent=0 // pred_region
    _
  $region29: #{simple_c_discriminator_forward.5} parent=0 // pred_fallthru
    _
  // Predicated region
  $region30: #{simple_c_discriminator_forward.5} parent=0 // pred_check
    _
  $region31: #{simple_c_discriminator_forward.5} parent=0 // pred_check_branch
    %37 = sbr.rel (0) target = $region33
  $region32: #{simple_c_discriminator_forward.5} parent=0 // pred_region
    _
  $region33: #{simple_c_discriminator_forward.5} parent=0 // pred_fallthru
    _
  // Predicated region
  $region34: #{simple_c_discriminator_forward.5} parent=0 // pred_check
    _
  $region35: #{simple_c_discriminator_forward.5} parent=0 // pred_check_branch
    %39 = sbr.rel (0) target = $region37
  $region36: #{simple_c_discriminator_forward.5} parent=0 // pred_region
    _
  $region37: #{simple_c_discriminator_forward.5} parent=0 // pred_fallthru
    _
  // Predicated region
  $region38: #{simple_c_discriminator_forward.5} parent=0 // pred_check
    _
  $region39: #{simple_c_discriminator_forward.5} parent=0 // pred_check_branch
    %41 = sbr.rel (0) target = $region41
  $region40: #{simple_c_discriminator_forward.5} parent=0 // pred_region
    _
  $region41: #{simple_c_discriminator_forward.5} parent=0 // pred_fallthru
    _
  // Predicated region
  $region42: #{simple_c_discriminator_forward.5} parent=0 // pred_check
    _
  $region43: #{simple_c_discriminator_forward.5} parent=0 // pred_check_branch
    %43 = sbr.rel (0) target = $region45
  $region44: #{simple_c_discriminator_forward.5} parent=0 // pred_region
    _
  $region45: #{simple_c_discriminator_forward.5} parent=0 // pred_fallthru
    _
  // Predicated region
  $region46: #{simple_c_discriminator_forward.5} parent=0 // pred_check
    _
  $region47: #{simple_c_discriminator_forward.5} parent=0 // pred_check_branch
    %45 = sbr.rel (0) target = $region49
  $region48: #{simple_c_discriminator_forward.5} parent=0 // pred_region
    _
  $region49: #{simple_c_discriminator_forward.5} parent=0 // pred_fallthru
    _
  // Predicated region
  $region50: #{simple_c_discriminator_forward.5} parent=0 // pred_check
    _
  $region51: #{simple_c_discriminator_forward.5} parent=0 // pred_check_branch
    %47 = sbr.rel (0) target = $region53
  $region52: #{simple_c_discriminator_forward.5} parent=0 // pred_region
    _
  $region53: #{simple_c_discriminator_forward.5} parent=0 // pred_fallthru
    _
  // Predicated region
  $region54: #{simple_c_discriminator_forward.5} parent=0 // pred_check
    _
  $region55: #{simple_c_discriminator_forward.5} parent=0 // pred_check_branch
    %49 = sbr.rel (0) target = $region57
  $region56: #{simple_c_discriminator_forward.5} parent=0 // pred_region
    _
  $region57: #{simple_c_discriminator_forward.5} parent=0 // pred_fallthru
    _
  // Predicated region
  $region58: #{simple_c_discriminator_forward.5} parent=0 // pred_check
    _
  $region59: #{simple_c_discriminator_forward.5} parent=0 // pred_check_branch
    %51 = sbr.rel (0) target = $region61
  $region60: #{simple_c_discriminator_forward.5} parent=0 // pred_region
    _
  $region61: #{simple_c_discriminator_forward.5} parent=0 // pred_fallthru
    _
  %v53 = vld [vmem:[%s0] sm:$0xff]
  %v54 = vld [vmem:[%s0 + $0x8] sm:$0xff]
  %v55 = vld [vmem:[%s0 + $0x10] sm:$0xf]
  %v56 = vld [vmem:[%s0 + $0x14] sm:$0xff]
  %v57 = vld [vmem:[%s0 + $0x1c] sm:$0xff]
  %v58 = vld [vmem:[%s0 + $0x24] sm:$0xf]
  %v59 = vld [vmem:[%s0 + $0x28] sm:$0xff]
  %v60 = vld [vmem:[%s0 + $0x30] sm:$0xff]
  %v61 = vld [vmem:[%s0 + $0x38] sm:$0xf]
  %v62 = vld [vmem:[%s0 + $0x3c] sm:$0xff]
  %v63 = vld [vmem:[%s0 + $0x44] sm:$0xff]
  %v64 = vld [vmem:[%s0 + $0x4c] sm:$0xf]
  %v65 = vld [vmem:[%s2] sm:$0xf]
  %v66 = vld [vmem:[%s2 + $0x4] sm:$0xf]
  %v67 = vld [vmem:[%s2 + $0x8] sm:$0xf]
  %v68 = vld [vmem:[%s2 + $0xc] sm:$0xf]
  %v69 = vld [vmem:[%s2 + $0x10] sm:$0xf]
  %v70 = vld [vmem:[%s2 + $0x14] sm:$0xf]
  %v71 = vld [vmem:[%s2 + $0x18] sm:$0xf]
  %v72 = vld [vmem:[%s2 + $0x1c] sm:$0xf]
  %v73 = vld [vmem:[%s2 + $0x20] sm:$0xf]
  %v74 = vld [vmem:[%s2 + $0x24] sm:$0xf]
  %v75 = vld [vmem:[%s2 + $0x28] sm:$0xf]
  %v76 = vld [vmem:[%s2 + $0x2c] sm:$0xf]
  %v77 = vld [vmem:[%s2 + $0x30] sm:$0xf]
  %v78 = vld [vmem:[%s2 + $0x34] sm:$0xf]
  %v79 = vld [vmem:[%s2 + $0x38] sm:$0xf]
  %v80 = vld [vmem:[%s2 + $0x3c] sm:$0xf]
  %v81 = vld [vmem:[%s2 + $0x40] sm:$0xf]
  %v82 = vld [vmem:[%s2 + $0x44] sm:$0xf]
  %v83 = vld [vmem:[%s2 + $0x48] sm:$0xf]
  %v84 = vld [vmem:[%s2 + $0x4c] sm:$0xf]
  %v85 = vld [vmem:[%s2 + $0x50] sm:$0xf]
  %v86 = vld [vmem:[%s2 + $0x54] sm:$0xf]
  %v87 = vld [vmem:[%s2 + $0x58] sm:$0xf]
  %v88 = vld [vmem:[%s2 + $0x5c] sm:$0xf]
  %v89 = vld [vmem:[%s2 + $0x60] sm:$0xf]
  %v90 = vld [vmem:[%s2 + $0x64] sm:$0xf]
  %v91 = vld [vmem:[%s2 + $0x68] sm:$0xf]
  %v92 = vld [vmem:[%s2 + $0x6c] sm:$0xf]
  %v93 = vld [vmem:[%s2 + $0x70] sm:$0xf]
  %v94 = vld [vmem:[%s2 + $0x74] sm:$0xf]
  %v95 = vld [vmem:[%s2 + $0x78] sm:$0xf]
  %v96 = vld [vmem:[%s2 + $0x7c] sm:$0xf]
  %v97 = vld [vmem:[%s2 + $0x80] sm:$0xf]
  %v98 = vld [vmem:[%s2 + $0x84] sm:$0xf]
  %v99 = vld [vmem:[%s2 + $0x88] sm:$0xf]
  %v100 = vld [vmem:[%s2 + $0x8c] sm:$0xf]
  %v101 = vld [vmem:[%s2 + $0x90] sm:$0xf]
  %v102 = vld [vmem:[%s2 + $0x94] sm:$0xf]
  %v103 = vld [vmem:[%s2 + $0x98] sm:$0xf]
  %v104 = vld [vmem:[%s2 + $0x9c] sm:$0xf]
  %v105 = vld [vmem:[%s2 + $0xa0] sm:$0xf]
  %v106 = vld [vmem:[%s2 + $0xa4] sm:$0xf]
  %v107 = vld [vmem:[%s2 + $0xa8] sm:$0xf]
  %v108 = vld [vmem:[%s2 + $0xac] sm:$0xf]
  %v109 = vld [vmem:[%s2 + $0xb0] sm:$0xf]
  %v110 = vld [vmem:[%s2 + $0xb4] sm:$0xf]
  %v111 = vld [vmem:[%s2 + $0xb8] sm:$0xf]
  %v112 = vld [vmem:[%s2 + $0xbc] sm:$0xf]
  %v113 = vld [vmem:[%s2 + $0xc0] sm:$0xf]
  %v114 = vld [vmem:[%s2 + $0xc4] sm:$0xf]
  %v115 = vld [vmem:[%s2 + $0xc8] sm:$0xf]
  %v116 = vld [vmem:[%s2 + $0xcc] sm:$0xf]
  %v117 = vld [vmem:[%s2 + $0xd0] sm:$0xf]
  %v118 = vld [vmem:[%s2 + $0xd4] sm:$0xf]
  %v119 = vld [vmem:[%s2 + $0xd8] sm:$0xf]
  %v120 = vld [vmem:[%s2 + $0xdc] sm:$0xf]
  %v121 = vld [vmem:[%s2 + $0xe0] sm:$0xf]
  %v122 = vld [vmem:[%s2 + $0xe4] sm:$0xf]
  %v123 = vld [vmem:[%s2 + $0xe8] sm:$0xf]
  %v124 = vld [vmem:[%s2 + $0xec] sm:$0xf]
  %v125 = vld [vmem:[%s2 + $0xf0] sm:$0xf]
  %v126 = vld [vmem:[%s2 + $0xf4] sm:$0xf]
  %v127 = vld [vmem:[%s2 + $0xf8] sm:$0xf]
  %v128 = vld [vmem:[%s2 + $0xfc] sm:$0xf]
  %v129 = vld [vmem:[%s2 + $0x100] sm:$0xf]
  %v130 = vld [vmem:[%s2 + $0x104] sm:$0xf]
  %v131 = vld [vmem:[%s2 + $0x108] sm:$0xf]
  %v132 = vld [vmem:[%s2 + $0x10c] sm:$0xf]
  %v133 = vld [vmem:[%s2 + $0x110] sm:$0xf]
  %v134 = vld [vmem:[%s2 + $0x114] sm:$0xf]
  %v135 = vld [vmem:[%s2 + $0x118] sm:$0xf]
  %v136 = vld [vmem:[%s2 + $0x11c] sm:$0xf]
  %v149 = vunpack.c.l.b16 %v53
  %v150 = vunpack.c.h.b16 %v53
  %v151 = vunpack.c.l.b16 %v54
  %v152 = vunpack.c.h.b16 %v54
  %v153 = vunpack.c.l.b16 %v55
  %v154 = vunpack.c.l.b16 %v56
  %v155 = vunpack.c.h.b16 %v56
  %v156 = vunpack.c.l.b16 %v57
  %v157 = vunpack.c.h.b16 %v57
  %v158 = vunpack.c.l.b16 %v58
  %v159 = vunpack.c.l.b16 %v59
  %v160 = vunpack.c.h.b16 %v59
  %v161 = vunpack.c.l.b16 %v60
  %v162 = vunpack.c.h.b16 %v60
  %v163 = vunpack.c.l.b16 %v61
  %v164 = vunpack.c.l.b16 %v62
  %v165 = vunpack.c.h.b16 %v62
  %v166 = vunpack.c.l.b16 %v63
  %v167 = vunpack.c.h.b16 %v63
  %v168 = vunpack.c.l.b16 %v64
  %v169 = vpack.c.b16 %v154, %v149
  %v170 = vpack.c.b16 %v155, %v150
  %v171 = vpack.c.b16 %v156, %v151
  %v172 = vpack.c.b16 %v157, %v152
  %v173 = vpack.c.b16 %v158, %v153
  %v174 = vpack.c.b16 %v164, %v159
  %v175 = vpack.c.b16 %v165, %v160
  %v176 = vpack.c.b16 %v166, %v161
  %v177 = vpack.c.b16 %v167, %v162
  %v178 = vpack.c.b16 %v168, %v163
  %v259 = vunpack.c.l.b16 %v65
  %v260 = vunpack.c.l.b16 %v66
  %v261 = vunpack.c.l.b16 %v67
  %v262 = vunpack.c.l.b16 %v68
  %v263 = vunpack.c.l.b16 %v69
  %v264 = vunpack.c.l.b16 %v70
  %v265 = vunpack.c.l.b16 %v71
  %v266 = vunpack.c.l.b16 %v72
  %v267 = vunpack.c.l.b16 %v73
  %v268 = vunpack.c.l.b16 %v74
  %v269 = vunpack.c.l.b16 %v75
  %v270 = vunpack.c.l.b16 %v76
  %v271 = vunpack.c.l.b16 %v77
  %v272 = vunpack.c.l.b16 %v78
  %v273 = vunpack.c.l.b16 %v79
  %v274 = vunpack.c.l.b16 %v80
  %v275 = vunpack.c.l.b16 %v81
  %v276 = vunpack.c.l.b16 %v82
  %v277 = vunpack.c.l.b16 %v83
  %v278 = vunpack.c.l.b16 %v84
  %v279 = vunpack.c.l.b16 %v85
  %v280 = vunpack.c.l.b16 %v86
  %v281 = vunpack.c.l.b16 %v87
  %v282 = vunpack.c.l.b16 %v88
  %v283 = vunpack.c.l.b16 %v89
  %v284 = vunpack.c.l.b16 %v90
  %v285 = vunpack.c.l.b16 %v91
  %v286 = vunpack.c.l.b16 %v92
  %v287 = vunpack.c.l.b16 %v93
  %v288 = vunpack.c.l.b16 %v94
  %v289 = vunpack.c.l.b16 %v95
  %v290 = vunpack.c.l.b16 %v96
  %v291 = vunpack.c.l.b16 %v97
  %v292 = vunpack.c.l.b16 %v98
  %v293 = vunpack.c.l.b16 %v99
  %v294 = vunpack.c.l.b16 %v100
  %v295 = vunpack.c.l.b16 %v101
  %v296 = vunpack.c.l.b16 %v102
  %v297 = vunpack.c.l.b16 %v103
  %v298 = vunpack.c.l.b16 %v104
  %v299 = vunpack.c.l.b16 %v105
  %v300 = vunpack.c.l.b16 %v106
  %v301 = vunpack.c.l.b16 %v107
  %v302 = vunpack.c.l.b16 %v108
  %v303 = vunpack.c.l.b16 %v109
  %v304 = vunpack.c.l.b16 %v110
  %v305 = vunpack.c.l.b16 %v111
  %v306 = vunpack.c.l.b16 %v112
  %v307 = vunpack.c.l.b16 %v113
  %v308 = vunpack.c.l.b16 %v114
  %v309 = vunpack.c.l.b16 %v115
  %v310 = vunpack.c.l.b16 %v116
  %v311 = vunpack.c.l.b16 %v117
  %v312 = vunpack.c.l.b16 %v118
  %v313 = vunpack.c.l.b16 %v119
  %v314 = vunpack.c.l.b16 %v120
  %v315 = vunpack.c.l.b16 %v121
  %v316 = vunpack.c.l.b16 %v122
  %v317 = vunpack.c.l.b16 %v123
  %v318 = vunpack.c.l.b16 %v124
  %v319 = vunpack.c.l.b16 %v125
  %v320 = vunpack.c.l.b16 %v126
  %v321 = vunpack.c.l.b16 %v127
  %v322 = vunpack.c.l.b16 %v128
  %v323 = vunpack.c.l.b16 %v129
  %v324 = vunpack.c.l.b16 %v130
  %v325 = vunpack.c.l.b16 %v131
  %v326 = vunpack.c.l.b16 %v132
  %v327 = vunpack.c.l.b16 %v133
  %v328 = vunpack.c.l.b16 %v134
  %v329 = vunpack.c.l.b16 %v135
  %v330 = vunpack.c.l.b16 %v136
  %v331 = vpack.c.b16 %v260, %v259
  %v332 = vpack.c.b16 %v262, %v261
  %v333 = vpack.c.b16 %v264, %v263
  %v334 = vpack.c.b16 %v266, %v265
  %v335 = vpack.c.b16 %v268, %v267
  %v336 = vpack.c.b16 %v270, %v269
  %v337 = vpack.c.b16 %v272, %v271
  %v338 = vpack.c.b16 %v274, %v273
  %v339 = vpack.c.b16 %v276, %v275
  %v340 = vpack.c.b16 %v278, %v277
  %v341 = vpack.c.b16 %v280, %v279
  %v342 = vpack.c.b16 %v282, %v281
  %v343 = vpack.c.b16 %v284, %v283
  %v344 = vpack.c.b16 %v286, %v285
  %v345 = vpack.c.b16 %v288, %v287
  %v346 = vpack.c.b16 %v290, %v289
  %v347 = vpack.c.b16 %v292, %v291
  %v348 = vpack.c.b16 %v294, %v293
  %v349 = vpack.c.b16 %v296, %v295
  %v350 = vpack.c.b16 %v298, %v297
  %v351 = vpack.c.b16 %v300, %v299
  %v352 = vpack.c.b16 %v302, %v301
  %v353 = vpack.c.b16 %v304, %v303
  %v354 = vpack.c.b16 %v306, %v305
  %v355 = vpack.c.b16 %v308, %v307
  %v356 = vpack.c.b16 %v310, %v309
  %v357 = vpack.c.b16 %v312, %v311
  %v358 = vpack.c.b16 %v314, %v313
  %v359 = vpack.c.b16 %v316, %v315
  %v360 = vpack.c.b16 %v318, %v317
  %v361 = vpack.c.b16 %v320, %v319
  %v362 = vpack.c.b16 %v322, %v321
  %v363 = vpack.c.b16 %v324, %v323
  %v364 = vpack.c.b16 %v326, %v325
  %v365 = vpack.c.b16 %v328, %v327
  %v366 = vpack.c.b16 %v330, %v329
  %vm403 = vcmask 523264
  %v405 = vsel %vm403, %v173, 0
  %v408 = vsel %vm403, %v178, 0
  %410 = vmatprep.subr.bf16.mxu0 0
  %411 = vmatpush1.bf16.msra.mxu0 %v331
  %412 = vmatprep.subr.bf16.mxu0 0
  %413 = vmatpush1.bf16.msra.mxu0 %v332
  %414 = vmatprep.subr.bf16.mxu0 0
  %415 = vmatpush1.bf16.msra.mxu0 %v333
  %416 = vmatprep.subr.bf16.mxu0 0
  %417 = vmatpush1.bf16.msra.mxu0 %v334
  %418 = vmatprep.subr.bf16.mxu0 0
  %419 = vmatpush1.bf16.msra.mxu0 %v335
  %420 = vmatprep.subr.bf16.mxu0 0
  %421 = vmatpush1.bf16.msra.mxu0 %v336
  %422 = vmatprep.subr.bf16.mxu0 0
  %423 = vmatpush1.bf16.msra.mxu0 %v337
  %424 = vmatprep.subr.bf16.mxu0 0
  %425 = vmatpush1.bf16.msra.mxu0 %v338
  %426 = vmatprep.subr.bf16.mxu0 0
  %427 = vmatpush1.bf16.msra.mxu0 %v339
  %428 = vmatprep.subr.bf16.mxu0 0
  %429 = vmatpush1.bf16.msra.mxu0 %v340
  %430 = vmatprep.subr.bf16.mxu0 0
  %431 = vmatpush1.bf16.msra.mxu0 %v341
  %432 = vmatprep.subr.bf16.mxu0 0
  %433 = vmatpush1.bf16.msra.mxu0 %v342
  %434 = vmatprep.subr.bf16.mxu0 0
  %435 = vmatpush1.bf16.msra.mxu0 %v343
  %436 = vmatprep.subr.bf16.mxu0 0
  %437 = vmatpush1.bf16.msra.mxu0 %v344
  %438 = vmatprep.subr.bf16.mxu0 0
  %439 = vmatpush1.bf16.msra.mxu0 %v345
  %440 = vmatprep.subr.bf16.mxu0 0
  %441 = vmatpush1.bf16.msra.mxu0 %v346
  %442 = vmatprep.mubr.bf16.mxu0 %v170
  %443 = vmatmul.mubr.bf16.gmra.mrb[0].mxu0 %v169
  %v444 = vpop.f32.mrb[0].mxu0
  %v445 = vadd.f32 0.0, %v444
  %v446 = vpop.f32.mrb[0].mxu0
  %v447 = vpop.f32.mrb[0].mxu0
  %v448 = vadd.f32 0.0, %v447
  %v449 = vpop.f32.mrb[0].mxu0
  %450 = vmatprep.mubr.bf16.mxu0 %v175
  %451 = vmatmul.mubr.bf16.gmra.mrb[0].mxu0 %v174
  %v452 = vpop.f32.mrb[0].mxu0
  %v453 = vadd.f32 0.0, %v452
  %v454 = vpop.f32.mrb[0].mxu0
  %v455 = vpop.f32.mrb[0].mxu0
  %v456 = vadd.f32 0.0, %v455
  %v457 = vpop.f32.mrb[0].mxu0
  %458 = vdwg.mxu0
  %459 = vmatprep.subr.bf16.mxu0 0
  %460 = vmatpush1.bf16.msra.mxu0 %v347
  %461 = vmatprep.subr.bf16.mxu0 0
  %462 = vmatpush1.bf16.msra.mxu0 %v348
  %463 = vmatprep.subr.bf16.mxu0 0
  %464 = vmatpush1.bf16.msra.mxu0 %v349
  %465 = vmatprep.subr.bf16.mxu0 0
  %466 = vmatpush1.bf16.msra.mxu0 %v350
  %467 = vmatprep.subr.bf16.mxu0 0
  %468 = vmatpush1.bf16.msra.mxu0 %v351
  %469 = vmatprep.subr.bf16.mxu0 0
  %470 = vmatpush1.bf16.msra.mxu0 %v352
  %471 = vmatprep.subr.bf16.mxu0 0
  %472 = vmatpush1.bf16.msra.mxu0 %v353
  %473 = vmatprep.subr.bf16.mxu0 0
  %474 = vmatpush1.bf16.msra.mxu0 %v354
  %475 = vmatprep.subr.bf16.mxu0 0
  %476 = vmatpush1.bf16.msra.mxu0 %v355
  %477 = vmatprep.subr.bf16.mxu0 0
  %478 = vmatpush1.bf16.msra.mxu0 %v356
  %479 = vmatprep.subr.bf16.mxu0 0
  %480 = vmatpush1.bf16.msra.mxu0 %v357
  %481 = vmatprep.subr.bf16.mxu0 0
  %482 = vmatpush1.bf16.msra.mxu0 %v358
  %483 = vmatprep.subr.bf16.mxu0 0
  %484 = vmatpush1.bf16.msra.mxu0 %v359
  %485 = vmatprep.subr.bf16.mxu0 0
  %486 = vmatpush1.bf16.msra.mxu0 %v360
  %487 = vmatprep.subr.bf16.mxu0 0
  %488 = vmatpush1.bf16.msra.mxu0 %v361
  %489 = vmatprep.subr.bf16.mxu0 0
  %490 = vmatpush1.bf16.msra.mxu0 %v362
  %491 = vmatprep.mubr.bf16.mxu0 %v172
  %492 = vmatmul.mubr.bf16.gmra.mrb[0].mxu0 %v171
  %v493 = vpop.f32.mrb[0].mxu0
  %v494 = vadd.f32 %v445, %v493
  %v495 = vpop.f32.mrb[0].mxu0
  %v496 = vpop.f32.mrb[0].mxu0
  %v497 = vadd.f32 %v448, %v496
  %v498 = vpop.f32.mrb[0].mxu0
  %499 = vmatprep.mubr.bf16.mxu0 %v177
  %500 = vmatmul.mubr.bf16.gmra.mrb[0].mxu0 %v176
  %v501 = vpop.f32.mrb[0].mxu0
  %v502 = vadd.f32 %v453, %v501
  %v503 = vpop.f32.mrb[0].mxu0
  %v504 = vpop.f32.mrb[0].mxu0
  %v505 = vadd.f32 %v456, %v504
  %v506 = vpop.f32.mrb[0].mxu0
  %507 = vdwg.mxu0
  %508 = vmatprep.subr.bf16.mxu0 0
  %509 = vmatpush1.bf16.msra.mxu0 %v363
  %510 = vmatprep.subr.bf16.mxu0 0
  %511 = vmatpush1.bf16.msra.mxu0 %v364
  %512 = vmatprep.subr.bf16.mxu0 0
  %513 = vmatpush1.bf16.msra.mxu0 %v365
  %514 = vmatprep.subr.bf16.mxu0 0
  %515 = vmatpush1.bf16.msra.mxu0 %v366
  %516 = vmatprep.subr.bf16.mxu0 0
  %517 = vmatpush1.bf16.msra.mxu0 0
  %518 = vmatprep.subr.bf16.mxu0 0
  %519 = vmatpush1.bf16.msra.mxu0 0
  %520 = vmatprep.subr.bf16.mxu0 0
  %521 = vmatpush1.bf16.msra.mxu0 0
  %522 = vmatprep.subr.bf16.mxu0 0
  %523 = vmatpush1.bf16.msra.mxu0 0
  %524 = vmatprep.subr.bf16.mxu0 0
  %525 = vmatpush1.bf16.msra.mxu0 0
  %526 = vmatprep.subr.bf16.mxu0 0
  %527 = vmatpush1.bf16.msra.mxu0 0
  %528 = vmatprep.subr.bf16.mxu0 0
  %529 = vmatpush1.bf16.msra.mxu0 0
  %530 = vmatprep.subr.bf16.mxu0 0
  %531 = vmatpush1.bf16.msra.mxu0 0
  %532 = vmatprep.subr.bf16.mxu0 0
  %533 = vmatpush1.bf16.msra.mxu0 0
  %534 = vmatprep.subr.bf16.mxu0 0
  %535 = vmatpush1.bf16.msra.mxu0 0
  %536 = vmatprep.subr.bf16.mxu0 0
  %537 = vmatpush1.bf16.msra.mxu0 0
  %538 = vmatprep.subr.bf16.mxu0 0
  %539 = vmatpush1.bf16.msra.mxu0 0
  %540 = vmatprep.mubr.bf16.mxu0 0
  %541 = vmatmul.mubr.bf16.gmra.mrb[0].mxu0 %v405
  %v542 = vpop.f32.mrb[0].mxu0
  %v543 = vadd.f32 %v494, %v542
  %v544 = vpop.f32.mrb[0].mxu0
  %v545 = vpop.f32.mrb[0].mxu0
  %v546 = vadd.f32 %v497, %v545
  %v547 = vpop.f32.mrb[0].mxu0
  %548 = vmatprep.mubr.bf16.mxu0 0
  %549 = vmatmul.mubr.bf16.gmra.mrb[0].mxu0 %v408
  %v550 = vpop.f32.mrb[0].mxu0
  %v551 = vadd.f32 %v502, %v550
  %v552 = vpop.f32.mrb[0].mxu0
  %v553 = vpop.f32.mrb[0].mxu0
  %v554 = vadd.f32 %v505, %v553
  %v555 = vpop.f32.mrb[0].mxu0
  %556 = vdwg.mxu0
  %v557 = vadd.f32 %v543, %v546
  %v558 = vadd.f32 %v557, %v551
  %v559 = vadd.f32 %v558, %v554
  %v560 = vrot.slane %v559, 4
  %v561 = vadd.f32 %v559, %v560
  %v562 = vrot.slane %v561, 2
  %v563 = vadd.f32 %v561, %v562
  %v564 = vrot.slane %v563, 1
  %v565 = vadd.f32 %v563, %v564
  %v566 = vrcp.pop 32.0
  %v567 = vmul.f32 %v565, %v566
  %v568 = vmul.f32 %v543, %v543
  %v569 = vmul.f32 %v546, %v546
  %v570 = vmul.f32 %v551, %v551
  %v571 = vmul.f32 %v554, %v554
  %v572 = vadd.f32 %v568, %v569
  %v573 = vadd.f32 %v572, %v570
  %v574 = vadd.f32 %v573, %v571
  %v575 = vrot.slane %v574, 4
  %v576 = vadd.f32 %v574, %v575
  %v577 = vrot.slane %v576, 2
  %v578 = vadd.f32 %v576, %v577
  %v579 = vrot.slane %v578, 1
  %v580 = vadd.f32 %v578, %v579
  %v581 = vmul.f32 %v580, %v566
  %v582 = vmul.f32 %v567, %v567
  %v583 = vsub.f32 %v581, %v582
  %v584 = vld [vmem:[%s3] sm:$0x1]
  %v585 = vadd.f32 %v583, 1e-05
  %v586 = vrsqrt.pop %v585
  %v587 = vmul.f32 %v584, %v586
  %v589 = vlaneseq
  %v590 = vshrl.u32 %v589, 7
  %v591 = vsub.s32 0, %v590
  %v592 = vrot.slane %v587, %v591
  %v594 = vmul.f32 %v543, %v592
  %v595 = vmul.f32 %v546, %v592
  %v596 = vmul.f32 %v551, %v592
  %v597 = vmul.f32 %v554, %v592
  %v598 = vld [vmem:[%s4] sm:$0x1]
  %v599 = vmul.f32 %v567, %v587
  %v600 = vsub.f32 %v598, %v599
  %v602 = vlaneseq
  %v603 = vshrl.u32 %v602, 7
  %v604 = vsub.s32 0, %v603
  %v605 = vrot.slane %v600, %v604
  %v607 = vadd.f32 %v594, %v605
  %v608 = vadd.f32 %v595, %v605
  %v609 = vadd.f32 %v596, %v605
  %v610 = vadd.f32 %v597, %v605
  %vm611 = vcmp.ge.f32.partialorder %v607, 0.0
  %vm612 = vcmp.ge.f32.partialorder %v608, 0.0
  %vm613 = vcmp.ge.f32.partialorder %v609, 0.0
  %vm614 = vcmp.ge.f32.partialorder %v610, 0.0
  %v615 = vmul.f32 %v607, 0.2
  %v616 = vmul.f32 %v608, 0.2
  %v617 = vmul.f32 %v609, 0.2
  %v618 = vmul.f32 %v610, 0.2
  %v619 = vsel %vm611, %v607, %v615
  %v620 = vsel %vm612, %v608, %v616
  %v621 = vsel %vm613, %v609, %v617
  %v622 = vsel %vm614, %v610, %v618
  %623 = vst [vmem:[#allocation2] sm:$0xff] %v619
  %624 = vst [vmem:[#allocation2 + $0x8] sm:$0xff] %v620
  %625 = vst [vmem:[#allocation2 + $0x10] sm:$0xff] %v621
  %626 = vst [vmem:[#allocation2 + $0x18] sm:$0xff] %v622
  %v627 = vld [vmem:[#allocation2] sm:$0x3]
  %v628 = vpack.c.bf16 %v627, %v627
  %v629 = vld [vmem:[%s5] sm:$0xff]
  %v630 = vld [vmem:[%s5 + $0x8] sm:$0xff]
  %v631 = vld [vmem:[%s5 + $0x10] sm:$0xff]
  %v632 = vld [vmem:[%s5 + $0x18] sm:$0xff]
  %v633 = vld [vmem:[%s5 + $0x20] sm:$0xff]
  %v634 = vld [vmem:[%s5 + $0x28] sm:$0xff]
  %v635 = vld [vmem:[%s5 + $0x30] sm:$0xff]
  %v636 = vld [vmem:[%s5 + $0x38] sm:$0xff]
  %v637 = vld [vmem:[%s5 + $0x40] sm:$0xff]
  %v638 = vld [vmem:[%s5 + $0x48] sm:$0xff]
  %v639 = vld [vmem:[%s5 + $0x50] sm:$0xff]
  %v640 = vld [vmem:[%s5 + $0x58] sm:$0xff]
  %v641 = vld [vmem:[%s5 + $0x60] sm:$0xff]
  %v642 = vld [vmem:[%s5 + $0x68] sm:$0xff]
  %v643 = vld [vmem:[%s5 + $0x70] sm:$0xff]
  %v644 = vld [vmem:[%s5 + $0x78] sm:$0xff]
  %v645 = vld [vmem:[#allocation2 + $0x2] sm:$0x3]
  %v646 = vpack.c.bf16 %v645, %v645
  %v647 = vld [vmem:[%s5 + $0x80] sm:$0xff]
  %v648 = vld [vmem:[%s5 + $0x88] sm:$0xff]
  %v649 = vld [vmem:[%s5 + $0x90] sm:$0xff]
  %v650 = vld [vmem:[%s5 + $0x98] sm:$0xff]
  %v651 = vld [vmem:[%s5 + $0xa0] sm:$0xff]
  %v652 = vld [vmem:[%s5 + $0xa8] sm:$0xff]
  %v653 = vld [vmem:[%s5 + $0xb0] sm:$0xff]
  %v654 = vld [vmem:[%s5 + $0xb8] sm:$0xff]
  %v655 = vld [vmem:[%s5 + $0xc0] sm:$0xff]
  %v656 = vld [vmem:[%s5 + $0xc8] sm:$0xff]
  %v657 = vld [vmem:[%s5 + $0xd0] sm:$0xff]
  %v658 = vld [vmem:[%s5 + $0xd8] sm:$0xff]
  %v659 = vld [vmem:[%s5 + $0xe0] sm:$0xff]
  %v660 = vld [vmem:[%s5 + $0xe8] sm:$0xff]
  %v661 = vld [vmem:[%s5 + $0xf0] sm:$0xff]
  %v662 = vld [vmem:[%s5 + $0xf8] sm:$0xff]
  %v679 = vunpack.c.l.b16 %v647
  %v680 = vunpack.c.h.b16 %v647
  %v681 = vunpack.c.l.b16 %v648
  %v682 = vunpack.c.h.b16 %v648
  %v683 = vunpack.c.l.b16 %v649
  %v684 = vunpack.c.h.b16 %v649
  %v685 = vunpack.c.l.b16 %v650
  %v686 = vunpack.c.h.b16 %v650
  %v687 = vunpack.c.l.b16 %v651
  %v688 = vunpack.c.h.b16 %v651
  %v689 = vunpack.c.l.b16 %v652
  %v690 = vunpack.c.h.b16 %v652
  %v691 = vunpack.c.l.b16 %v653
  %v692 = vunpack.c.h.b16 %v653
  %v693 = vunpack.c.l.b16 %v654
  %v694 = vunpack.c.h.b16 %v654
  %v695 = vunpack.c.l.b16 %v655
  %v696 = vunpack.c.h.b16 %v655
  %v697 = vunpack.c.l.b16 %v656
  %v698 = vunpack.c.h.b16 %v656
  %v699 = vunpack.c.l.b16 %v657
  %v700 = vunpack.c.h.b16 %v657
  %v701 = vunpack.c.l.b16 %v658
  %v702 = vunpack.c.h.b16 %v658
  %v703 = vunpack.c.l.b16 %v659
  %v704 = vunpack.c.h.b16 %v659
  %v705 = vunpack.c.l.b16 %v660
  %v706 = vunpack.c.h.b16 %v660
  %v707 = vunpack.c.l.b16 %v661
  %v708 = vunpack.c.h.b16 %v661
  %v709 = vunpack.c.l.b16 %v662
  %v710 = vunpack.c.h.b16 %v662
  %v711 = vpack.c.b16 %v681, %v679
  %v712 = vpack.c.b16 %v682, %v680
  %v713 = vpack.c.b16 %v685, %v683
  %v714 = vpack.c.b16 %v686, %v684
  %v715 = vpack.c.b16 %v689, %v687
  %v716 = vpack.c.b16 %v690, %v688
  %v717 = vpack.c.b16 %v693, %v691
  %v718 = vpack.c.b16 %v694, %v692
  %v719 = vpack.c.b16 %v697, %v695
  %v720 = vpack.c.b16 %v698, %v696
  %v721 = vpack.c.b16 %v701, %v699
  %v722 = vpack.c.b16 %v702, %v700
  %v723 = vpack.c.b16 %v705, %v703
  %v724 = vpack.c.b16 %v706, %v704
  %v725 = vpack.c.b16 %v709, %v707
  %v726 = vpack.c.b16 %v710, %v708
  %743 = vmatprep.subr.bf16.mxu0 %v712
  %744 = vmatpush1.bf16.msra.mxu0 %v711
  %745 = vmatprep.subr.bf16.mxu0 %v714
  %746 = vmatpush1.bf16.msra.mxu0 %v713
  %747 = vmatprep.subr.bf16.mxu0 %v716
  %748 = vmatpush1.bf16.msra.mxu0 %v715
  %749 = vmatprep.subr.bf16.mxu0 %v718
  %750 = vmatpush1.bf16.msra.mxu0 %v717
  %751 = vmatprep.subr.bf16.mxu0 %v720
  %752 = vmatpush1.bf16.msra.mxu0 %v719
  %753 = vmatprep.subr.bf16.mxu0 %v722
  %754 = vmatpush1.bf16.msra.mxu0 %v721
  %755 = vmatprep.subr.bf16.mxu0 %v724
  %756 = vmatpush1.bf16.msra.mxu0 %v723
  %757 = vmatprep.subr.bf16.mxu0 %v726
  %758 = vmatpush1.bf16.msra.mxu0 %v725
  %759 = vmatprep.subr.bf16.mxu0 0
  %760 = vmatpush1.bf16.msra.mxu0 0
  %761 = vmatprep.subr.bf16.mxu0 0
  %762 = vmatpush1.bf16.msra.mxu0 0
  %763 = vmatprep.subr.bf16.mxu0 0
  %764 = vmatpush1.bf16.msra.mxu0 0
  %765 = vmatprep.subr.bf16.mxu0 0
  %766 = vmatpush1.bf16.msra.mxu0 0
  %767 = vmatprep.subr.bf16.mxu0 0
  %768 = vmatpush1.bf16.msra.mxu0 0
  %769 = vmatprep.subr.bf16.mxu0 0
  %770 = vmatpush1.bf16.msra.mxu0 0
  %771 = vmatprep.subr.bf16.mxu0 0
  %772 = vmatpush1.bf16.msra.mxu0 0
  %773 = vmatprep.subr.bf16.mxu0 0
  %774 = vmatpush1.bf16.msra.mxu0 0
  %775 = vmatprep.mubr.bf16.mxu0 0
  %776 = vmatmul.mubr.bf16.gmra.mrb[0].mxu0 %v646
  %v777 = vpop.f32.mrb[0].mxu0
  %v778 = vadd.f32 0.0, %v777
  %v779 = vpop.f32.mrb[0].mxu0
  %v780 = vadd.f32 0.0, %v779
  %v781 = vpop.f32.mrb[0].mxu0
  %v782 = vpop.f32.mrb[0].mxu0
  %783 = vdwg.mxu0
  %v800 = vunpack.c.l.b16 %v629
  %v801 = vunpack.c.h.b16 %v629
  %v802 = vunpack.c.l.b16 %v630
  %v803 = vunpack.c.h.b16 %v630
  %v804 = vunpack.c.l.b16 %v631
  %v805 = vunpack.c.h.b16 %v631
  %v806 = vunpack.c.l.b16 %v632
  %v807 = vunpack.c.h.b16 %v632
  %v808 = vunpack.c.l.b16 %v633
  %v809 = vunpack.c.h.b16 %v633
  %v810 = vunpack.c.l.b16 %v634
  %v811 = vunpack.c.h.b16 %v634
  %v812 = vunpack.c.l.b16 %v635
  %v813 = vunpack.c.h.b16 %v635
  %v814 = vunpack.c.l.b16 %v636
  %v815 = vunpack.c.h.b16 %v636
  %v816 = vunpack.c.l.b16 %v637
  %v817 = vunpack.c.h.b16 %v637
  %v818 = vunpack.c.l.b16 %v638
  %v819 = vunpack.c.h.b16 %v638
  %v820 = vunpack.c.l.b16 %v639
  %v821 = vunpack.c.h.b16 %v639
  %v822 = vunpack.c.l.b16 %v640
  %v823 = vunpack.c.h.b16 %v640
  %v824 = vunpack.c.l.b16 %v641
  %v825 = vunpack.c.h.b16 %v641
  %v826 = vunpack.c.l.b16 %v642
  %v827 = vunpack.c.h.b16 %v642
  %v828 = vunpack.c.l.b16 %v643
  %v829 = vunpack.c.h.b16 %v643
  %v830 = vunpack.c.l.b16 %v644
  %v831 = vunpack.c.h.b16 %v644
  %v832 = vpack.c.b16 %v802, %v800
  %v833 = vpack.c.b16 %v803, %v801
  %v834 = vpack.c.b16 %v806, %v804
  %v835 = vpack.c.b16 %v807, %v805
  %v836 = vpack.c.b16 %v810, %v808
  %v837 = vpack.c.b16 %v811, %v809
  %v838 = vpack.c.b16 %v814, %v812
  %v839 = vpack.c.b16 %v815, %v813
  %v840 = vpack.c.b16 %v818, %v816
  %v841 = vpack.c.b16 %v819, %v817
  %v842 = vpack.c.b16 %v822, %v820
  %v843 = vpack.c.b16 %v823, %v821
  %v844 = vpack.c.b16 %v826, %v824
  %v845 = vpack.c.b16 %v827, %v825
  %v846 = vpack.c.b16 %v830, %v828
  %v847 = vpack.c.b16 %v831, %v829
  %864 = vmatprep.subr.bf16.mxu0 %v833
  %865 = vmatpush1.bf16.msra.mxu0 %v832
  %866 = vmatprep.subr.bf16.mxu0 %v835
  %867 = vmatpush1.bf16.msra.mxu0 %v834
  %868 = vmatprep.subr.bf16.mxu0 %v837
  %869 = vmatpush1.bf16.msra.mxu0 %v836
  %870 = vmatprep.subr.bf16.mxu0 %v839
  %871 = vmatpush1.bf16.msra.mxu0 %v838
  %872 = vmatprep.subr.bf16.mxu0 %v841
  %873 = vmatpush1.bf16.msra.mxu0 %v840
  %874 = vmatprep.subr.bf16.mxu0 %v843
  %875 = vmatpush1.bf16.msra.mxu0 %v842
  %876 = vmatprep.subr.bf16.mxu0 %v845
  %877 = vmatpush1.bf16.msra.mxu0 %v844
  %878 = vmatprep.subr.bf16.mxu0 %v847
  %879 = vmatpush1.bf16.msra.mxu0 %v846
  %880 = vmatprep.subr.bf16.mxu0 0
  %881 = vmatpush1.bf16.msra.mxu0 0
  %882 = vmatprep.subr.bf16.mxu0 0
  %883 = vmatpush1.bf16.msra.mxu0 0
  %884 = vmatprep.subr.bf16.mxu0 0
  %885 = vmatpush1.bf16.msra.mxu0 0
  %886 = vmatprep.subr.bf16.mxu0 0
  %887 = vmatpush1.bf16.msra.mxu0 0
  %888 = vmatprep.subr.bf16.mxu0 0
  %889 = vmatpush1.bf16.msra.mxu0 0
  %890 = vmatprep.subr.bf16.mxu0 0
  %891 = vmatpush1.bf16.msra.mxu0 0
  %892 = vmatprep.subr.bf16.mxu0 0
  %893 = vmatpush1.bf16.msra.mxu0 0
  %894 = vmatprep.subr.bf16.mxu0 0
  %895 = vmatpush1.bf16.msra.mxu0 0
  %896 = vmatprep.mubr.bf16.mxu0 0
  %897 = vmatmul.mubr.bf16.gmra.mrb[0].mxu0 %v628
  %v898 = vpop.f32.mrb[0].mxu0
  %v899 = vadd.f32 %v778, %v898
  %v900 = vpop.f32.mrb[0].mxu0
  %v901 = vadd.f32 %v780, %v900
  %v902 = vpop.f32.mrb[0].mxu0
  %v903 = vpop.f32.mrb[0].mxu0
  %904 = vdwg.mxu0
  %v905 = vld [vmem:[#allocation2 + $0x4] sm:$0x3]
  %v906 = vpack.c.bf16 %v905, %v905
  %v907 = vld [vmem:[%s5 + $0x100] sm:$0xff]
  %v908 = vld [vmem:[%s5 + $0x108] sm:$0xff]
  %v909 = vld [vmem:[%s5 + $0x110] sm:$0xff]
  %v910 = vld [vmem:[%s5 + $0x118] sm:$0xff]
  %v911 = vld [vmem:[%s5 + $0x120] sm:$0xff]
  %v912 = vld [vmem:[%s5 + $0x128] sm:$0xff]
  %v913 = vld [vmem:[%s5 + $0x130] sm:$0xff]
  %v914 = vld [vmem:[%s5 + $0x138] sm:$0xff]
  %v915 = vld [vmem:[%s5 + $0x140] sm:$0xff]
  %v916 = vld [vmem:[%s5 + $0x148] sm:$0xff]
  %v917 = vld [vmem:[%s5 + $0x150] sm:$0xff]
  %v918 = vld [vmem:[%s5 + $0x158] sm:$0xff]
  %v919 = vld [vmem:[%s5 + $0x160] sm:$0xff]
  %v920 = vld [vmem:[%s5 + $0x168] sm:$0xff]
  %v921 = vld [vmem:[%s5 + $0x170] sm:$0xff]
  %v922 = vld [vmem:[%s5 + $0x178] sm:$0xff]
  %v939 = vunpack.c.l.b16 %v907
  %v940 = vunpack.c.h.b16 %v907
  %v941 = vunpack.c.l.b16 %v908
  %v942 = vunpack.c.h.b16 %v908
  %v943 = vunpack.c.l.b16 %v909
  %v944 = vunpack.c.h.b16 %v909
  %v945 = vunpack.c.l.b16 %v910
  %v946 = vunpack.c.h.b16 %v910
  %v947 = vunpack.c.l.b16 %v911
  %v948 = vunpack.c.h.b16 %v911
  %v949 = vunpack.c.l.b16 %v912
  %v950 = vunpack.c.h.b16 %v912
  %v951 = vunpack.c.l.b16 %v913
  %v952 = vunpack.c.h.b16 %v913
  %v953 = vunpack.c.l.b16 %v914
  %v954 = vunpack.c.h.b16 %v914
  %v955 = vunpack.c.l.b16 %v915
  %v956 = vunpack.c.h.b16 %v915
  %v957 = vunpack.c.l.b16 %v916
  %v958 = vunpack.c.h.b16 %v916
  %v959 = vunpack.c.l.b16 %v917
  %v960 = vunpack.c.h.b16 %v917
  %v961 = vunpack.c.l.b16 %v918
  %v962 = vunpack.c.h.b16 %v918
  %v963 = vunpack.c.l.b16 %v919
  %v964 = vunpack.c.h.b16 %v919
  %v965 = vunpack.c.l.b16 %v920
  %v966 = vunpack.c.h.b16 %v920
  %v967 = vunpack.c.l.b16 %v921
  %v968 = vunpack.c.h.b16 %v921
  %v969 = vunpack.c.l.b16 %v922
  %v970 = vunpack.c.h.b16 %v922
  %v971 = vpack.c.b16 %v941, %v939
  %v972 = vpack.c.b16 %v942, %v940
  %v973 = vpack.c.b16 %v945, %v943
  %v974 = vpack.c.b16 %v946, %v944
  %v975 = vpack.c.b16 %v949, %v947
  %v976 = vpack.c.b16 %v950, %v948
  %v977 = vpack.c.b16 %v953, %v951
  %v978 = vpack.c.b16 %v954, %v952
  %v979 = vpack.c.b16 %v957, %v955
  %v980 = vpack.c.b16 %v958, %v956
  %v981 = vpack.c.b16 %v961, %v959
  %v982 = vpack.c.b16 %v962, %v960
  %v983 = vpack.c.b16 %v965, %v963
  %v984 = vpack.c.b16 %v966, %v964
  %v985 = vpack.c.b16 %v969, %v967
  %v986 = vpack.c.b16 %v970, %v968
  %1003 = vmatprep.subr.bf16.mxu0 %v972
  %1004 = vmatpush1.bf16.msra.mxu0 %v971
  %1005 = vmatprep.subr.bf16.mxu0 %v974
  %1006 = vmatpush1.bf16.msra.mxu0 %v973
  %1007 = vmatprep.subr.bf16.mxu0 %v976
  %1008 = vmatpush1.bf16.msra.mxu0 %v975
  %1009 = vmatprep.subr.bf16.mxu0 %v978
  %1010 = vmatpush1.bf16.msra.mxu0 %v977
  %1011 = vmatprep.subr.bf16.mxu0 %v980
  %1012 = vmatpush1.bf16.msra.mxu0 %v979
  %1013 = vmatprep.subr.bf16.mxu0 %v982
  %1014 = vmatpush1.bf16.msra.mxu0 %v981
  %1015 = vmatprep.subr.bf16.mxu0 %v984
  %1016 = vmatpush1.bf16.msra.mxu0 %v983
  %1017 = vmatprep.subr.bf16.mxu0 %v986
  %1018 = vmatpush1.bf16.msra.mxu0 %v985
  %1019 = vmatprep.subr.bf16.mxu0 0
  %1020 = vmatpush1.bf16.msra.mxu0 0
  %1021 = vmatprep.subr.bf16.mxu0 0
  %1022 = vmatpush1.bf16.msra.mxu0 0
  %1023 = vmatprep.subr.bf16.mxu0 0
  %1024 = vmatpush1.bf16.msra.mxu0 0
  %1025 = vmatprep.subr.bf16.mxu0 0
  %1026 = vmatpush1.bf16.msra.mxu0 0
  %1027 = vmatprep.subr.bf16.mxu0 0
  %1028 = vmatpush1.bf16.msra.mxu0 0
  %1029 = vmatprep.subr.bf16.mxu0 0
  %1030 = vmatpush1.bf16.msra.mxu0 0
  %1031 = vmatprep.subr.bf16.mxu0 0
  %1032 = vmatpush1.bf16.msra.mxu0 0
  %1033 = vmatprep.subr.bf16.mxu0 0
  %1034 = vmatpush1.bf16.msra.mxu0 0
  %1035 = vmatprep.mubr.bf16.mxu0 0
  %1036 = vmatmul.mubr.bf16.gmra.mrb[0].mxu0 %v906
  %v1037 = vpop.f32.mrb[0].mxu0
  %v1038 = vadd.f32 0.0, %v1037
  %v1039 = vpop.f32.mrb[0].mxu0
  %v1040 = vadd.f32 0.0, %v1039
  %v1041 = vpop.f32.mrb[0].mxu0
  %v1042 = vpop.f32.mrb[0].mxu0
  %1043 = vdwg.mxu0
  %v1044 = vadd.f32 %v899, %v1038
  %v1045 = vadd.f32 %v901, %v1040
  %v1046 = vld [vmem:[#allocation2 + $0x6] sm:$0x3]
  %v1047 = vpack.c.bf16 %v1046, %v1046
  %v1048 = vld [vmem:[%s5 + $0x180] sm:$0xff]
  %v1049 = vld [vmem:[%s5 + $0x188] sm:$0xff]
  %v1050 = vld [vmem:[%s5 + $0x190] sm:$0xff]
  %v1051 = vld [vmem:[%s5 + $0x198] sm:$0xff]
  %v1052 = vld [vmem:[%s5 + $0x1a0] sm:$0xff]
  %v1053 = vld [vmem:[%s5 + $0x1a8] sm:$0xff]
  %v1054 = vld [vmem:[%s5 + $0x1b0] sm:$0xff]
  %v1055 = vld [vmem:[%s5 + $0x1b8] sm:$0xff]
  %v1056 = vld [vmem:[%s5 + $0x1c0] sm:$0xff]
  %v1057 = vld [vmem:[%s5 + $0x1c8] sm:$0xff]
  %v1058 = vld [vmem:[%s5 + $0x1d0] sm:$0xff]
  %v1059 = vld [vmem:[%s5 + $0x1d8] sm:$0xff]
  %v1060 = vld [vmem:[%s5 + $0x1e0] sm:$0xff]
  %v1061 = vld [vmem:[%s5 + $0x1e8] sm:$0xff]
  %v1062 = vld [vmem:[%s5 + $0x1f0] sm:$0xff]
  %v1063 = vld [vmem:[%s5 + $0x1f8] sm:$0xff]
  %v1080 = vunpack.c.l.b16 %v1048
  %v1081 = vunpack.c.h.b16 %v1048
  %v1082 = vunpack.c.l.b16 %v1049
  %v1083 = vunpack.c.h.b16 %v1049
  %v1084 = vunpack.c.l.b16 %v1050
  %v1085 = vunpack.c.h.b16 %v1050
  %v1086 = vunpack.c.l.b16 %v1051
  %v1087 = vunpack.c.h.b16 %v1051
  %v1088 = vunpack.c.l.b16 %v1052
  %v1089 = vunpack.c.h.b16 %v1052
  %v1090 = vunpack.c.l.b16 %v1053
  %v1091 = vunpack.c.h.b16 %v1053
  %v1092 = vunpack.c.l.b16 %v1054
  %v1093 = vunpack.c.h.b16 %v1054
  %v1094 = vunpack.c.l.b16 %v1055
  %v1095 = vunpack.c.h.b16 %v1055
  %v1096 = vunpack.c.l.b16 %v1056
  %v1097 = vunpack.c.h.b16 %v1056
  %v1098 = vunpack.c.l.b16 %v1057
  %v1099 = vunpack.c.h.b16 %v1057
  %v1100 = vunpack.c.l.b16 %v1058
  %v1101 = vunpack.c.h.b16 %v1058
  %v1102 = vunpack.c.l.b16 %v1059
  %v1103 = vunpack.c.h.b16 %v1059
  %v1104 = vunpack.c.l.b16 %v1060
  %v1105 = vunpack.c.h.b16 %v1060
  %v1106 = vunpack.c.l.b16 %v1061
  %v1107 = vunpack.c.h.b16 %v1061
  %v1108 = vunpack.c.l.b16 %v1062
  %v1109 = vunpack.c.h.b16 %v1062
  %v1110 = vunpack.c.l.b16 %v1063
  %v1111 = vunpack.c.h.b16 %v1063
  %v1112 = vpack.c.b16 %v1082, %v1080
  %v1113 = vpack.c.b16 %v1083, %v1081
  %v1114 = vpack.c.b16 %v1086, %v1084
  %v1115 = vpack.c.b16 %v1087, %v1085
  %v1116 = vpack.c.b16 %v1090, %v1088
  %v1117 = vpack.c.b16 %v1091, %v1089
  %v1118 = vpack.c.b16 %v1094, %v1092
  %v1119 = vpack.c.b16 %v1095, %v1093
  %v1120 = vpack.c.b16 %v1098, %v1096
  %v1121 = vpack.c.b16 %v1099, %v1097
  %v1122 = vpack.c.b16 %v1102, %v1100
  %v1123 = vpack.c.b16 %v1103, %v1101
  %v1124 = vpack.c.b16 %v1106, %v1104
  %v1125 = vpack.c.b16 %v1107, %v1105
  %v1126 = vpack.c.b16 %v1110, %v1108
  %v1127 = vpack.c.b16 %v1111, %v1109
  %1144 = vmatprep.subr.bf16.mxu0 %v1113
  %1145 = vmatpush1.bf16.msra.mxu0 %v1112
  %1146 = vmatprep.subr.bf16.mxu0 %v1115
  %1147 = vmatpush1.bf16.msra.mxu0 %v1114
  %1148 = vmatprep.subr.bf16.mxu0 %v1117
  %1149 = vmatpush1.bf16.msra.mxu0 %v1116
  %1150 = vmatprep.subr.bf16.mxu0 %v1119
  %1151 = vmatpush1.bf16.msra.mxu0 %v1118
  %1152 = vmatprep.subr.bf16.mxu0 %v1121
  %1153 = vmatpush1.bf16.msra.mxu0 %v1120
  %1154 = vmatprep.subr.bf16.mxu0 %v1123
  %1155 = vmatpush1.bf16.msra.mxu0 %v1122
  %1156 = vmatprep.subr.bf16.mxu0 %v1125
  %1157 = vmatpush1.bf16.msra.mxu0 %v1124
  %1158 = vmatprep.subr.bf16.mxu0 %v1127
  %1159 = vmatpush1.bf16.msra.mxu0 %v1126
  %1160 = vmatprep.subr.bf16.mxu0 0
  %1161 = vmatpush1.bf16.msra.mxu0 0
  %1162 = vmatprep.subr.bf16.mxu0 0
  %1163 = vmatpush1.bf16.msra.mxu0 0
  %1164 = vmatprep.subr.bf16.mxu0 0
  %1165 = vmatpush1.bf16.msra.mxu0 0
  %1166 = vmatprep.subr.bf16.mxu0 0
  %1167 = vmatpush1.bf16.msra.mxu0 0
  %1168 = vmatprep.subr.bf16.mxu0 0
  %1169 = vmatpush1.bf16.msra.mxu0 0
  %1170 = vmatprep.subr.bf16.mxu0 0
  %1171 = vmatpush1.bf16.msra.mxu0 0
  %1172 = vmatprep.subr.bf16.mxu0 0
  %1173 = vmatpush1.bf16.msra.mxu0 0
  %1174 = vmatprep.subr.bf16.mxu0 0
  %1175 = vmatpush1.bf16.msra.mxu0 0
  %1176 = vmatprep.mubr.bf16.mxu0 0
  %1177 = vmatmul.mubr.bf16.gmra.mrb[0].mxu0 %v1047
  %v1178 = vpop.f32.mrb[0].mxu0
  %v1179 = vadd.f32 0.0, %v1178
  %v1180 = vpop.f32.mrb[0].mxu0
  %v1181 = vadd.f32 0.0, %v1180
  %v1182 = vpop.f32.mrb[0].mxu0
  %v1183 = vpop.f32.mrb[0].mxu0
  %1184 = vdwg.mxu0
  %v1185 = vadd.f32 %v1044, %v1179
  %v1186 = vadd.f32 %v1045, %v1181
  %v1187 = vld [vmem:[#allocation2 + $0x8] sm:$0x3]
  %v1188 = vpack.c.bf16 %v1187, %v1187
  %v1189 = vld [vmem:[%s5 + $0x200] sm:$0xff]
  %v1190 = vld [vmem:[%s5 + $0x208] sm:$0xff]
  %v1191 = vld [vmem:[%s5 + $0x210] sm:$0xff]
  %v1192 = vld [vmem:[%s5 + $0x218] sm:$0xff]
  %v1193 = vld [vmem:[%s5 + $0x220] sm:$0xff]
  %v1194 = vld [vmem:[%s5 + $0x228] sm:$0xff]
  %v1195 = vld [vmem:[%s5 + $0x230] sm:$0xff]
  %v1196 = vld [vmem:[%s5 + $0x238] sm:$0xff]
  %v1197 = vld [vmem:[%s5 + $0x240] sm:$0xff]
  %v1198 = vld [vmem:[%s5 + $0x248] sm:$0xff]
  %v1199 = vld [vmem:[%s5 + $0x250] sm:$0xff]
  %v1200 = vld [vmem:[%s5 + $0x258] sm:$0xff]
  %v1201 = vld [vmem:[%s5 + $0x260] sm:$0xff]
  %v1202 = vld [vmem:[%s5 + $0x268] sm:$0xff]
  %v1203 = vld [vmem:[%s5 + $0x270] sm:$0xff]
  %v1204 = vld [vmem:[%s5 + $0x278] sm:$0xff]
  %v1221 = vunpack.c.l.b16 %v1189
  %v1222 = vunpack.c.h.b16 %v1189
  %v1223 = vunpack.c.l.b16 %v1190
  %v1224 = vunpack.c.h.b16 %v1190
  %v1225 = vunpack.c.l.b16 %v1191
  %v1226 = vunpack.c.h.b16 %v1191
  %v1227 = vunpack.c.l.b16 %v1192
  %v1228 = vunpack.c.h.b16 %v1192
  %v1229 = vunpack.c.l.b16 %v1193
  %v1230 = vunpack.c.h.b16 %v1193
  %v1231 = vunpack.c.l.b16 %v1194
  %v1232 = vunpack.c.h.b16 %v1194
  %v1233 = vunpack.c.l.b16 %v1195
  %v1234 = vunpack.c.h.b16 %v1195
  %v1235 = vunpack.c.l.b16 %v1196
  %v1236 = vunpack.c.h.b16 %v1196
  %v1237 = vunpack.c.l.b16 %v1197
  %v1238 = vunpack.c.h.b16 %v1197
  %v1239 = vunpack.c.l.b16 %v1198
  %v1240 = vunpack.c.h.b16 %v1198
  %v1241 = vunpack.c.l.b16 %v1199
  %v1242 = vunpack.c.h.b16 %v1199
  %v1243 = vunpack.c.l.b16 %v1200
  %v1244 = vunpack.c.h.b16 %v1200
  %v1245 = vunpack.c.l.b16 %v1201
  %v1246 = vunpack.c.h.b16 %v1201
  %v1247 = vunpack.c.l.b16 %v1202
  %v1248 = vunpack.c.h.b16 %v1202
  %v1249 = vunpack.c.l.b16 %v1203
  %v1250 = vunpack.c.h.b16 %v1203
  %v1251 = vunpack.c.l.b16 %v1204
  %v1252 = vunpack.c.h.b16 %v1204
  %v1253 = vpack.c.b16 %v1223, %v1221
  %v1254 = vpack.c.b16 %v1224, %v1222
  %v1255 = vpack.c.b16 %v1227, %v1225
  %v1256 = vpack.c.b16 %v1228, %v1226
  %v1257 = vpack.c.b16 %v1231, %v1229
  %v1258 = vpack.c.b16 %v1232, %v1230
  %v1259 = vpack.c.b16 %v1235, %v1233
  %v1260 = vpack.c.b16 %v1236, %v1234
  %v1261 = vpack.c.b16 %v1239, %v1237
  %v1262 = vpack.c.b16 %v1240, %v1238
  %v1263 = vpack.c.b16 %v1243, %v1241
  %v1264 = vpack.c.b16 %v1244, %v1242
  %v1265 = vpack.c.b16 %v1247, %v1245
  %v1266 = vpack.c.b16 %v1248, %v1246
  %v1267 = vpack.c.b16 %v1251, %v1249
  %v1268 = vpack.c.b16 %v1252, %v1250
  %1285 = vmatprep.subr.bf16.mxu0 %v1254
  %1286 = vmatpush1.bf16.msra.mxu0 %v1253
  %1287 = vmatprep.subr.bf16.mxu0 %v1256
  %1288 = vmatpush1.bf16.msra.mxu0 %v1255
  %1289 = vmatprep.subr.bf16.mxu0 %v1258
  %1290 = vmatpush1.bf16.msra.mxu0 %v1257
  %1291 = vmatprep.subr.bf16.mxu0 %v1260
  %1292 = vmatpush1.bf16.msra.mxu0 %v1259
  %1293 = vmatprep.subr.bf16.mxu0 %v1262
  %1294 = vmatpush1.bf16.msra.mxu0 %v1261
  %1295 = vmatprep.subr.bf16.mxu0 %v1264
  %1296 = vmatpush1.bf16.msra.mxu0 %v1263
  %1297 = vmatprep.subr.bf16.mxu0 %v1266
  %1298 = vmatpush1.bf16.msra.mxu0 %v1265
  %1299 = vmatprep.subr.bf16.mxu0 %v1268
  %1300 = vmatpush1.bf16.msra.mxu0 %v1267
  %1301 = vmatprep.subr.bf16.mxu0 0
  %1302 = vmatpush1.bf16.msra.mxu0 0
  %1303 = vmatprep.subr.bf16.mxu0 0
  %1304 = vmatpush1.bf16.msra.mxu0 0
  %1305 = vmatprep.subr.bf16.mxu0 0
  %1306 = vmatpush1.bf16.msra.mxu0 0
  %1307 = vmatprep.subr.bf16.mxu0 0
  %1308 = vmatpush1.bf16.msra.mxu0 0
  %1309 = vmatprep.subr.bf16.mxu0 0
  %1310 = vmatpush1.bf16.msra.mxu0 0
  %1311 = vmatprep.subr.bf16.mxu0 0
  %1312 = vmatpush1.bf16.msra.mxu0 0
  %1313 = vmatprep.subr.bf16.mxu0 0
  %1314 = vmatpush1.bf16.msra.mxu0 0
  %1315 = vmatprep.subr.bf16.mxu0 0
  %1316 = vmatpush1.bf16.msra.mxu0 0
  %1317 = vmatprep.mubr.bf16.mxu0 0
  %1318 = vmatmul.mubr.bf16.gmra.mrb[0].mxu0 %v1188
  %v1319 = vpop.f32.mrb[0].mxu0
  %v1320 = vadd.f32 0.0, %v1319
  %v1321 = vpop.f32.mrb[0].mxu0
  %v1322 = vadd.f32 0.0, %v1321
  %v1323 = vpop.f32.mrb[0].mxu0
  %v1324 = vpop.f32.mrb[0].mxu0
  %1325 = vdwg.mxu0
  %v1326 = vadd.f32 %v1185, %v1320
  %v1327 = vadd.f32 %v1186, %v1322
  %v1328 = vld [vmem:[#allocation2 + $0xa] sm:$0x3]
  %v1329 = vpack.c.bf16 %v1328, %v1328
  %v1330 = vld [vmem:[%s5 + $0x280] sm:$0xff]
  %v1331 = vld [vmem:[%s5 + $0x288] sm:$0xff]
  %v1332 = vld [vmem:[%s5 + $0x290] sm:$0xff]
  %v1333 = vld [vmem:[%s5 + $0x298] sm:$0xff]
  %v1334 = vld [vmem:[%s5 + $0x2a0] sm:$0xff]
  %v1335 = vld [vmem:[%s5 + $0x2a8] sm:$0xff]
  %v1336 = vld [vmem:[%s5 + $0x2b0] sm:$0xff]
  %v1337 = vld [vmem:[%s5 + $0x2b8] sm:$0xff]
  %v1338 = vld [vmem:[%s5 + $0x2c0] sm:$0xff]
  %v1339 = vld [vmem:[%s5 + $0x2c8] sm:$0xff]
  %v1340 = vld [vmem:[%s5 + $0x2d0] sm:$0xff]
  %v1341 = vld [vmem:[%s5 + $0x2d8] sm:$0xff]
  %v1342 = vld [vmem:[%s5 + $0x2e0] sm:$0xff]
  %v1343 = vld [vmem:[%s5 + $0x2e8] sm:$0xff]
  %v1344 = vld [vmem:[%s5 + $0x2f0] sm:$0xff]
  %v1345 = vld [vmem:[%s5 + $0x2f8] sm:$0xff]
  %v1362 = vunpack.c.l.b16 %v1330
  %v1363 = vunpack.c.h.b16 %v1330
  %v1364 = vunpack.c.l.b16 %v1331
  %v1365 = vunpack.c.h.b16 %v1331
  %v1366 = vunpack.c.l.b16 %v1332
  %v1367 = vunpack.c.h.b16 %v1332
  %v1368 = vunpack.c.l.b16 %v1333
  %v1369 = vunpack.c.h.b16 %v1333
  %v1370 = vunpack.c.l.b16 %v1334
  %v1371 = vunpack.c.h.b16 %v1334
  %v1372 = vunpack.c.l.b16 %v1335
  %v1373 = vunpack.c.h.b16 %v1335
  %v1374 = vunpack.c.l.b16 %v1336
  %v1375 = vunpack.c.h.b16 %v1336
  %v1376 = vunpack.c.l.b16 %v1337
  %v1377 = vunpack.c.h.b16 %v1337
  %v1378 = vunpack.c.l.b16 %v1338
  %v1379 = vunpack.c.h.b16 %v1338
  %v1380 = vunpack.c.l.b16 %v1339
  %v1381 = vunpack.c.h.b16 %v1339
  %v1382 = vunpack.c.l.b16 %v1340
  %v1383 = vunpack.c.h.b16 %v1340
  %v1384 = vunpack.c.l.b16 %v1341
  %v1385 = vunpack.c.h.b16 %v1341
  %v1386 = vunpack.c.l.b16 %v1342
  %v1387 = vunpack.c.h.b16 %v1342
  %v1388 = vunpack.c.l.b16 %v1343
  %v1389 = vunpack.c.h.b16 %v1343
  %v1390 = vunpack.c.l.b16 %v1344
  %v1391 = vunpack.c.h.b16 %v1344
  %v1392 = vunpack.c.l.b16 %v1345
  %v1393 = vunpack.c.h.b16 %v1345
  %v1394 = vpack.c.b16 %v1364, %v1362
  %v1395 = vpack.c.b16 %v1365, %v1363
  %v1396 = vpack.c.b16 %v1368, %v1366
  %v1397 = vpack.c.b16 %v1369, %v1367
  %v1398 = vpack.c.b16 %v1372, %v1370
  %v1399 = vpack.c.b16 %v1373, %v1371
  %v1400 = vpack.c.b16 %v1376, %v1374
  %v1401 = vpack.c.b16 %v1377, %v1375
  %v1402 = vpack.c.b16 %v1380, %v1378
  %v1403 = vpack.c.b16 %v1381, %v1379
  %v1404 = vpack.c.b16 %v1384, %v1382
  %v1405 = vpack.c.b16 %v1385, %v1383
  %v1406 = vpack.c.b16 %v1388, %v1386
  %v1407 = vpack.c.b16 %v1389, %v1387
  %v1408 = vpack.c.b16 %v1392, %v1390
  %v1409 = vpack.c.b16 %v1393, %v1391
  %1426 = vmatprep.subr.bf16.mxu0 %v1395
  %1427 = vmatpush1.bf16.msra.mxu0 %v1394
  %1428 = vmatprep.subr.bf16.mxu0 %v1397
  %1429 = vmatpush1.bf16.msra.mxu0 %v1396
  %1430 = vmatprep.subr.bf16.mxu0 %v1399
  %1431 = vmatpush1.bf16.msra.mxu0 %v1398
  %1432 = vmatprep.subr.bf16.mxu0 %v1401
  %1433 = vmatpush1.bf16.msra.mxu0 %v1400
  %1434 = vmatprep.subr.bf16.mxu0 %v1403
  %1435 = vmatpush1.bf16.msra.mxu0 %v1402
  %1436 = vmatprep.subr.bf16.mxu0 %v1405
  %1437 = vmatpush1.bf16.msra.mxu0 %v1404
  %1438 = vmatprep.subr.bf16.mxu0 %v1407
  %1439 = vmatpush1.bf16.msra.mxu0 %v1406
  %1440 = vmatprep.subr.bf16.mxu0 %v1409
  %1441 = vmatpush1.bf16.msra.mxu0 %v1408
  %1442 = vmatprep.subr.bf16.mxu0 0
  %1443 = vmatpush1.bf16.msra.mxu0 0
  %1444 = vmatprep.subr.bf16.mxu0 0
  %1445 = vmatpush1.bf16.msra.mxu0 0
  %1446 = vmatprep.subr.bf16.mxu0 0
  %1447 = vmatpush1.bf16.msra.mxu0 0
  %1448 = vmatprep.subr.bf16.mxu0 0
  %1449 = vmatpush1.bf16.msra.mxu0 0
  %1450 = vmatprep.subr.bf16.mxu0 0
  %1451 = vmatpush1.bf16.msra.mxu0 0
  %1452 = vmatprep.subr.bf16.mxu0 0
  %1453 = vmatpush1.bf16.msra.mxu0 0
  %1454 = vmatprep.subr.bf16.mxu0 0
  %1455 = vmatpush1.bf16.msra.mxu0 0
  %1456 = vmatprep.subr.bf16.mxu0 0
  %1457 = vmatpush1.bf16.msra.mxu0 0
  %1458 = vmatprep.mubr.bf16.mxu0 0
  %1459 = vmatmul.mubr.bf16.gmra.mrb[0].mxu0 %v1329
  %v1460 = vpop.f32.mrb[0].mxu0
  %v1461 = vadd.f32 0.0, %v1460
  %v1462 = vpop.f32.mrb[0].mxu0
  %v1463 = vadd.f32 0.0, %v1462
  %v1464 = vpop.f32.mrb[0].mxu0
  %v1465 = vpop.f32.mrb[0].mxu0
  %1466 = vdwg.mxu0
  %v1467 = vadd.f32 %v1326, %v1461
  %v1468 = vadd.f32 %v1327, %v1463
  %v1469 = vld [vmem:[#allocation2 + $0xc] sm:$0x3]
  %v1470 = vpack.c.bf16 %v1469, %v1469
  %v1471 = vld [vmem:[%s5 + $0x300] sm:$0xff]
  %v1472 = vld [vmem:[%s5 + $0x308] sm:$0xff]
  %v1473 = vld [vmem:[%s5 + $0x310] sm:$0xff]
  %v1474 = vld [vmem:[%s5 + $0x318] sm:$0xff]
  %v1475 = vld [vmem:[%s5 + $0x320] sm:$0xff]
  %v1476 = vld [vmem:[%s5 + $0x328] sm:$0xff]
  %v1477 = vld [vmem:[%s5 + $0x330] sm:$0xff]
  %v1478 = vld [vmem:[%s5 + $0x338] sm:$0xff]
  %v1479 = vld [vmem:[%s5 + $0x340] sm:$0xff]
  %v1480 = vld [vmem:[%s5 + $0x348] sm:$0xff]
  %v1481 = vld [vmem:[%s5 + $0x350] sm:$0xff]
  %v1482 = vld [vmem:[%s5 + $0x358] sm:$0xff]
  %v1483 = vld [vmem:[%s5 + $0x360] sm:$0xff]
  %v1484 = vld [vmem:[%s5 + $0x368] sm:$0xff]
  %v1485 = vld [vmem:[%s5 + $0x370] sm:$0xff]
  %v1486 = vld [vmem:[%s5 + $0x378] sm:$0xff]
  %v1503 = vunpack.c.l.b16 %v1471
  %v1504 = vunpack.c.h.b16 %v1471
  %v1505 = vunpack.c.l.b16 %v1472
  %v1506 = vunpack.c.h.b16 %v1472
  %v1507 = vunpack.c.l.b16 %v1473
  %v1508 = vunpack.c.h.b16 %v1473
  %v1509 = vunpack.c.l.b16 %v1474
  %v1510 = vunpack.c.h.b16 %v1474
  %v1511 = vunpack.c.l.b16 %v1475
  %v1512 = vunpack.c.h.b16 %v1475
  %v1513 = vunpack.c.l.b16 %v1476
  %v1514 = vunpack.c.h.b16 %v1476
  %v1515 = vunpack.c.l.b16 %v1477
  %v1516 = vunpack.c.h.b16 %v1477
  %v1517 = vunpack.c.l.b16 %v1478
  %v1518 = vunpack.c.h.b16 %v1478
  %v1519 = vunpack.c.l.b16 %v1479
  %v1520 = vunpack.c.h.b16 %v1479
  %v1521 = vunpack.c.l.b16 %v1480
  %v1522 = vunpack.c.h.b16 %v1480
  %v1523 = vunpack.c.l.b16 %v1481
  %v1524 = vunpack.c.h.b16 %v1481
  %v1525 = vunpack.c.l.b16 %v1482
  %v1526 = vunpack.c.h.b16 %v1482
  %v1527 = vunpack.c.l.b16 %v1483
  %v1528 = vunpack.c.h.b16 %v1483
  %v1529 = vunpack.c.l.b16 %v1484
  %v1530 = vunpack.c.h.b16 %v1484
  %v1531 = vunpack.c.l.b16 %v1485
  %v1532 = vunpack.c.h.b16 %v1485
  %v1533 = vunpack.c.l.b16 %v1486
  %v1534 = vunpack.c.h.b16 %v1486
  %v1535 = vpack.c.b16 %v1505, %v1503
  %v1536 = vpack.c.b16 %v1506, %v1504
  %v1537 = vpack.c.b16 %v1509, %v1507
  %v1538 = vpack.c.b16 %v1510, %v1508
  %v1539 = vpack.c.b16 %v1513, %v1511
  %v1540 = vpack.c.b16 %v1514, %v1512
  %v1541 = vpack.c.b16 %v1517, %v1515
  %v1542 = vpack.c.b16 %v1518, %v1516
  %v1543 = vpack.c.b16 %v1521, %v1519
  %v1544 = vpack.c.b16 %v1522, %v1520
  %v1545 = vpack.c.b16 %v1525, %v1523
  %v1546 = vpack.c.b16 %v1526, %v1524
  %v1547 = vpack.c.b16 %v1529, %v1527
  %v1548 = vpack.c.b16 %v1530, %v1528
  %v1549 = vpack.c.b16 %v1533, %v1531
  %v1550 = vpack.c.b16 %v1534, %v1532
  %1567 = vmatprep.subr.bf16.mxu0 %v1536
  %1568 = vmatpush1.bf16.msra.mxu0 %v1535
  %1569 = vmatprep.subr.bf16.mxu0 %v1538
  %1570 = vmatpush1.bf16.msra.mxu0 %v1537
  %1571 = vmatprep.subr.bf16.mxu0 %v1540
  %1572 = vmatpush1.bf16.msra.mxu0 %v1539
  %1573 = vmatprep.subr.bf16.mxu0 %v1542
  %1574 = vmatpush1.bf16.msra.mxu0 %v1541
  %1575 = vmatprep.subr.bf16.mxu0 %v1544
  %1576 = vmatpush1.bf16.msra.mxu0 %v1543
  %1577 = vmatprep.subr.bf16.mxu0 %v1546
  %1578 = vmatpush1.bf16.msra.mxu0 %v1545
  %1579 = vmatprep.subr.bf16.mxu0 %v1548
  %1580 = vmatpush1.bf16.msra.mxu0 %v1547
  %1581 = vmatprep.subr.bf16.mxu0 %v1550
  %1582 = vmatpush1.bf16.msra.mxu0 %v1549
  %1583 = vmatprep.subr.bf16.mxu0 0
  %1584 = vmatpush1.bf16.msra.mxu0 0
  %1585 = vmatprep.subr.bf16.mxu0 0
  %1586 = vmatpush1.bf16.msra.mxu0 0
  %1587 = vmatprep.subr.bf16.mxu0 0
  %1588 = vmatpush1.bf16.msra.mxu0 0
  %1589 = vmatprep.subr.bf16.mxu0 0
  %1590 = vmatpush1.bf16.msra.mxu0 0
  %1591 = vmatprep.subr.bf16.mxu0 0
  %1592 = vmatpush1.bf16.msra.mxu0 0
  %1593 = vmatprep.subr.bf16.mxu0 0
  %1594 = vmatpush1.bf16.msra.mxu0 0
  %1595 = vmatprep.subr.bf16.mxu0 0
  %1596 = vmatpush1.bf16.msra.mxu0 0
  %1597 = vmatprep.subr.bf16.mxu0 0
  %1598 = vmatpush1.bf16.msra.mxu0 0
  %1599 = vmatprep.mubr.bf16.mxu0 0
  %1600 = vmatmul.mubr.bf16.gmra.mrb[0].mxu0 %v1470
  %v1601 = vpop.f32.mrb[0].mxu0
  %v1602 = vadd.f32 0.0, %v1601
  %v1603 = vpop.f32.mrb[0].mxu0
  %v1604 = vadd.f32 0.0, %v1603
  %v1605 = vpop.f32.mrb[0].mxu0
  %v1606 = vpop.f32.mrb[0].mxu0
  %1607 = vdwg.mxu0
  %v1608 = vadd.f32 %v1467, %v1602
  %v1609 = vadd.f32 %v1468, %v1604
  %v1610 = vld [vmem:[#allocation2 + $0xe] sm:$0x3]
  %v1611 = vpack.c.bf16 %v1610, %v1610
  %v1612 = vld [vmem:[%s5 + $0x380] sm:$0xff]
  %v1613 = vld [vmem:[%s5 + $0x388] sm:$0xff]
  %v1614 = vld [vmem:[%s5 + $0x390] sm:$0xff]
  %v1615 = vld [vmem:[%s5 + $0x398] sm:$0xff]
  %v1616 = vld [vmem:[%s5 + $0x3a0] sm:$0xff]
  %v1617 = vld [vmem:[%s5 + $0x3a8] sm:$0xff]
  %v1618 = vld [vmem:[%s5 + $0x3b0] sm:$0xff]
  %v1619 = vld [vmem:[%s5 + $0x3b8] sm:$0xff]
  %v1620 = vld [vmem:[%s5 + $0x3c0] sm:$0xff]
  %v1621 = vld [vmem:[%s5 + $0x3c8] sm:$0xff]
  %v1622 = vld [vmem:[%s5 + $0x3d0] sm:$0xff]
  %v1623 = vld [vmem:[%s5 + $0x3d8] sm:$0xff]
  %v1624 = vld [vmem:[%s5 + $0x3e0] sm:$0xff]
  %v1625 = vld [vmem:[%s5 + $0x3e8] sm:$0xff]
  %v1626 = vld [vmem:[%s5 + $0x3f0] sm:$0xff]
  %v1627 = vld [vmem:[%s5 + $0x3f8] sm:$0xff]
  %v1644 = vunpack.c.l.b16 %v1612
  %v1645 = vunpack.c.h.b16 %v1612
  %v1646 = vunpack.c.l.b16 %v1613
  %v1647 = vunpack.c.h.b16 %v1613
  %v1648 = vunpack.c.l.b16 %v1614
  %v1649 = vunpack.c.h.b16 %v1614
  %v1650 = vunpack.c.l.b16 %v1615
  %v1651 = vunpack.c.h.b16 %v1615
  %v1652 = vunpack.c.l.b16 %v1616
  %v1653 = vunpack.c.h.b16 %v1616
  %v1654 = vunpack.c.l.b16 %v1617
  %v1655 = vunpack.c.h.b16 %v1617
  %v1656 = vunpack.c.l.b16 %v1618
  %v1657 = vunpack.c.h.b16 %v1618
  %v1658 = vunpack.c.l.b16 %v1619
  %v1659 = vunpack.c.h.b16 %v1619
  %v1660 = vunpack.c.l.b16 %v1620
  %v1661 = vunpack.c.h.b16 %v1620
  %v1662 = vunpack.c.l.b16 %v1621
  %v1663 = vunpack.c.h.b16 %v1621
  %v1664 = vunpack.c.l.b16 %v1622
  %v1665 = vunpack.c.h.b16 %v1622
  %v1666 = vunpack.c.l.b16 %v1623
  %v1667 = vunpack.c.h.b16 %v1623
  %v1668 = vunpack.c.l.b16 %v1624
  %v1669 = vunpack.c.h.b16 %v1624
  %v1670 = vunpack.c.l.b16 %v1625
  %v1671 = vunpack.c.h.b16 %v1625
  %v1672 = vunpack.c.l.b16 %v1626
  %v1673 = vunpack.c.h.b16 %v1626
  %v1674 = vunpack.c.l.b16 %v1627
  %v1675 = vunpack.c.h.b16 %v1627
  %v1676 = vpack.c.b16 %v1646, %v1644
  %v1677 = vpack.c.b16 %v1647, %v1645
  %v1678 = vpack.c.b16 %v1650, %v1648
  %v1679 = vpack.c.b16 %v1651, %v1649
  %v1680 = vpack.c.b16 %v1654, %v1652
  %v1681 = vpack.c.b16 %v1655, %v1653
  %v1682 = vpack.c.b16 %v1658, %v1656
  %v1683 = vpack.c.b16 %v1659, %v1657
  %v1684 = vpack.c.b16 %v1662, %v1660
  %v1685 = vpack.c.b16 %v1663, %v1661
  %v1686 = vpack.c.b16 %v1666, %v1664
  %v1687 = vpack.c.b16 %v1667, %v1665
  %v1688 = vpack.c.b16 %v1670, %v1668
  %v1689 = vpack.c.b16 %v1671, %v1669
  %v1690 = vpack.c.b16 %v1674, %v1672
  %v1691 = vpack.c.b16 %v1675, %v1673
  %1708 = vmatprep.subr.bf16.mxu0 %v1677
  %1709 = vmatpush1.bf16.msra.mxu0 %v1676
  %1710 = vmatprep.subr.bf16.mxu0 %v1679
  %1711 = vmatpush1.bf16.msra.mxu0 %v1678
  %1712 = vmatprep.subr.bf16.mxu0 %v1681
  %1713 = vmatpush1.bf16.msra.mxu0 %v1680
  %1714 = vmatprep.subr.bf16.mxu0 %v1683
  %1715 = vmatpush1.bf16.msra.mxu0 %v1682
  %1716 = vmatprep.subr.bf16.mxu0 %v1685
  %1717 = vmatpush1.bf16.msra.mxu0 %v1684
  %1718 = vmatprep.subr.bf16.mxu0 %v1687
  %1719 = vmatpush1.bf16.msra.mxu0 %v1686
  %1720 = vmatprep.subr.bf16.mxu0 %v1689
  %1721 = vmatpush1.bf16.msra.mxu0 %v1688
  %1722 = vmatprep.subr.bf16.mxu0 %v1691
  %1723 = vmatpush1.bf16.msra.mxu0 %v1690
  %1724 = vmatprep.subr.bf16.mxu0 0
  %1725 = vmatpush1.bf16.msra.mxu0 0
  %1726 = vmatprep.subr.bf16.mxu0 0
  %1727 = vmatpush1.bf16.msra.mxu0 0
  %1728 = vmatprep.subr.bf16.mxu0 0
  %1729 = vmatpush1.bf16.msra.mxu0 0
  %1730 = vmatprep.subr.bf16.mxu0 0
  %1731 = vmatpush1.bf16.msra.mxu0 0
  %1732 = vmatprep.subr.bf16.mxu0 0
  %1733 = vmatpush1.bf16.msra.mxu0 0
  %1734 = vmatprep.subr.bf16.mxu0 0
  %1735 = vmatpush1.bf16.msra.mxu0 0
  %1736 = vmatprep.subr.bf16.mxu0 0
  %1737 = vmatpush1.bf16.msra.mxu0 0
  %1738 = vmatprep.subr.bf16.mxu0 0
  %1739 = vmatpush1.bf16.msra.mxu0 0
  %1740 = vmatprep.mubr.bf16.mxu0 0
  %1741 = vmatmul.mubr.bf16.gmra.mrb[0].mxu0 %v1611
  %v1742 = vpop.f32.mrb[0].mxu0
  %v1743 = vadd.f32 0.0, %v1742
  %v1744 = vpop.f32.mrb[0].mxu0
  %v1745 = vadd.f32 0.0, %v1744
  %v1746 = vpop.f32.mrb[0].mxu0
  %v1747 = vpop.f32.mrb[0].mxu0
  %1748 = vdwg.mxu0
  %v1749 = vadd.f32 %v1608, %v1743
  %v1750 = vadd.f32 %v1609, %v1745
  %v1751 = vld [vmem:[#allocation2 + $0x10] sm:$0x3]
  %v1752 = vpack.c.bf16 %v1751, %v1751
  %v1753 = vld [vmem:[%s5 + $0x400] sm:$0xff]
  %v1754 = vld [vmem:[%s5 + $0x408] sm:$0xff]
  %v1755 = vld [vmem:[%s5 + $0x410] sm:$0xff]
  %v1756 = vld [vmem:[%s5 + $0x418] sm:$0xff]
  %v1757 = vld [vmem:[%s5 + $0x420] sm:$0xff]
  %v1758 = vld [vmem:[%s5 + $0x428] sm:$0xff]
  %v1759 = vld [vmem:[%s5 + $0x430] sm:$0xff]
  %v1760 = vld [vmem:[%s5 + $0x438] sm:$0xff]
  %v1761 = vld [vmem:[%s5 + $0x440] sm:$0xff]
  %v1762 = vld [vmem:[%s5 + $0x448] sm:$0xff]
  %v1763 = vld [vmem:[%s5 + $0x450] sm:$0xff]
  %v1764 = vld [vmem:[%s5 + $0x458] sm:$0xff]
  %v1765 = vld [vmem:[%s5 + $0x460] sm:$0xff]
  %v1766 = vld [vmem:[%s5 + $0x468] sm:$0xff]
  %v1767 = vld [vmem:[%s5 + $0x470] sm:$0xff]
  %v1768 = vld [vmem:[%s5 + $0x478] sm:$0xff]
  %v1785 = vunpack.c.l.b16 %v1753
  %v1786 = vunpack.c.h.b16 %v1753
  %v1787 = vunpack.c.l.b16 %v1754
  %v1788 = vunpack.c.h.b16 %v1754
  %v1789 = vunpack.c.l.b16 %v1755
  %v1790 = vunpack.c.h.b16 %v1755
  %v1791 = vunpack.c.l.b16 %v1756
  %v1792 = vunpack.c.h.b16 %v1756
  %v1793 = vunpack.c.l.b16 %v1757
  %v1794 = vunpack.c.h.b16 %v1757
  %v1795 = vunpack.c.l.b16 %v1758
  %v1796 = vunpack.c.h.b16 %v1758
  %v1797 = vunpack.c.l.b16 %v1759
  %v1798 = vunpack.c.h.b16 %v1759
  %v1799 = vunpack.c.l.b16 %v1760
  %v1800 = vunpack.c.h.b16 %v1760
  %v1801 = vunpack.c.l.b16 %v1761
  %v1802 = vunpack.c.h.b16 %v1761
  %v1803 = vunpack.c.l.b16 %v1762
  %v1804 = vunpack.c.h.b16 %v1762
  %v1805 = vunpack.c.l.b16 %v1763
  %v1806 = vunpack.c.h.b16 %v1763
  %v1807 = vunpack.c.l.b16 %v1764
  %v1808 = vunpack.c.h.b16 %v1764
  %v1809 = vunpack.c.l.b16 %v1765
  %v1810 = vunpack.c.h.b16 %v1765
  %v1811 = vunpack.c.l.b16 %v1766
  %v1812 = vunpack.c.h.b16 %v1766
  %v1813 = vunpack.c.l.b16 %v1767
  %v1814 = vunpack.c.h.b16 %v1767
  %v1815 = vunpack.c.l.b16 %v1768
  %v1816 = vunpack.c.h.b16 %v1768
  %v1817 = vpack.c.b16 %v1787, %v1785
  %v1818 = vpack.c.b16 %v1788, %v1786
  %v1819 = vpack.c.b16 %v1791, %v1789
  %v1820 = vpack.c.b16 %v1792, %v1790
  %v1821 = vpack.c.b16 %v1795, %v1793
  %v1822 = vpack.c.b16 %v1796, %v1794
  %v1823 = vpack.c.b16 %v1799, %v1797
  %v1824 = vpack.c.b16 %v1800, %v1798
  %v1825 = vpack.c.b16 %v1803, %v1801
  %v1826 = vpack.c.b16 %v1804, %v1802
  %v1827 = vpack.c.b16 %v1807, %v1805
  %v1828 = vpack.c.b16 %v1808, %v1806
  %v1829 = vpack.c.b16 %v1811, %v1809
  %v1830 = vpack.c.b16 %v1812, %v1810
  %v1831 = vpack.c.b16 %v1815, %v1813
  %v1832 = vpack.c.b16 %v1816, %v1814
  %1849 = vmatprep.subr.bf16.mxu0 %v1818
  %1850 = vmatpush1.bf16.msra.mxu0 %v1817
  %1851 = vmatprep.subr.bf16.mxu0 %v1820
  %1852 = vmatpush1.bf16.msra.mxu0 %v1819
  %1853 = vmatprep.subr.bf16.mxu0 %v1822
  %1854 = vmatpush1.bf16.msra.mxu0 %v1821
  %1855 = vmatprep.subr.bf16.mxu0 %v1824
  %1856 = vmatpush1.bf16.msra.mxu0 %v1823
  %1857 = vmatprep.subr.bf16.mxu0 %v1826
  %1858 = vmatpush1.bf16.msra.mxu0 %v1825
  %1859 = vmatprep.subr.bf16.mxu0 %v1828
  %1860 = vmatpush1.bf16.msra.mxu0 %v1827
  %1861 = vmatprep.subr.bf16.mxu0 %v1830
  %1862 = vmatpush1.bf16.msra.mxu0 %v1829
  %1863 = vmatprep.subr.bf16.mxu0 %v1832
  %1864 = vmatpush1.bf16.msra.mxu0 %v1831
  %1865 = vmatprep.subr.bf16.mxu0 0
  %1866 = vmatpush1.bf16.msra.mxu0 0
  %1867 = vmatprep.subr.bf16.mxu0 0
  %1868 = vmatpush1.bf16.msra.mxu0 0
  %1869 = vmatprep.subr.bf16.mxu0 0
  %1870 = vmatpush1.bf16.msra.mxu0 0
  %1871 = vmatprep.subr.bf16.mxu0 0
  %1872 = vmatpush1.bf16.msra.mxu0 0
  %1873 = vmatprep.subr.bf16.mxu0 0
  %1874 = vmatpush1.bf16.msra.mxu0 0
  %1875 = vmatprep.subr.bf16.mxu0 0
  %1876 = vmatpush1.bf16.msra.mxu0 0
  %1877 = vmatprep.subr.bf16.mxu0 0
  %1878 = vmatpush1.bf16.msra.mxu0 0
  %1879 = vmatprep.subr.bf16.mxu0 0
  %1880 = vmatpush1.bf16.msra.mxu0 0
  %1881 = vmatprep.mubr.bf16.mxu0 0
  %1882 = vmatmul.mubr.bf16.gmra.mrb[0].mxu0 %v1752
  %v1883 = vpop.f32.mrb[0].mxu0
  %v1884 = vadd.f32 0.0, %v1883
  %v1885 = vpop.f32.mrb[0].mxu0
  %v1886 = vadd.f32 0.0, %v1885
  %v1887 = vpop.f32.mrb[0].mxu0
  %v1888 = vpop.f32.mrb[0].mxu0
  %1889 = vdwg.mxu0
  %v1890 = vadd.f32 %v1749, %v1884
  %v1891 = vadd.f32 %v1750, %v1886
  %v1892 = vld [vmem:[#allocation2 + $0x12] sm:$0x3]
  %v1893 = vpack.c.bf16 %v1892, %v1892
  %v1894 = vld [vmem:[%s5 + $0x480] sm:$0xff]
  %v1895 = vld [vmem:[%s5 + $0x488] sm:$0xff]
  %v1896 = vld [vmem:[%s5 + $0x490] sm:$0xff]
  %v1897 = vld [vmem:[%s5 + $0x498] sm:$0xff]
  %v1898 = vld [vmem:[%s5 + $0x4a0] sm:$0xff]
  %v1899 = vld [vmem:[%s5 + $0x4a8] sm:$0xff]
  %v1900 = vld [vmem:[%s5 + $0x4b0] sm:$0xff]
  %v1901 = vld [vmem:[%s5 + $0x4b8] sm:$0xff]
  %v1902 = vld [vmem:[%s5 + $0x4c0] sm:$0xff]
  %v1903 = vld [vmem:[%s5 + $0x4c8] sm:$0xff]
  %v1904 = vld [vmem:[%s5 + $0x4d0] sm:$0xff]
  %v1905 = vld [vmem:[%s5 + $0x4d8] sm:$0xff]
  %v1906 = vld [vmem:[%s5 + $0x4e0] sm:$0xff]
  %v1907 = vld [vmem:[%s5 + $0x4e8] sm:$0xff]
  %v1908 = vld [vmem:[%s5 + $0x4f0] sm:$0xff]
  %v1909 = vld [vmem:[%s5 + $0x4f8] sm:$0xff]
  %v1926 = vunpack.c.l.b16 %v1894
  %v1927 = vunpack.c.h.b16 %v1894
  %v1928 = vunpack.c.l.b16 %v1895
  %v1929 = vunpack.c.h.b16 %v1895
  %v1930 = vunpack.c.l.b16 %v1896
  %v1931 = vunpack.c.h.b16 %v1896
  %v1932 = vunpack.c.l.b16 %v1897
  %v1933 = vunpack.c.h.b16 %v1897
  %v1934 = vunpack.c.l.b16 %v1898
  %v1935 = vunpack.c.h.b16 %v1898
  %v1936 = vunpack.c.l.b16 %v1899
  %v1937 = vunpack.c.h.b16 %v1899
  %v1938 = vunpack.c.l.b16 %v1900
  %v1939 = vunpack.c.h.b16 %v1900
  %v1940 = vunpack.c.l.b16 %v1901
  %v1941 = vunpack.c.h.b16 %v1901
  %v1942 = vunpack.c.l.b16 %v1902
  %v1943 = vunpack.c.h.b16 %v1902
  %v1944 = vunpack.c.l.b16 %v1903
  %v1945 = vunpack.c.h.b16 %v1903
  %v1946 = vunpack.c.l.b16 %v1904
  %v1947 = vunpack.c.h.b16 %v1904
  %v1948 = vunpack.c.l.b16 %v1905
  %v1949 = vunpack.c.h.b16 %v1905
  %v1950 = vunpack.c.l.b16 %v1906
  %v1951 = vunpack.c.h.b16 %v1906
  %v1952 = vunpack.c.l.b16 %v1907
  %v1953 = vunpack.c.h.b16 %v1907
  %v1954 = vunpack.c.l.b16 %v1908
  %v1955 = vunpack.c.h.b16 %v1908
  %v1956 = vunpack.c.l.b16 %v1909
  %v1957 = vunpack.c.h.b16 %v1909
  %v1958 = vpack.c.b16 %v1928, %v1926
  %v1959 = vpack.c.b16 %v1929, %v1927
  %v1960 = vpack.c.b16 %v1932, %v1930
  %v1961 = vpack.c.b16 %v1933, %v1931
  %v1962 = vpack.c.b16 %v1936, %v1934
  %v1963 = vpack.c.b16 %v1937, %v1935
  %v1964 = vpack.c.b16 %v1940, %v1938
  %v1965 = vpack.c.b16 %v1941, %v1939
  %v1966 = vpack.c.b16 %v1944, %v1942
  %v1967 = vpack.c.b16 %v1945, %v1943
  %v1968 = vpack.c.b16 %v1948, %v1946
  %v1969 = vpack.c.b16 %v1949, %v1947
  %v1970 = vpack.c.b16 %v1952, %v1950
  %v1971 = vpack.c.b16 %v1953, %v1951
  %v1972 = vpack.c.b16 %v1956, %v1954
  %v1973 = vpack.c.b16 %v1957, %v1955
  %1990 = vmatprep.subr.bf16.mxu0 %v1959
  %1991 = vmatpush1.bf16.msra.mxu0 %v1958
  %1992 = vmatprep.subr.bf16.mxu0 %v1961
  %1993 = vmatpush1.bf16.msra.mxu0 %v1960
  %1994 = vmatprep.subr.bf16.mxu0 %v1963
  %1995 = vmatpush1.bf16.msra.mxu0 %v1962
  %1996 = vmatprep.subr.bf16.mxu0 %v1965
  %1997 = vmatpush1.bf16.msra.mxu0 %v1964
  %1998 = vmatprep.subr.bf16.mxu0 %v1967
  %1999 = vmatpush1.bf16.msra.mxu0 %v1966
  %2000 = vmatprep.subr.bf16.mxu0 %v1969
  %2001 = vmatpush1.bf16.msra.mxu0 %v1968
  %2002 = vmatprep.subr.bf16.mxu0 %v1971
  %2003 = vmatpush1.bf16.msra.mxu0 %v1970
  %2004 = vmatprep.subr.bf16.mxu0 %v1973
  %2005 = vmatpush1.bf16.msra.mxu0 %v1972
  %2006 = vmatprep.subr.bf16.mxu0 0
  %2007 = vmatpush1.bf16.msra.mxu0 0
  %2008 = vmatprep.subr.bf16.mxu0 0
  %2009 = vmatpush1.bf16.msra.mxu0 0
  %2010 = vmatprep.subr.bf16.mxu0 0
  %2011 = vmatpush1.bf16.msra.mxu0 0
  %2012 = vmatprep.subr.bf16.mxu0 0
  %2013 = vmatpush1.bf16.msra.mxu0 0
  %2014 = vmatprep.subr.bf16.mxu0 0
  %2015 = vmatpush1.bf16.msra.mxu0 0
  %2016 = vmatprep.subr.bf16.mxu0 0
  %2017 = vmatpush1.bf16.msra.mxu0 0
  %2018 = vmatprep.subr.bf16.mxu0 0
  %2019 = vmatpush1.bf16.msra.mxu0 0
  %2020 = vmatprep.subr.bf16.mxu0 0
  %2021 = vmatpush1.bf16.msra.mxu0 0
  %2022 = vmatprep.mubr.bf16.mxu0 0
  %2023 = vmatmul.mubr.bf16.gmra.mrb[0].mxu0 %v1893
  %v2024 = vpop.f32.mrb[0].mxu0
  %v2025 = vadd.f32 0.0, %v2024
  %v2026 = vpop.f32.mrb[0].mxu0
  %v2027 = vadd.f32 0.0, %v2026
  %v2028 = vpop.f32.mrb[0].mxu0
  %v2029 = vpop.f32.mrb[0].mxu0
  %2030 = vdwg.mxu0
  %v2031 = vadd.f32 %v1890, %v2025
  %v2032 = vadd.f32 %v1891, %v2027
  %v2033 = vld [vmem:[#allocation2 + $0x14] sm:$0x3]
  %v2034 = vpack.c.bf16 %v2033, %v2033
  %v2035 = vld [vmem:[%s5 + $0x500] sm:$0xff]
  %v2036 = vld [vmem:[%s5 + $0x508] sm:$0xff]
  %v2037 = vld [vmem:[%s5 + $0x510] sm:$0xff]
  %v2038 = vld [vmem:[%s5 + $0x518] sm:$0xff]
  %v2039 = vld [vmem:[%s5 + $0x520] sm:$0xff]
  %v2040 = vld [vmem:[%s5 + $0x528] sm:$0xff]
  %v2041 = vld [vmem:[%s5 + $0x530] sm:$0xff]
  %v2042 = vld [vmem:[%s5 + $0x538] sm:$0xff]
  %v2043 = vld [vmem:[%s5 + $0x540] sm:$0xff]
  %v2044 = vld [vmem:[%s5 + $0x548] sm:$0xff]
  %v2045 = vld [vmem:[%s5 + $0x550] sm:$0xff]
  %v2046 = vld [vmem:[%s5 + $0x558] sm:$0xff]
  %v2047 = vld [vmem:[%s5 + $0x560] sm:$0xff]
  %v2048 = vld [vmem:[%s5 + $0x568] sm:$0xff]
  %v2049 = vld [vmem:[%s5 + $0x570] sm:$0xff]
  %v2050 = vld [vmem:[%s5 + $0x578] sm:$0xff]
  %v2067 = vunpack.c.l.b16 %v2035
  %v2068 = vunpack.c.h.b16 %v2035
  %v2069 = vunpack.c.l.b16 %v2036
  %v2070 = vunpack.c.h.b16 %v2036
  %v2071 = vunpack.c.l.b16 %v2037
  %v2072 = vunpack.c.h.b16 %v2037
  %v2073 = vunpack.c.l.b16 %v2038
  %v2074 = vunpack.c.h.b16 %v2038
  %v2075 = vunpack.c.l.b16 %v2039
  %v2076 = vunpack.c.h.b16 %v2039
  %v2077 = vunpack.c.l.b16 %v2040
  %v2078 = vunpack.c.h.b16 %v2040
  %v2079 = vunpack.c.l.b16 %v2041
  %v2080 = vunpack.c.h.b16 %v2041
  %v2081 = vunpack.c.l.b16 %v2042
  %v2082 = vunpack.c.h.b16 %v2042
  %v2083 = vunpack.c.l.b16 %v2043
  %v2084 = vunpack.c.h.b16 %v2043
  %v2085 = vunpack.c.l.b16 %v2044
  %v2086 = vunpack.c.h.b16 %v2044
  %v2087 = vunpack.c.l.b16 %v2045
  %v2088 = vunpack.c.h.b16 %v2045
  %v2089 = vunpack.c.l.b16 %v2046
  %v2090 = vunpack.c.h.b16 %v2046
  %v2091 = vunpack.c.l.b16 %v2047
  %v2092 = vunpack.c.h.b16 %v2047
  %v2093 = vunpack.c.l.b16 %v2048
  %v2094 = vunpack.c.h.b16 %v2048
  %v2095 = vunpack.c.l.b16 %v2049
  %v2096 = vunpack.c.h.b16 %v2049
  %v2097 = vunpack.c.l.b16 %v2050
  %v2098 = vunpack.c.h.b16 %v2050
  %v2099 = vpack.c.b16 %v2069, %v2067
  %v2100 = vpack.c.b16 %v2070, %v2068
  %v2101 = vpack.c.b16 %v2073, %v2071
  %v2102 = vpack.c.b16 %v2074, %v2072
  %v2103 = vpack.c.b16 %v2077, %v2075
  %v2104 = vpack.c.b16 %v2078, %v2076
  %v2105 = vpack.c.b16 %v2081, %v2079
  %v2106 = vpack.c.b16 %v2082, %v2080
  %v2107 = vpack.c.b16 %v2085, %v2083
  %v2108 = vpack.c.b16 %v2086, %v2084
  %v2109 = vpack.c.b16 %v2089, %v2087
  %v2110 = vpack.c.b16 %v2090, %v2088
  %v2111 = vpack.c.b16 %v2093, %v2091
  %v2112 = vpack.c.b16 %v2094, %v2092
  %v2113 = vpack.c.b16 %v2097, %v2095
  %v2114 = vpack.c.b16 %v2098, %v2096
  %2131 = vmatprep.subr.bf16.mxu0 %v2100
  %2132 = vmatpush1.bf16.msra.mxu0 %v2099
  %2133 = vmatprep.subr.bf16.mxu0 %v2102
  %2134 = vmatpush1.bf16.msra.mxu0 %v2101
  %2135 = vmatprep.subr.bf16.mxu0 %v2104
  %2136 = vmatpush1.bf16.msra.mxu0 %v2103
  %2137 = vmatprep.subr.bf16.mxu0 %v2106
  %2138 = vmatpush1.bf16.msra.mxu0 %v2105
  %2139 = vmatprep.subr.bf16.mxu0 %v2108
  %2140 = vmatpush1.bf16.msra.mxu0 %v2107
  %2141 = vmatprep.subr.bf16.mxu0 %v2110
  %2142 = vmatpush1.bf16.msra.mxu0 %v2109
  %2143 = vmatprep.subr.bf16.mxu0 %v2112
  %2144 = vmatpush1.bf16.msra.mxu0 %v2111
  %2145 = vmatprep.subr.bf16.mxu0 %v2114
  %2146 = vmatpush1.bf16.msra.mxu0 %v2113
  %2147 = vmatprep.subr.bf16.mxu0 0
  %2148 = vmatpush1.bf16.msra.mxu0 0
  %2149 = vmatprep.subr.bf16.mxu0 0
  %2150 = vmatpush1.bf16.msra.mxu0 0
  %2151 = vmatprep.subr.bf16.mxu0 0
  %2152 = vmatpush1.bf16.msra.mxu0 0
  %2153 = vmatprep.subr.bf16.mxu0 0
  %2154 = vmatpush1.bf16.msra.mxu0 0
  %2155 = vmatprep.subr.bf16.mxu0 0
  %2156 = vmatpush1.bf16.msra.mxu0 0
  %2157 = vmatprep.subr.bf16.mxu0 0
  %2158 = vmatpush1.bf16.msra.mxu0 0
  %2159 = vmatprep.subr.bf16.mxu0 0
  %2160 = vmatpush1.bf16.msra.mxu0 0
  %2161 = vmatprep.subr.bf16.mxu0 0
  %2162 = vmatpush1.bf16.msra.mxu0 0
  %2163 = vmatprep.mubr.bf16.mxu0 0
  %2164 = vmatmul.mubr.bf16.gmra.mrb[0].mxu0 %v2034
  %v2165 = vpop.f32.mrb[0].mxu0
  %v2166 = vadd.f32 0.0, %v2165
  %v2167 = vpop.f32.mrb[0].mxu0
  %v2168 = vadd.f32 0.0, %v2167
  %v2169 = vpop.f32.mrb[0].mxu0
  %v2170 = vpop.f32.mrb[0].mxu0
  %2171 = vdwg.mxu0
  %v2172 = vadd.f32 %v2031, %v2166
  %v2173 = vadd.f32 %v2032, %v2168
  %v2174 = vld [vmem:[#allocation2 + $0x16] sm:$0x3]
  %v2175 = vpack.c.bf16 %v2174, %v2174
  %v2176 = vld [vmem:[%s5 + $0x580] sm:$0xff]
  %v2177 = vld [vmem:[%s5 + $0x588] sm:$0xff]
  %v2178 = vld [vmem:[%s5 + $0x590] sm:$0xff]
  %v2179 = vld [vmem:[%s5 + $0x598] sm:$0xff]
  %v2180 = vld [vmem:[%s5 + $0x5a0] sm:$0xff]
  %v2181 = vld [vmem:[%s5 + $0x5a8] sm:$0xff]
  %v2182 = vld [vmem:[%s5 + $0x5b0] sm:$0xff]
  %v2183 = vld [vmem:[%s5 + $0x5b8] sm:$0xff]
  %v2184 = vld [vmem:[%s5 + $0x5c0] sm:$0xff]
  %v2185 = vld [vmem:[%s5 + $0x5c8] sm:$0xff]
  %v2186 = vld [vmem:[%s5 + $0x5d0] sm:$0xff]
  %v2187 = vld [vmem:[%s5 + $0x5d8] sm:$0xff]
  %v2188 = vld [vmem:[%s5 + $0x5e0] sm:$0xff]
  %v2189 = vld [vmem:[%s5 + $0x5e8] sm:$0xff]
  %v2190 = vld [vmem:[%s5 + $0x5f0] sm:$0xff]
  %v2191 = vld [vmem:[%s5 + $0x5f8] sm:$0xff]
  %v2208 = vunpack.c.l.b16 %v2176
  %v2209 = vunpack.c.h.b16 %v2176
  %v2210 = vunpack.c.l.b16 %v2177
  %v2211 = vunpack.c.h.b16 %v2177
  %v2212 = vunpack.c.l.b16 %v2178
  %v2213 = vunpack.c.h.b16 %v2178
  %v2214 = vunpack.c.l.b16 %v2179
  %v2215 = vunpack.c.h.b16 %v2179
  %v2216 = vunpack.c.l.b16 %v2180
  %v2217 = vunpack.c.h.b16 %v2180
  %v2218 = vunpack.c.l.b16 %v2181
  %v2219 = vunpack.c.h.b16 %v2181
  %v2220 = vunpack.c.l.b16 %v2182
  %v2221 = vunpack.c.h.b16 %v2182
  %v2222 = vunpack.c.l.b16 %v2183
  %v2223 = vunpack.c.h.b16 %v2183
  %v2224 = vunpack.c.l.b16 %v2184
  %v2225 = vunpack.c.h.b16 %v2184
  %v2226 = vunpack.c.l.b16 %v2185
  %v2227 = vunpack.c.h.b16 %v2185
  %v2228 = vunpack.c.l.b16 %v2186
  %v2229 = vunpack.c.h.b16 %v2186
  %v2230 = vunpack.c.l.b16 %v2187
  %v2231 = vunpack.c.h.b16 %v2187
  %v2232 = vunpack.c.l.b16 %v2188
  %v2233 = vunpack.c.h.b16 %v2188
  %v2234 = vunpack.c.l.b16 %v2189
  %v2235 = vunpack.c.h.b16 %v2189
  %v2236 = vunpack.c.l.b16 %v2190
  %v2237 = vunpack.c.h.b16 %v2190
  %v2238 = vunpack.c.l.b16 %v2191
  %v2239 = vunpack.c.h.b16 %v2191
  %v2240 = vpack.c.b16 %v2210, %v2208
  %v2241 = vpack.c.b16 %v2211, %v2209
  %v2242 = vpack.c.b16 %v2214, %v2212
  %v2243 = vpack.c.b16 %v2215, %v2213
  %v2244 = vpack.c.b16 %v2218, %v2216
  %v2245 = vpack.c.b16 %v2219, %v2217
  %v2246 = vpack.c.b16 %v2222, %v2220
  %v2247 = vpack.c.b16 %v2223, %v2221
  %v2248 = vpack.c.b16 %v2226, %v2224
  %v2249 = vpack.c.b16 %v2227, %v2225
  %v2250 = vpack.c.b16 %v2230, %v2228
  %v2251 = vpack.c.b16 %v2231, %v2229
  %v2252 = vpack.c.b16 %v2234, %v2232
  %v2253 = vpack.c.b16 %v2235, %v2233
  %v2254 = vpack.c.b16 %v2238, %v2236
  %v2255 = vpack.c.b16 %v2239, %v2237
  %2272 = vmatprep.subr.bf16.mxu0 %v2241
  %2273 = vmatpush1.bf16.msra.mxu0 %v2240
  %2274 = vmatprep.subr.bf16.mxu0 %v2243
  %2275 = vmatpush1.bf16.msra.mxu0 %v2242
  %2276 = vmatprep.subr.bf16.mxu0 %v2245
  %2277 = vmatpush1.bf16.msra.mxu0 %v2244
  %2278 = vmatprep.subr.bf16.mxu0 %v2247
  %2279 = vmatpush1.bf16.msra.mxu0 %v2246
  %2280 = vmatprep.subr.bf16.mxu0 %v2249
  %2281 = vmatpush1.bf16.msra.mxu0 %v2248
  %2282 = vmatprep.subr.bf16.mxu0 %v2251
  %2283 = vmatpush1.bf16.msra.mxu0 %v2250
  %2284 = vmatprep.subr.bf16.mxu0 %v2253
  %2285 = vmatpush1.bf16.msra.mxu0 %v2252
  %2286 = vmatprep.subr.bf16.mxu0 %v2255
  %2287 = vmatpush1.bf16.msra.mxu0 %v2254
  %2288 = vmatprep.subr.bf16.mxu0 0
  %2289 = vmatpush1.bf16.msra.mxu0 0
  %2290 = vmatprep.subr.bf16.mxu0 0
  %2291 = vmatpush1.bf16.msra.mxu0 0
  %2292 = vmatprep.subr.bf16.mxu0 0
  %2293 = vmatpush1.bf16.msra.mxu0 0
  %2294 = vmatprep.subr.bf16.mxu0 0
  %2295 = vmatpush1.bf16.msra.mxu0 0
  %2296 = vmatprep.subr.bf16.mxu0 0
  %2297 = vmatpush1.bf16.msra.mxu0 0
  %2298 = vmatprep.subr.bf16.mxu0 0
  %2299 = vmatpush1.bf16.msra.mxu0 0
  %2300 = vmatprep.subr.bf16.mxu0 0
  %2301 = vmatpush1.bf16.msra.mxu0 0
  %2302 = vmatprep.subr.bf16.mxu0 0
  %2303 = vmatpush1.bf16.msra.mxu0 0
  %2304 = vmatprep.mubr.bf16.mxu0 0
  %2305 = vmatmul.mubr.bf16.gmra.mrb[0].mxu0 %v2175
  %v2306 = vpop.f32.mrb[0].mxu0
  %v2307 = vadd.f32 0.0, %v2306
  %v2308 = vpop.f32.mrb[0].mxu0
  %v2309 = vadd.f32 0.0, %v2308
  %v2310 = vpop.f32.mrb[0].mxu0
  %v2311 = vpop.f32.mrb[0].mxu0
  %2312 = vdwg.mxu0
  %v2313 = vadd.f32 %v2172, %v2307
  %v2314 = vadd.f32 %v2173, %v2309
  %v2315 = vld [vmem:[#allocation2 + $0x18] sm:$0x3]
  %v2316 = vpack.c.bf16 %v2315, %v2315
  %v2317 = vld [vmem:[%s5 + $0x600] sm:$0xff]
  %v2318 = vld [vmem:[%s5 + $0x608] sm:$0xff]
  %v2319 = vld [vmem:[%s5 + $0x610] sm:$0xff]
  %v2320 = vld [vmem:[%s5 + $0x618] sm:$0xff]
  %v2321 = vld [vmem:[%s5 + $0x620] sm:$0xff]
  %v2322 = vld [vmem:[%s5 + $0x628] sm:$0xff]
  %v2323 = vld [vmem:[%s5 + $0x630] sm:$0xff]
  %v2324 = vld [vmem:[%s5 + $0x638] sm:$0xff]
  %v2325 = vld [vmem:[%s5 + $0x640] sm:$0xff]
  %v2326 = vld [vmem:[%s5 + $0x648] sm:$0xff]
  %v2327 = vld [vmem:[%s5 + $0x650] sm:$0xff]
  %v2328 = vld [vmem:[%s5 + $0x658] sm:$0xff]
  %v2329 = vld [vmem:[%s5 + $0x660] sm:$0xff]
  %v2330 = vld [vmem:[%s5 + $0x668] sm:$0xff]
  %v2331 = vld [vmem:[%s5 + $0x670] sm:$0xff]
  %v2332 = vld [vmem:[%s5 + $0x678] sm:$0xff]
  %v2349 = vunpack.c.l.b16 %v2317
  %v2350 = vunpack.c.h.b16 %v2317
  %v2351 = vunpack.c.l.b16 %v2318
  %v2352 = vunpack.c.h.b16 %v2318
  %v2353 = vunpack.c.l.b16 %v2319
  %v2354 = vunpack.c.h.b16 %v2319
  %v2355 = vunpack.c.l.b16 %v2320
  %v2356 = vunpack.c.h.b16 %v2320
  %v2357 = vunpack.c.l.b16 %v2321
  %v2358 = vunpack.c.h.b16 %v2321
  %v2359 = vunpack.c.l.b16 %v2322
  %v2360 = vunpack.c.h.b16 %v2322
  %v2361 = vunpack.c.l.b16 %v2323
  %v2362 = vunpack.c.h.b16 %v2323
  %v2363 = vunpack.c.l.b16 %v2324
  %v2364 = vunpack.c.h.b16 %v2324
  %v2365 = vunpack.c.l.b16 %v2325
  %v2366 = vunpack.c.h.b16 %v2325
  %v2367 = vunpack.c.l.b16 %v2326
  %v2368 = vunpack.c.h.b16 %v2326
  %v2369 = vunpack.c.l.b16 %v2327
  %v2370 = vunpack.c.h.b16 %v2327
  %v2371 = vunpack.c.l.b16 %v2328
  %v2372 = vunpack.c.h.b16 %v2328
  %v2373 = vunpack.c.l.b16 %v2329
  %v2374 = vunpack.c.h.b16 %v2329
  %v2375 = vunpack.c.l.b16 %v2330
  %v2376 = vunpack.c.h.b16 %v2330
  %v2377 = vunpack.c.l.b16 %v2331
  %v2378 = vunpack.c.h.b16 %v2331
  %v2379 = vunpack.c.l.b16 %v2332
  %v2380 = vunpack.c.h.b16 %v2332
  %v2381 = vpack.c.b16 %v2351, %v2349
  %v2382 = vpack.c.b16 %v2352, %v2350
  %v2383 = vpack.c.b16 %v2355, %v2353
  %v2384 = vpack.c.b16 %v2356, %v2354
  %v2385 = vpack.c.b16 %v2359, %v2357
  %v2386 = vpack.c.b16 %v2360, %v2358
  %v2387 = vpack.c.b16 %v2363, %v2361
  %v2388 = vpack.c.b16 %v2364, %v2362
  %v2389 = vpack.c.b16 %v2367, %v2365
  %v2390 = vpack.c.b16 %v2368, %v2366
  %v2391 = vpack.c.b16 %v2371, %v2369
  %v2392 = vpack.c.b16 %v2372, %v2370
  %v2393 = vpack.c.b16 %v2375, %v2373
  %v2394 = vpack.c.b16 %v2376, %v2374
  %v2395 = vpack.c.b16 %v2379, %v2377
  %v2396 = vpack.c.b16 %v2380, %v2378
  %2413 = vmatprep.subr.bf16.mxu0 %v2382
  %2414 = vmatpush1.bf16.msra.mxu0 %v2381
  %2415 = vmatprep.subr.bf16.mxu0 %v2384
  %2416 = vmatpush1.bf16.msra.mxu0 %v2383
  %2417 = vmatprep.subr.bf16.mxu0 %v2386
  %2418 = vmatpush1.bf16.msra.mxu0 %v2385
  %2419 = vmatprep.subr.bf16.mxu0 %v2388
  %2420 = vmatpush1.bf16.msra.mxu0 %v2387
  %2421 = vmatprep.subr.bf16.mxu0 %v2390
  %2422 = vmatpush1.bf16.msra.mxu0 %v2389
  %2423 = vmatprep.subr.bf16.mxu0 %v2392
  %2424 = vmatpush1.bf16.msra.mxu0 %v2391
  %2425 = vmatprep.subr.bf16.mxu0 %v2394
  %2426 = vmatpush1.bf16.msra.mxu0 %v2393
  %2427 = vmatprep.subr.bf16.mxu0 %v2396
  %2428 = vmatpush1.bf16.msra.mxu0 %v2395
  %2429 = vmatprep.subr.bf16.mxu0 0
  %2430 = vmatpush1.bf16.msra.mxu0 0
  %2431 = vmatprep.subr.bf16.mxu0 0
  %2432 = vmatpush1.bf16.msra.mxu0 0
  %2433 = vmatprep.subr.bf16.mxu0 0
  %2434 = vmatpush1.bf16.msra.mxu0 0
  %2435 = vmatprep.subr.bf16.mxu0 0
  %2436 = vmatpush1.bf16.msra.mxu0 0
  %2437 = vmatprep.subr.bf16.mxu0 0
  %2438 = vmatpush1.bf16.msra.mxu0 0
  %2439 = vmatprep.subr.bf16.mxu0 0
  %2440 = vmatpush1.bf16.msra.mxu0 0
  %2441 = vmatprep.subr.bf16.mxu0 0
  %2442 = vmatpush1.bf16.msra.mxu0 0
  %2443 = vmatprep.subr.bf16.mxu0 0
  %2444 = vmatpush1.bf16.msra.mxu0 0
  %2445 = vmatprep.mubr.bf16.mxu0 0
  %2446 = vmatmul.mubr.bf16.gmra.mrb[0].mxu0 %v2316
  %v2447 = vpop.f32.mrb[0].mxu0
  %v2448 = vadd.f32 0.0, %v2447
  %v2449 = vpop.f32.mrb[0].mxu0
  %v2450 = vadd.f32 0.0, %v2449
  %v2451 = vpop.f32.mrb[0].mxu0
  %v2452 = vpop.f32.mrb[0].mxu0
  %2453 = vdwg.mxu0
  %v2454 = vadd.f32 %v2313, %v2448
  %v2455 = vadd.f32 %v2314, %v2450
  %v2456 = vld [vmem:[#allocation2 + $0x1a] sm:$0x3]
  %v2457 = vpack.c.bf16 %v2456, %v2456
  %v2458 = vld [vmem:[%s5 + $0x680] sm:$0xff]
  %v2459 = vld [vmem:[%s5 + $0x688] sm:$0xff]
  %v2460 = vld [vmem:[%s5 + $0x690] sm:$0xff]
  %v2461 = vld [vmem:[%s5 + $0x698] sm:$0xff]
  %v2462 = vld [vmem:[%s5 + $0x6a0] sm:$0xff]
  %v2463 = vld [vmem:[%s5 + $0x6a8] sm:$0xff]
  %v2464 = vld [vmem:[%s5 + $0x6b0] sm:$0xff]
  %v2465 = vld [vmem:[%s5 + $0x6b8] sm:$0xff]
  %v2466 = vld [vmem:[%s5 + $0x6c0] sm:$0xff]
  %v2467 = vld [vmem:[%s5 + $0x6c8] sm:$0xff]
  %v2468 = vld [vmem:[%s5 + $0x6d0] sm:$0xff]
  %v2469 = vld [vmem:[%s5 + $0x6d8] sm:$0xff]
  %v2470 = vld [vmem:[%s5 + $0x6e0] sm:$0xff]
  %v2471 = vld [vmem:[%s5 + $0x6e8] sm:$0xff]
  %v2472 = vld [vmem:[%s5 + $0x6f0] sm:$0xff]
  %v2473 = vld [vmem:[%s5 + $0x6f8] sm:$0xff]
  %v2490 = vunpack.c.l.b16 %v2458
  %v2491 = vunpack.c.h.b16 %v2458
  %v2492 = vunpack.c.l.b16 %v2459
  %v2493 = vunpack.c.h.b16 %v2459
  %v2494 = vunpack.c.l.b16 %v2460
  %v2495 = vunpack.c.h.b16 %v2460
  %v2496 = vunpack.c.l.b16 %v2461
  %v2497 = vunpack.c.h.b16 %v2461
  %v2498 = vunpack.c.l.b16 %v2462
  %v2499 = vunpack.c.h.b16 %v2462
  %v2500 = vunpack.c.l.b16 %v2463
  %v2501 = vunpack.c.h.b16 %v2463
  %v2502 = vunpack.c.l.b16 %v2464
  %v2503 = vunpack.c.h.b16 %v2464
  %v2504 = vunpack.c.l.b16 %v2465
  %v2505 = vunpack.c.h.b16 %v2465
  %v2506 = vunpack.c.l.b16 %v2466
  %v2507 = vunpack.c.h.b16 %v2466
  %v2508 = vunpack.c.l.b16 %v2467
  %v2509 = vunpack.c.h.b16 %v2467
  %v2510 = vunpack.c.l.b16 %v2468
  %v2511 = vunpack.c.h.b16 %v2468
  %v2512 = vunpack.c.l.b16 %v2469
  %v2513 = vunpack.c.h.b16 %v2469
  %v2514 = vunpack.c.l.b16 %v2470
  %v2515 = vunpack.c.h.b16 %v2470
  %v2516 = vunpack.c.l.b16 %v2471
  %v2517 = vunpack.c.h.b16 %v2471
  %v2518 = vunpack.c.l.b16 %v2472
  %v2519 = vunpack.c.h.b16 %v2472
  %v2520 = vunpack.c.l.b16 %v2473
  %v2521 = vunpack.c.h.b16 %v2473
  %v2522 = vpack.c.b16 %v2492, %v2490
  %v2523 = vpack.c.b16 %v2493, %v2491
  %v2524 = vpack.c.b16 %v2496, %v2494
  %v2525 = vpack.c.b16 %v2497, %v2495
  %v2526 = vpack.c.b16 %v2500, %v2498
  %v2527 = vpack.c.b16 %v2501, %v2499
  %v2528 = vpack.c.b16 %v2504, %v2502
  %v2529 = vpack.c.b16 %v2505, %v2503
  %v2530 = vpack.c.b16 %v2508, %v2506
  %v2531 = vpack.c.b16 %v2509, %v2507
  %v2532 = vpack.c.b16 %v2512, %v2510
  %v2533 = vpack.c.b16 %v2513, %v2511
  %v2534 = vpack.c.b16 %v2516, %v2514
  %v2535 = vpack.c.b16 %v2517, %v2515
  %v2536 = vpack.c.b16 %v2520, %v2518
  %v2537 = vpack.c.b16 %v2521, %v2519
  %2554 = vmatprep.subr.bf16.mxu0 %v2523
  %2555 = vmatpush1.bf16.msra.mxu0 %v2522
  %2556 = vmatprep.subr.bf16.mxu0 %v2525
  %2557 = vmatpush1.bf16.msra.mxu0 %v2524
  %2558 = vmatprep.subr.bf16.mxu0 %v2527
  %2559 = vmatpush1.bf16.msra.mxu0 %v2526
  %2560 = vmatprep.subr.bf16.mxu0 %v2529
  %2561 = vmatpush1.bf16.msra.mxu0 %v2528
  %2562 = vmatprep.subr.bf16.mxu0 %v2531
  %2563 = vmatpush1.bf16.msra.mxu0 %v2530
  %2564 = vmatprep.subr.bf16.mxu0 %v2533
  %2565 = vmatpush1.bf16.msra.mxu0 %v2532
  %2566 = vmatprep.subr.bf16.mxu0 %v2535
  %2567 = vmatpush1.bf16.msra.mxu0 %v2534
  %2568 = vmatprep.subr.bf16.mxu0 %v2537
  %2569 = vmatpush1.bf16.msra.mxu0 %v2536
  %2570 = vmatprep.subr.bf16.mxu0 0
  %2571 = vmatpush1.bf16.msra.mxu0 0
  %2572 = vmatprep.subr.bf16.mxu0 0
  %2573 = vmatpush1.bf16.msra.mxu0 0
  %2574 = vmatprep.subr.bf16.mxu0 0
  %2575 = vmatpush1.bf16.msra.mxu0 0
  %2576 = vmatprep.subr.bf16.mxu0 0
  %2577 = vmatpush1.bf16.msra.mxu0 0
  %2578 = vmatprep.subr.bf16.mxu0 0
  %2579 = vmatpush1.bf16.msra.mxu0 0
  %2580 = vmatprep.subr.bf16.mxu0 0
  %2581 = vmatpush1.bf16.msra.mxu0 0
  %2582 = vmatprep.subr.bf16.mxu0 0
  %2583 = vmatpush1.bf16.msra.mxu0 0
  %2584 = vmatprep.subr.bf16.mxu0 0
  %2585 = vmatpush1.bf16.msra.mxu0 0
  %2586 = vmatprep.mubr.bf16.mxu0 0
  %2587 = vmatmul.mubr.bf16.gmra.mrb[0].mxu0 %v2457
  %v2588 = vpop.f32.mrb[0].mxu0
  %v2589 = vadd.f32 0.0, %v2588
  %v2590 = vpop.f32.mrb[0].mxu0
  %v2591 = vadd.f32 0.0, %v2590
  %v2592 = vpop.f32.mrb[0].mxu0
  %v2593 = vpop.f32.mrb[0].mxu0
  %2594 = vdwg.mxu0
  %v2595 = vadd.f32 %v2454, %v2589
  %v2596 = vadd.f32 %v2455, %v2591
  %v2597 = vld [vmem:[#allocation2 + $0x1c] sm:$0x3]
  %v2598 = vpack.c.bf16 %v2597, %v2597
  %v2599 = vld [vmem:[%s5 + $0x700] sm:$0xff]
  %v2600 = vld [vmem:[%s5 + $0x708] sm:$0xff]
  %v2601 = vld [vmem:[%s5 + $0x710] sm:$0xff]
  %v2602 = vld [vmem:[%s5 + $0x718] sm:$0xff]
  %v2603 = vld [vmem:[%s5 + $0x720] sm:$0xff]
  %v2604 = vld [vmem:[%s5 + $0x728] sm:$0xff]
  %v2605 = vld [vmem:[%s5 + $0x730] sm:$0xff]
  %v2606 = vld [vmem:[%s5 + $0x738] sm:$0xff]
  %v2607 = vld [vmem:[%s5 + $0x740] sm:$0xff]
  %v2608 = vld [vmem:[%s5 + $0x748] sm:$0xff]
  %v2609 = vld [vmem:[%s5 + $0x750] sm:$0xff]
  %v2610 = vld [vmem:[%s5 + $0x758] sm:$0xff]
  %v2611 = vld [vmem:[%s5 + $0x760] sm:$0xff]
  %v2612 = vld [vmem:[%s5 + $0x768] sm:$0xff]
  %v2613 = vld [vmem:[%s5 + $0x770] sm:$0xff]
  %v2614 = vld [vmem:[%s5 + $0x778] sm:$0xff]
  %v2631 = vunpack.c.l.b16 %v2599
  %v2632 = vunpack.c.h.b16 %v2599
  %v2633 = vunpack.c.l.b16 %v2600
  %v2634 = vunpack.c.h.b16 %v2600
  %v2635 = vunpack.c.l.b16 %v2601
  %v2636 = vunpack.c.h.b16 %v2601
  %v2637 = vunpack.c.l.b16 %v2602
  %v2638 = vunpack.c.h.b16 %v2602
  %v2639 = vunpack.c.l.b16 %v2603
  %v2640 = vunpack.c.h.b16 %v2603
  %v2641 = vunpack.c.l.b16 %v2604
  %v2642 = vunpack.c.h.b16 %v2604
  %v2643 = vunpack.c.l.b16 %v2605
  %v2644 = vunpack.c.h.b16 %v2605
  %v2645 = vunpack.c.l.b16 %v2606
  %v2646 = vunpack.c.h.b16 %v2606
  %v2647 = vunpack.c.l.b16 %v2607
  %v2648 = vunpack.c.h.b16 %v2607
  %v2649 = vunpack.c.l.b16 %v2608
  %v2650 = vunpack.c.h.b16 %v2608
  %v2651 = vunpack.c.l.b16 %v2609
  %v2652 = vunpack.c.h.b16 %v2609
  %v2653 = vunpack.c.l.b16 %v2610
  %v2654 = vunpack.c.h.b16 %v2610
  %v2655 = vunpack.c.l.b16 %v2611
  %v2656 = vunpack.c.h.b16 %v2611
  %v2657 = vunpack.c.l.b16 %v2612
  %v2658 = vunpack.c.h.b16 %v2612
  %v2659 = vunpack.c.l.b16 %v2613
  %v2660 = vunpack.c.h.b16 %v2613
  %v2661 = vunpack.c.l.b16 %v2614
  %v2662 = vunpack.c.h.b16 %v2614
  %v2663 = vpack.c.b16 %v2633, %v2631
  %v2664 = vpack.c.b16 %v2634, %v2632
  %v2665 = vpack.c.b16 %v2637, %v2635
  %v2666 = vpack.c.b16 %v2638, %v2636
  %v2667 = vpack.c.b16 %v2641, %v2639
  %v2668 = vpack.c.b16 %v2642, %v2640
  %v2669 = vpack.c.b16 %v2645, %v2643
  %v2670 = vpack.c.b16 %v2646, %v2644
  %v2671 = vpack.c.b16 %v2649, %v2647
  %v2672 = vpack.c.b16 %v2650, %v2648
  %v2673 = vpack.c.b16 %v2653, %v2651
  %v2674 = vpack.c.b16 %v2654, %v2652
  %v2675 = vpack.c.b16 %v2657, %v2655
  %v2676 = vpack.c.b16 %v2658, %v2656
  %v2677 = vpack.c.b16 %v2661, %v2659
  %v2678 = vpack.c.b16 %v2662, %v2660
  %2695 = vmatprep.subr.bf16.mxu0 %v2664
  %2696 = vmatpush1.bf16.msra.mxu0 %v2663
  %2697 = vmatprep.subr.bf16.mxu0 %v2666
  %2698 = vmatpush1.bf16.msra.mxu0 %v2665
  %2699 = vmatprep.subr.bf16.mxu0 %v2668
  %2700 = vmatpush1.bf16.msra.mxu0 %v2667
  %2701 = vmatprep.subr.bf16.mxu0 %v2670
  %2702 = vmatpush1.bf16.msra.mxu0 %v2669
  %2703 = vmatprep.subr.bf16.mxu0 %v2672
  %2704 = vmatpush1.bf16.msra.mxu0 %v2671
  %2705 = vmatprep.subr.bf16.mxu0 %v2674
  %2706 = vmatpush1.bf16.msra.mxu0 %v2673
  %2707 = vmatprep.subr.bf16.mxu0 %v2676
  %2708 = vmatpush1.bf16.msra.mxu0 %v2675
  %2709 = vmatprep.subr.bf16.mxu0 %v2678
  %2710 = vmatpush1.bf16.msra.mxu0 %v2677
  %2711 = vmatprep.subr.bf16.mxu0 0
  %2712 = vmatpush1.bf16.msra.mxu0 0
  %2713 = vmatprep.subr.bf16.mxu0 0
  %2714 = vmatpush1.bf16.msra.mxu0 0
  %2715 = vmatprep.subr.bf16.mxu0 0
  %2716 = vmatpush1.bf16.msra.mxu0 0
  %2717 = vmatprep.subr.bf16.mxu0 0
  %2718 = vmatpush1.bf16.msra.mxu0 0
  %2719 = vmatprep.subr.bf16.mxu0 0
  %2720 = vmatpush1.bf16.msra.mxu0 0
  %2721 = vmatprep.subr.bf16.mxu0 0
  %2722 = vmatpush1.bf16.msra.mxu0 0
  %2723 = vmatprep.subr.bf16.mxu0 0
  %2724 = vmatpush1.bf16.msra.mxu0 0
  %2725 = vmatprep.subr.bf16.mxu0 0
  %2726 = vmatpush1.bf16.msra.mxu0 0
  %2727 = vmatprep.mubr.bf16.mxu0 0
  %2728 = vmatmul.mubr.bf16.gmra.mrb[0].mxu0 %v2598
  %v2729 = vpop.f32.mrb[0].mxu0
  %v2730 = vadd.f32 0.0, %v2729
  %v2731 = vpop.f32.mrb[0].mxu0
  %v2732 = vadd.f32 0.0, %v2731
  %v2733 = vpop.f32.mrb[0].mxu0
  %v2734 = vpop.f32.mrb[0].mxu0
  %2735 = vdwg.mxu0
  %v2736 = vadd.f32 %v2595, %v2730
  %v2737 = vadd.f32 %v2596, %v2732
  %v2738 = vld [vmem:[#allocation2 + $0x1e] sm:$0x3]
  %v2739 = vpack.c.bf16 %v2738, %v2738
  %v2740 = vld [vmem:[%s5 + $0x780] sm:$0xff]
  %v2741 = vld [vmem:[%s5 + $0x788] sm:$0xff]
  %v2742 = vld [vmem:[%s5 + $0x790] sm:$0xff]
  %v2743 = vld [vmem:[%s5 + $0x798] sm:$0xff]
  %v2744 = vld [vmem:[%s5 + $0x7a0] sm:$0xff]
  %v2745 = vld [vmem:[%s5 + $0x7a8] sm:$0xff]
  %v2746 = vld [vmem:[%s5 + $0x7b0] sm:$0xff]
  %v2747 = vld [vmem:[%s5 + $0x7b8] sm:$0xff]
  %v2748 = vld [vmem:[%s5 + $0x7c0] sm:$0xff]
  %v2749 = vld [vmem:[%s5 + $0x7c8] sm:$0xff]
  %v2750 = vld [vmem:[%s5 + $0x7d0] sm:$0xff]
  %v2751 = vld [vmem:[%s5 + $0x7d8] sm:$0xff]
  %v2752 = vld [vmem:[%s5 + $0x7e0] sm:$0xff]
  %v2753 = vld [vmem:[%s5 + $0x7e8] sm:$0xff]
  %v2754 = vld [vmem:[%s5 + $0x7f0] sm:$0xff]
  %v2755 = vld [vmem:[%s5 + $0x7f8] sm:$0xff]
  %v2772 = vunpack.c.l.b16 %v2740
  %v2773 = vunpack.c.h.b16 %v2740
  %v2774 = vunpack.c.l.b16 %v2741
  %v2775 = vunpack.c.h.b16 %v2741
  %v2776 = vunpack.c.l.b16 %v2742
  %v2777 = vunpack.c.h.b16 %v2742
  %v2778 = vunpack.c.l.b16 %v2743
  %v2779 = vunpack.c.h.b16 %v2743
  %v2780 = vunpack.c.l.b16 %v2744
  %v2781 = vunpack.c.h.b16 %v2744
  %v2782 = vunpack.c.l.b16 %v2745
  %v2783 = vunpack.c.h.b16 %v2745
  %v2784 = vunpack.c.l.b16 %v2746
  %v2785 = vunpack.c.h.b16 %v2746
  %v2786 = vunpack.c.l.b16 %v2747
  %v2787 = vunpack.c.h.b16 %v2747
  %v2788 = vunpack.c.l.b16 %v2748
  %v2789 = vunpack.c.h.b16 %v2748
  %v2790 = vunpack.c.l.b16 %v2749
  %v2791 = vunpack.c.h.b16 %v2749
  %v2792 = vunpack.c.l.b16 %v2750
  %v2793 = vunpack.c.h.b16 %v2750
  %v2794 = vunpack.c.l.b16 %v2751
  %v2795 = vunpack.c.h.b16 %v2751
  %v2796 = vunpack.c.l.b16 %v2752
  %v2797 = vunpack.c.h.b16 %v2752
  %v2798 = vunpack.c.l.b16 %v2753
  %v2799 = vunpack.c.h.b16 %v2753
  %v2800 = vunpack.c.l.b16 %v2754
  %v2801 = vunpack.c.h.b16 %v2754
  %v2802 = vunpack.c.l.b16 %v2755
  %v2803 = vunpack.c.h.b16 %v2755
  %v2804 = vpack.c.b16 %v2774, %v2772
  %v2805 = vpack.c.b16 %v2775, %v2773
  %v2806 = vpack.c.b16 %v2778, %v2776
  %v2807 = vpack.c.b16 %v2779, %v2777
  %v2808 = vpack.c.b16 %v2782, %v2780
  %v2809 = vpack.c.b16 %v2783, %v2781
  %v2810 = vpack.c.b16 %v2786, %v2784
  %v2811 = vpack.c.b16 %v2787, %v2785
  %v2812 = vpack.c.b16 %v2790, %v2788
  %v2813 = vpack.c.b16 %v2791, %v2789
  %v2814 = vpack.c.b16 %v2794, %v2792
  %v2815 = vpack.c.b16 %v2795, %v2793
  %v2816 = vpack.c.b16 %v2798, %v2796
  %v2817 = vpack.c.b16 %v2799, %v2797
  %v2818 = vpack.c.b16 %v2802, %v2800
  %v2819 = vpack.c.b16 %v2803, %v2801
  %2836 = vmatprep.subr.bf16.mxu0 %v2805
  %2837 = vmatpush1.bf16.msra.mxu0 %v2804
  %2838 = vmatprep.subr.bf16.mxu0 %v2807
  %2839 = vmatpush1.bf16.msra.mxu0 %v2806
  %2840 = vmatprep.subr.bf16.mxu0 %v2809
  %2841 = vmatpush1.bf16.msra.mxu0 %v2808
  %2842 = vmatprep.subr.bf16.mxu0 %v2811
  %2843 = vmatpush1.bf16.msra.mxu0 %v2810
  %2844 = vmatprep.subr.bf16.mxu0 %v2813
  %2845 = vmatpush1.bf16.msra.mxu0 %v2812
  %2846 = vmatprep.subr.bf16.mxu0 %v2815
  %2847 = vmatpush1.bf16.msra.mxu0 %v2814
  %2848 = vmatprep.subr.bf16.mxu0 %v2817
  %2849 = vmatpush1.bf16.msra.mxu0 %v2816
  %2850 = vmatprep.subr.bf16.mxu0 %v2819
  %2851 = vmatpush1.bf16.msra.mxu0 %v2818
  %2852 = vmatprep.subr.bf16.mxu0 0
  %2853 = vmatpush1.bf16.msra.mxu0 0
  %2854 = vmatprep.subr.bf16.mxu0 0
  %2855 = vmatpush1.bf16.msra.mxu0 0
  %2856 = vmatprep.subr.bf16.mxu0 0
  %2857 = vmatpush1.bf16.msra.mxu0 0
  %2858 = vmatprep.subr.bf16.mxu0 0
  %2859 = vmatpush1.bf16.msra.mxu0 0
  %2860 = vmatprep.subr.bf16.mxu0 0
  %2861 = vmatpush1.bf16.msra.mxu0 0
  %2862 = vmatprep.subr.bf16.mxu0 0
  %2863 = vmatpush1.bf16.msra.mxu0 0
  %2864 = vmatprep.subr.bf16.mxu0 0
  %2865 = vmatpush1.bf16.msra.mxu0 0
  %2866 = vmatprep.subr.bf16.mxu0 0
  %2867 = vmatpush1.bf16.msra.mxu0 0
  %2868 = vmatprep.mubr.bf16.mxu0 0
  %2869 = vmatmul.mubr.bf16.gmra.mrb[0].mxu0 %v2739
  %v2870 = vpop.f32.mrb[0].mxu0
  %v2871 = vadd.f32 0.0, %v2870
  %v2872 = vpop.f32.mrb[0].mxu0
  %v2873 = vadd.f32 0.0, %v2872
  %v2874 = vpop.f32.mrb[0].mxu0
  %v2875 = vpop.f32.mrb[0].mxu0
  %2876 = vdwg.mxu0
  %v2877 = vadd.f32 %v2736, %v2871
  %v2878 = vadd.f32 %v2737, %v2873
  %vm2879 = vcmask 1041408
  %v2880 = vsel %vm2879, %v2877, 0.0
  %v2881 = vrot.slane %v2880, 4
  %v2882 = vadd.f32 %v2880, %v2881
  %v2883 = vrot.slane %v2882, 2
  %v2884 = vadd.f32 %v2882, %v2883
  %v2885 = vrot.slane %v2884, 1
  %v2886 = vadd.f32 %v2884, %v2885
  %v2887 = vsel %vm2879, %v2878, 0.0
  %v2888 = vrot.slane %v2887, 4
  %v2889 = vadd.f32 %v2887, %v2888
  %v2890 = vrot.slane %v2889, 2
  %v2891 = vadd.f32 %v2889, %v2890
  %v2892 = vrot.slane %v2891, 1
  %v2893 = vadd.f32 %v2891, %v2892
  %v2894 = vrcp.pop 2.0
  %v2895 = vmul.f32 %v2886, %v2894
  %v2896 = vmul.f32 %v2893, %v2894
  %v2897 = vmul.f32 %v2877, %v2877
  %v2898 = vmul.f32 %v2878, %v2878
  %v2899 = vsel %vm2879, %v2897, 0.0
  %v2900 = vrot.slane %v2899, 4
  %v2901 = vadd.f32 %v2899, %v2900
  %v2902 = vrot.slane %v2901, 2
  %v2903 = vadd.f32 %v2901, %v2902
  %v2904 = vrot.slane %v2903, 1
  %v2905 = vadd.f32 %v2903, %v2904
  %v2906 = vsel %vm2879, %v2898, 0.0
  %v2907 = vrot.slane %v2906, 4
  %v2908 = vadd.f32 %v2906, %v2907
  %v2909 = vrot.slane %v2908, 2
  %v2910 = vadd.f32 %v2908, %v2909
  %v2911 = vrot.slane %v2910, 1
  %v2912 = vadd.f32 %v2910, %v2911
  %v2913 = vmul.f32 %v2905, %v2894
  %v2914 = vmul.f32 %v2912, %v2894
  %v2915 = vmul.f32 %v2895, %v2895
  %v2916 = vmul.f32 %v2896, %v2896
  %v2917 = vsub.f32 %v2913, %v2915
  %v2918 = vsub.f32 %v2914, %v2916
  %v2919 = vld [vmem:[%s6] sm:$0x3]
  %v2920 = vadd.f32 %v2917, 1e-05
  %v2921 = vadd.f32 %v2918, 1e-05
  %v2922 = vrsqrt.pop %v2920
  %v2923 = vrsqrt.pop %v2921
  %v2926 = vcombine.low %v2922, %v2923
  %v2928 = vunpack.c.l.s4 1966171168
  %v2929 = vunpack.c.0.s8 %v2928
  %v2930 = vlaneseq
  %v2931 = vshrl.u32 %v2930, 7
  %v2932 = vsub.s32 %v2929, %v2931
  %v2933 = vrot.slane %v2926, %v2932
  %v2935 = vunpack.c.l.s4 1966171168
  %v2936 = vunpack.c.0.s8 %v2935
  %v2937 = vlaneseq
  %v2938 = vshrl.u32 %v2937, 7
  %v2939 = vsub.s32 %v2936, %v2938
  %v2940 = vrot.slane %v2933, %v2939
  %v2942 = vmul.f32 %v2919, %v2940
  %v2944 = vlaneseq
  %v2945 = vshrl.u32 %v2944, 7
  %v2946 = vsub.s32 0, %v2945
  %v2947 = vrot.slane %v2942, %v2946
  %v2948 = vlaneseq
  %v2949 = vshrl.u32 %v2948, 7
  %v2950 = vsub.s32 1, %v2949
  %v2951 = vrot.slane %v2942, %v2950
  %v2954 = vmul.f32 %v2877, %v2947
  %v2955 = vmul.f32 %v2878, %v2951
  %v2956 = vld [vmem:[%s7] sm:$0x3]
  %v2957 = vmul.f32 %v2895, %v2947
  %v2958 = vmul.f32 %v2896, %v2951
  %v2961 = vcombine.low %v2957, %v2958
  %v2963 = vunpack.c.l.s4 1966171168
  %v2964 = vunpack.c.0.s8 %v2963
  %v2965 = vlaneseq
  %v2966 = vshrl.u32 %v2965, 7
  %v2967 = vsub.s32 %v2964, %v2966
  %v2968 = vrot.slane %v2961, %v2967
  %v2970 = vunpack.c.l.s4 1966171168
  %v2971 = vunpack.c.0.s8 %v2970
  %v2972 = vlaneseq
  %v2973 = vshrl.u32 %v2972, 7
  %v2974 = vsub.s32 %v2971, %v2973
  %v2975 = vrot.slane %v2968, %v2974
  %v2977 = vsub.f32 %v2956, %v2975
  %v2979 = vlaneseq
  %v2980 = vshrl.u32 %v2979, 7
  %v2981 = vsub.s32 0, %v2980
  %v2982 = vrot.slane %v2977, %v2981
  %v2983 = vlaneseq
  %v2984 = vshrl.u32 %v2983, 7
  %v2985 = vsub.s32 1, %v2984
  %v2986 = vrot.slane %v2977, %v2985
  %v2989 = vadd.f32 %v2954, %v2982
  %v2990 = vadd.f32 %v2955, %v2986
  %vm2991 = vcmp.ge.f32.partialorder %v2989, 0.0
  %vm2992 = vcmp.ge.f32.partialorder %v2990, 0.0
  %v2993 = vmul.f32 %v2989, 0.2
  %v2994 = vmul.f32 %v2990, 0.2
  %v2995 = vsel %vm2991, %v2989, %v2993
  %v2996 = vsel %vm2992, %v2990, %v2994
  %v2997 = vpack.c.bf16 %v2995, %v2995
  %v2998 = vpack.c.bf16 %v2996, %v2996
  %v2999 = vld [vmem:[%s8] sm:$0xf]
  %v3000 = vld [vmem:[%s8 + $0x4] sm:$0xf]
  %v3001 = vld [vmem:[%s8 + $0x8] sm:$0xf]
  %v3002 = vld [vmem:[%s8 + $0xc] sm:$0xf]
  %v3003 = vld [vmem:[%s8 + $0x10] sm:$0xf]
  %v3004 = vld [vmem:[%s8 + $0x14] sm:$0xf]
  %v3005 = vld [vmem:[%s8 + $0x18] sm:$0xf]
  %v3006 = vld [vmem:[%s8 + $0x1c] sm:$0xf]
  %v3007 = vld [vmem:[%s8 + $0x20] sm:$0xf]
  %v3008 = vld [vmem:[%s8 + $0x24] sm:$0xf]
  %v3009 = vld [vmem:[%s8 + $0x28] sm:$0xf]
  %v3010 = vld [vmem:[%s8 + $0x2c] sm:$0xf]
  %v3011 = vld [vmem:[%s8 + $0x30] sm:$0xf]
  %v3012 = vld [vmem:[%s8 + $0x34] sm:$0xf]
  %v3013 = vld [vmem:[%s8 + $0x38] sm:$0xf]
  %v3014 = vld [vmem:[%s8 + $0x3c] sm:$0xf]
  %v3015 = vld [vmem:[%s8 + $0x40] sm:$0xf]
  %v3016 = vld [vmem:[%s8 + $0x44] sm:$0xf]
  %v3017 = vld [vmem:[%s8 + $0x48] sm:$0xf]
  %v3018 = vld [vmem:[%s8 + $0x4c] sm:$0xf]
  %v3019 = vld [vmem:[%s8 + $0x50] sm:$0xf]
  %v3020 = vld [vmem:[%s8 + $0x54] sm:$0xf]
  %v3021 = vld [vmem:[%s8 + $0x58] sm:$0xf]
  %v3022 = vld [vmem:[%s8 + $0x5c] sm:$0xf]
  %v3023 = vld [vmem:[%s8 + $0x60] sm:$0xf]
  %v3024 = vld [vmem:[%s8 + $0x64] sm:$0xf]
  %v3025 = vld [vmem:[%s8 + $0x68] sm:$0xf]
  %v3026 = vld [vmem:[%s8 + $0x6c] sm:$0xf]
  %v3027 = vld [vmem:[%s8 + $0x70] sm:$0xf]
  %v3028 = vld [vmem:[%s8 + $0x74] sm:$0xf]
  %v3029 = vld [vmem:[%s8 + $0x78] sm:$0xf]
  %v3030 = vld [vmem:[%s8 + $0x7c] sm:$0xf]
  %v3031 = vld [vmem:[%s9] sm:$0x1]
  %v3033 = vlaneseq
  %v3034 = vshrl.u32 %v3033, 7
  %v3035 = vsub.s32 0, %v3034
  %v3036 = vrot.slane %v3031, %v3035
  %v3070 = vunpack.c.l.b16 %v2999
  %v3071 = vunpack.c.l.b16 %v3000
  %v3072 = vunpack.c.l.b16 %v3001
  %v3073 = vunpack.c.l.b16 %v3002
  %v3074 = vunpack.c.l.b16 %v3003
  %v3075 = vunpack.c.l.b16 %v3004
  %v3076 = vunpack.c.l.b16 %v3005
  %v3077 = vunpack.c.l.b16 %v3006
  %v3078 = vunpack.c.l.b16 %v3007
  %v3079 = vunpack.c.l.b16 %v3008
  %v3080 = vunpack.c.l.b16 %v3009
  %v3081 = vunpack.c.l.b16 %v3010
  %v3082 = vunpack.c.l.b16 %v3011
  %v3083 = vunpack.c.l.b16 %v3012
  %v3084 = vunpack.c.l.b16 %v3013
  %v3085 = vunpack.c.l.b16 %v3014
  %v3086 = vunpack.c.l.b16 %v3015
  %v3087 = vunpack.c.l.b16 %v3016
  %v3088 = vunpack.c.l.b16 %v3017
  %v3089 = vunpack.c.l.b16 %v3018
  %v3090 = vunpack.c.l.b16 %v3019
  %v3091 = vunpack.c.l.b16 %v3020
  %v3092 = vunpack.c.l.b16 %v3021
  %v3093 = vunpack.c.l.b16 %v3022
  %v3094 = vunpack.c.l.b16 %v3023
  %v3095 = vunpack.c.l.b16 %v3024
  %v3096 = vunpack.c.l.b16 %v3025
  %v3097 = vunpack.c.l.b16 %v3026
  %v3098 = vunpack.c.l.b16 %v3027
  %v3099 = vunpack.c.l.b16 %v3028
  %v3100 = vunpack.c.l.b16 %v3029
  %v3101 = vunpack.c.l.b16 %v3030
  %v3102 = vpack.c.b16 %v3071, %v3070
  %v3103 = vpack.c.b16 %v3073, %v3072
  %v3104 = vpack.c.b16 %v3075, %v3074
  %v3105 = vpack.c.b16 %v3077, %v3076
  %v3106 = vpack.c.b16 %v3079, %v3078
  %v3107 = vpack.c.b16 %v3081, %v3080
  %v3108 = vpack.c.b16 %v3083, %v3082
  %v3109 = vpack.c.b16 %v3085, %v3084
  %v3110 = vpack.c.b16 %v3087, %v3086
  %v3111 = vpack.c.b16 %v3089, %v3088
  %v3112 = vpack.c.b16 %v3091, %v3090
  %v3113 = vpack.c.b16 %v3093, %v3092
  %v3114 = vpack.c.b16 %v3095, %v3094
  %v3115 = vpack.c.b16 %v3097, %v3096
  %v3116 = vpack.c.b16 %v3099, %v3098
  %v3117 = vpack.c.b16 %v3101, %v3100
  %3134 = vmatprep.subr.bf16.mxu0 0
  %3135 = vmatpush1.bf16.msra.mxu0 %v3102
  %3136 = vmatprep.subr.bf16.mxu0 0
  %3137 = vmatpush1.bf16.msra.mxu0 %v3103
  %3138 = vmatprep.subr.bf16.mxu0 0
  %3139 = vmatpush1.bf16.msra.mxu0 %v3104
  %3140 = vmatprep.subr.bf16.mxu0 0
  %3141 = vmatpush1.bf16.msra.mxu0 %v3105
  %3142 = vmatprep.subr.bf16.mxu0 0
  %3143 = vmatpush1.bf16.msra.mxu0 %v3106
  %3144 = vmatprep.subr.bf16.mxu0 0
  %3145 = vmatpush1.bf16.msra.mxu0 %v3107
  %3146 = vmatprep.subr.bf16.mxu0 0
  %3147 = vmatpush1.bf16.msra.mxu0 %v3108
  %3148 = vmatprep.subr.bf16.mxu0 0
  %3149 = vmatpush1.bf16.msra.mxu0 %v3109
  %3150 = vmatprep.subr.bf16.mxu0 0
  %3151 = vmatpush1.bf16.msra.mxu0 %v3110
  %3152 = vmatprep.subr.bf16.mxu0 0
  %3153 = vmatpush1.bf16.msra.mxu0 %v3111
  %3154 = vmatprep.subr.bf16.mxu0 0
  %3155 = vmatpush1.bf16.msra.mxu0 %v3112
  %3156 = vmatprep.subr.bf16.mxu0 0
  %3157 = vmatpush1.bf16.msra.mxu0 %v3113
  %3158 = vmatprep.subr.bf16.mxu0 0
  %3159 = vmatpush1.bf16.msra.mxu0 %v3114
  %3160 = vmatprep.subr.bf16.mxu0 0
  %3161 = vmatpush1.bf16.msra.mxu0 %v3115
  %3162 = vmatprep.subr.bf16.mxu0 0
  %3163 = vmatpush1.bf16.msra.mxu0 %v3116
  %3164 = vmatprep.subr.bf16.mxu0 0
  %3165 = vmatpush1.bf16.msra.mxu0 %v3117
  %3166 = vmatprep.mubr.bf16.mxu0 %v2998
  %3167 = vmatmul.mubr.bf16.gmra.mrb[0].mxu0 %v2997
  %v3168 = vpop.f32.mrb[0].mxu0
  %v3169 = vadd.f32 %v3036, %v3168
  %v3170 = vpop.f32.mrb[0].mxu0
  %v3171 = vpop.f32.mrb[0].mxu0
  %v3172 = vpop.f32.mrb[0].mxu0
  %3173 = vdwg.mxu0
  %v3174 = vpack.c.bf16 %v3169, %v3169
  %v3175 = vld [vmem:[%s10] sm:$0xf]
  %v3176 = vld [vmem:[%s10 + $0x4] sm:$0xf]
  %v3177 = vld [vmem:[%s10 + $0x8] sm:$0xf]
  %v3178 = vld [vmem:[%s10 + $0xc] sm:$0xf]
  %v3179 = vld [vmem:[%s10 + $0x10] sm:$0xf]
  %v3180 = vld [vmem:[%s10 + $0x14] sm:$0xf]
  %v3181 = vld [vmem:[%s10 + $0x18] sm:$0xf]
  %v3182 = vld [vmem:[%s10 + $0x1c] sm:$0xf]
  %v3183 = vld [vmem:[%s1] sm:$0x1]
  %v3184 = vld [vmem:[%s11] sm:$0xf]
  %v3185 = vld [vmem:[%s11 + $0x4] sm:$0x1]
  %v3188 = vunpack.c.l.b16 %v3184
  %v3189 = vunpack.c.l.b16 %v3185
  %v3190 = vpack.c.b16 %v3189, %v3188
  %vm3191 = vcmask 80896
  %v3193 = vsel %vm3191, %v3183, 0
  %vm3195 = vcmask 1044480
  %v3197 = vsel %vm3195, %v3190, 0
  %3199 = vmatprep.subr.bf16.mxu0 0
  %3200 = vmatpush1.bf16.msra.mxu0 %v3197
  %3201 = vmatprep.subr.bf16.mxu0 0
  %3202 = vmatpush1.bf16.msra.mxu0 0
  %3203 = vmatprep.subr.bf16.mxu0 0
  %3204 = vmatpush1.bf16.msra.mxu0 0
  %3205 = vmatprep.subr.bf16.mxu0 0
  %3206 = vmatpush1.bf16.msra.mxu0 0
  %3207 = vmatprep.subr.bf16.mxu0 0
  %3208 = vmatpush1.bf16.msra.mxu0 0
  %3209 = vmatprep.subr.bf16.mxu0 0
  %3210 = vmatpush1.bf16.msra.mxu0 0
  %3211 = vmatprep.subr.bf16.mxu0 0
  %3212 = vmatpush1.bf16.msra.mxu0 0
  %3213 = vmatprep.subr.bf16.mxu0 0
  %3214 = vmatpush1.bf16.msra.mxu0 0
  %3215 = vmatprep.subr.bf16.mxu0 0
  %3216 = vmatpush1.bf16.msra.mxu0 0
  %3217 = vmatprep.subr.bf16.mxu0 0
  %3218 = vmatpush1.bf16.msra.mxu0 0
  %3219 = vmatprep.subr.bf16.mxu0 0
  %3220 = vmatpush1.bf16.msra.mxu0 0
  %3221 = vmatprep.subr.bf16.mxu0 0
  %3222 = vmatpush1.bf16.msra.mxu0 0
  %3223 = vmatprep.subr.bf16.mxu0 0
  %3224 = vmatpush1.bf16.msra.mxu0 0
  %3225 = vmatprep.subr.bf16.mxu0 0
  %3226 = vmatpush1.bf16.msra.mxu0 0
  %3227 = vmatprep.subr.bf16.mxu0 0
  %3228 = vmatpush1.bf16.msra.mxu0 0
  %3229 = vmatprep.subr.bf16.mxu0 0
  %3230 = vmatpush1.bf16.msra.mxu0 0
  %3231 = vmatprep.mubr.bf16.mxu0 0
  %3232 = vmatmul.mubr.bf16.gmra.mrb[0].mxu0 %v3193
  %v3233 = vpop.f32.mrb[0].mxu0
  %v3234 = vadd.f32 0.0, %v3233
  %v3235 = vpop.f32.mrb[0].mxu0
  %v3236 = vpop.f32.mrb[0].mxu0
  %v3237 = vpop.f32.mrb[0].mxu0
  %3238 = vdwg.mxu0
  %v3247 = vunpack.c.l.b16 %v3175
  %v3248 = vunpack.c.l.b16 %v3176
  %v3249 = vunpack.c.l.b16 %v3177
  %v3250 = vunpack.c.l.b16 %v3178
  %v3251 = vunpack.c.l.b16 %v3179
  %v3252 = vunpack.c.l.b16 %v3180
  %v3253 = vunpack.c.l.b16 %v3181
  %v3254 = vunpack.c.l.b16 %v3182
  %v3255 = vpack.c.b16 %v3248, %v3247
  %v3256 = vpack.c.b16 %v3250, %v3249
  %v3257 = vpack.c.b16 %v3252, %v3251
  %v3258 = vpack.c.b16 %v3254, %v3253
  %v3264 = vsel %vm403, %v3174, 0
  %3266 = vmatprep.subr.bf16.mxu0 0
  %3267 = vmatpush1.bf16.msra.mxu0 %v3255
  %3268 = vmatprep.subr.bf16.mxu0 0
  %3269 = vmatpush1.bf16.msra.mxu0 %v3256
  %3270 = vmatprep.subr.bf16.mxu0 0
  %3271 = vmatpush1.bf16.msra.mxu0 %v3257
  %3272 = vmatprep.subr.bf16.mxu0 0
  %3273 = vmatpush1.bf16.msra.mxu0 %v3258
  %3274 = vmatprep.subr.bf16.mxu0 0
  %3275 = vmatpush1.bf16.msra.mxu0 0
  %3276 = vmatprep.subr.bf16.mxu0 0
  %3277 = vmatpush1.bf16.msra.mxu0 0
  %3278 = vmatprep.subr.bf16.mxu0 0
  %3279 = vmatpush1.bf16.msra.mxu0 0
  %3280 = vmatprep.subr.bf16.mxu0 0
  %3281 = vmatpush1.bf16.msra.mxu0 0
  %3282 = vmatprep.subr.bf16.mxu0 0
  %3283 = vmatpush1.bf16.msra.mxu0 0
  %3284 = vmatprep.subr.bf16.mxu0 0
  %3285 = vmatpush1.bf16.msra.mxu0 0
  %3286 = vmatprep.subr.bf16.mxu0 0
  %3287 = vmatpush1.bf16.msra.mxu0 0
  %3288 = vmatprep.subr.bf16.mxu0 0
  %3289 = vmatpush1.bf16.msra.mxu0 0
  %3290 = vmatprep.subr.bf16.mxu0 0
  %3291 = vmatpush1.bf16.msra.mxu0 0
  %3292 = vmatprep.subr.bf16.mxu0 0
  %3293 = vmatpush1.bf16.msra.mxu0 0
  %3294 = vmatprep.subr.bf16.mxu0 0
  %3295 = vmatpush1.bf16.msra.mxu0 0
  %3296 = vmatprep.subr.bf16.mxu0 0
  %3297 = vmatpush1.bf16.msra.mxu0 0
  %3298 = vmatprep.mubr.bf16.mxu0 0
  %3299 = vmatmul.mubr.bf16.gmra.mrb[0].mxu0 %v3264
  %v3300 = vpop.f32.mrb[0].mxu0
  %v3301 = vadd.f32 %v3234, %v3300
  %v3302 = vpop.f32.mrb[0].mxu0
  %v3303 = vpop.f32.mrb[0].mxu0
  %v3304 = vpop.f32.mrb[0].mxu0
  %3305 = vdwg.mxu0
  %v3306 = vld [vmem:[%s12] sm:$0x1]
  %v3308 = vlaneseq
  %v3309 = vshrl.u32 %v3308, 7
  %v3310 = vsub.s32 0, %v3309
  %v3311 = vrot.slane %v3306, %v3310
  %v3313 = vadd.f32 %v3301, %v3311
  %vm3314 = vcmp.ge.f32.partialorder %v3313, 0.0
  %v3315 = vmul.f32 %v3313, 0.2
  %v3316 = vsel %vm3314, %v3313, %v3315
  %v3317 = vpack.c.bf16 %v3316, %v3316
  %v3318 = vld [vmem:[%s13] sm:$0xf]
  %v3319 = vld [vmem:[%s13 + $0x4] sm:$0xf]
  %v3320 = vld [vmem:[%s13 + $0x8] sm:$0xf]
  %v3321 = vld [vmem:[%s13 + $0xc] sm:$0xf]
  %v3322 = vld [vmem:[%s13 + $0x10] sm:$0xf]
  %v3323 = vld [vmem:[%s13 + $0x14] sm:$0xf]
  %v3324 = vld [vmem:[%s13 + $0x18] sm:$0xf]
  %v3325 = vld [vmem:[%s13 + $0x1c] sm:$0xf]
  %v3326 = vld [vmem:[#allocation3] sm:$0x1]
  %v3328 = vlaneseq
  %v3329 = vshrl.u32 %v3328, 7
  %v3330 = vsub.s32 0, %v3329
  %v3331 = vrot.slane %v3326, %v3330
  %v3341 = vunpack.c.l.b16 %v3318
  %v3342 = vunpack.c.l.b16 %v3319
  %v3343 = vunpack.c.l.b16 %v3320
  %v3344 = vunpack.c.l.b16 %v3321
  %v3345 = vunpack.c.l.b16 %v3322
  %v3346 = vunpack.c.l.b16 %v3323
  %v3347 = vunpack.c.l.b16 %v3324
  %v3348 = vunpack.c.l.b16 %v3325
  %v3349 = vpack.c.b16 %v3342, %v3341
  %v3350 = vpack.c.b16 %v3344, %v3343
  %v3351 = vpack.c.b16 %v3346, %v3345
  %v3352 = vpack.c.b16 %v3348, %v3347
  %v3358 = vsel %vm403, %v3317, 0
  %3360 = vmatprep.subr.bf16.mxu0 0
  %3361 = vmatpush1.bf16.msra.mxu0 %v3349
  %3362 = vmatprep.subr.bf16.mxu0 0
  %3363 = vmatpush1.bf16.msra.mxu0 %v3350
  %3364 = vmatprep.subr.bf16.mxu0 0
  %3365 = vmatpush1.bf16.msra.mxu0 %v3351
  %3366 = vmatprep.subr.bf16.mxu0 0
  %3367 = vmatpush1.bf16.msra.mxu0 %v3352
  %3368 = vmatprep.subr.bf16.mxu0 0
  %3369 = vmatpush1.bf16.msra.mxu0 0
  %3370 = vmatprep.subr.bf16.mxu0 0
  %3371 = vmatpush1.bf16.msra.mxu0 0
  %3372 = vmatprep.subr.bf16.mxu0 0
  %3373 = vmatpush1.bf16.msra.mxu0 0
  %3374 = vmatprep.subr.bf16.mxu0 0
  %3375 = vmatpush1.bf16.msra.mxu0 0
  %3376 = vmatprep.subr.bf16.mxu0 0
  %3377 = vmatpush1.bf16.msra.mxu0 0
  %3378 = vmatprep.subr.bf16.mxu0 0
  %3379 = vmatpush1.bf16.msra.mxu0 0
  %3380 = vmatprep.subr.bf16.mxu0 0
  %3381 = vmatpush1.bf16.msra.mxu0 0
  %3382 = vmatprep.subr.bf16.mxu0 0
  %3383 = vmatpush1.bf16.msra.mxu0 0
  %3384 = vmatprep.subr.bf16.mxu0 0
  %3385 = vmatpush1.bf16.msra.mxu0 0
  %3386 = vmatprep.subr.bf16.mxu0 0
  %3387 = vmatpush1.bf16.msra.mxu0 0
  %3388 = vmatprep.subr.bf16.mxu0 0
  %3389 = vmatpush1.bf16.msra.mxu0 0
  %3390 = vmatprep.subr.bf16.mxu0 0
  %3391 = vmatpush1.bf16.msra.mxu0 0
  %3392 = vmatprep.mubr.bf16.mxu0 0
  %3393 = vmatmul.mubr.bf16.gmra.mrb[0].mxu0 %v3358
  %v3394 = vpop.f32.mrb[0].mxu0
  %v3395 = vadd.f32 %v3331, %v3394
  %v3396 = vpop.f32.mrb[0].mxu0
  %v3397 = vpop.f32.mrb[0].mxu0
  %v3398 = vpop.f32.mrb[0].mxu0
  %3399 = vdwg.mxu0
  %vm3400 = vcmask 1024
  %3401 = vst.msk [vmem:[%s15] sm:$0x3] %vm3400, %v3395
  // Predicated region
  $region62: #{simple_c_discriminator_forward.5} parent=0 // pred_check
    _
  $region63: #{simple_c_discriminator_forward.5} parent=0 // pred_check_branch
    %3403 = sbr.rel (0) target = $region65
  $region64: #{simple_c_discriminator_forward.5} parent=0 // pred_region
    _
  $region65: #{simple_c_discriminator_forward.5} parent=0 // pred_fallthru
    _
  // Predicated region
  $region66: #{simple_c_discriminator_forward.5} parent=0 // pred_check
    _
  $region67: #{simple_c_discriminator_forward.5} parent=0 // pred_check_branch
    %3405 = sbr.rel (0) target = $region69
  $region68: #{simple_c_discriminator_forward.5} parent=0 // pred_region
    _
  $region69: #{simple_c_discriminator_forward.5} parent=0 // pred_fallthru
    _

</llo_original>
